<compile_context>
chip_gen: v7x
topology: tpu7x:2x2x1
jax: 0.10.0
libtpu: 0.0.40
codegen_flags: <defaults>
</compile_context>

<pallas_src>
import functools

import numpy as np
import jax
import jax.numpy as jnp
from jax.experimental import pallas as pl
from jax.experimental.pallas import tpu as pltpu


_COMPILER_PARAMS = pltpu.CompilerParams(
    dimension_semantics=("parallel",),
    vmem_limit_bytes=32 * 1024 * 1024,
)


def _round_up(x, m):
    return ((x + m - 1) // m) * m


# ------------------------------ fused Pallas kernel ------------------------------

def _autoencoder_kernel(p_ref, w1_ref, b1_ref, a_ref, r_ref, b2_ref, o_ref):
    """One batch element per grid step; everything stays resident in VMEM.

    encoder : pooled = relu( max_k (W1 @ P_k) + b1 )                    (32, Hp*Wp)
    decoder : out    = relu( sum_t (A_t @ pooled) @ R_t + b2 )          (32, Mo_pad)
      A_t : flipped ConvTranspose tap (channel mix), R_t : bilinear-x2-upsample +
      pad-by-2 + (kh,kw) window shift folded into one (Hp*Wp, Mo_pad) operator.
    """
    w1 = w1_ref[...]                                                     # (32, 9)

    # -- Conv2d(1,32,3,pad=1) + bias + ReLU fused with MaxPool2d(2) over 4 sub-positions --
    acc = jnp.dot(w1, p_ref[0, 0], preferred_element_type=jnp.float32)
    for k in range(1, 4):
        acc = jnp.maximum(acc, jnp.dot(w1, p_ref[0, k],
                                       preferred_element_type=jnp.float32))
    pooled = jnp.maximum(acc + b1_ref[...], 0.0)                         # (32, Hp*Wp)

    # -- bilinear x2 + ConvTranspose2d(32,32,3) + ReLU as a 9-tap operator sum --
    mixed = jnp.dot(a_ref[0], pooled, preferred_element_type=jnp.float32)
    dec = jnp.dot(mixed, r_ref[0], preferred_element_type=jnp.float32)   # (32, Mo_pad)
    for t in range(1, 9):
        mixed = jnp.dot(a_ref[t], pooled, preferred_element_type=jnp.float32)
        dec = dec + jnp.dot(mixed, r_ref[t], preferred_element_type=jnp.float32)
    o_ref[0] = jnp.maximum(dec + b2_ref[...], 0.0)


# ----------------------------- trace-time constants ------------------------------

@functools.lru_cache(maxsize=None)
def _bilinear_matrix(out_size, in_size):
    """PyTorch F.interpolate(mode='bilinear', align_corners=False), one axis, (out, in)."""
    scale = in_size / out_size
    U = np.zeros((out_size, in_size), np.float32)
    for i in range(out_size):
        src = max((i + 0.5) * scale - 0.5, 0.0)
        i0 = min(int(np.floor(src)), in_size - 1)
        i1 = min(i0 + 1, in_size - 1)
        frac = src - i0
        U[i, i0] += 1.0 - frac
        U[i, i1] += frac
    return U


@functools.lru_cache(maxsize=None)
def _decoder_operators(hp, wp):
    """R_t = kron(UhPad[kh:kh+Ho], UwPad[kw:kw+Wo]).T, lane-padded: (9, Hp*Wp, Mo_pad).

    Folds bilinear x2 (align_corners=False), the pad-by-2 of the flipped-kernel conv
    equivalence of ConvTranspose2d(k=3), and the per-tap window shift into one operator.
    """
    hu, wu = 2 * hp, 2 * wp
    ho, wo = hu + 2, wu + 2
    uh = np.pad(_bilinear_matrix(hu, hp), ((2, 2), (0, 0)))              # (Hu+4, Hp)
    uw = np.pad(_bilinear_matrix(wu, wp), ((2, 2), (0, 0)))              # (Wu+4, Wp)
    mo_pad = _round_up(ho * wo, 128)
    R = np.zeros((9, hp * wp, mo_pad), np.float32)
    for kh in range(3):
        for kw in range(3):
            op = np.kron(uh[kh:kh + ho, :], uw[kw:kw + wo, :]).T         # (Hp*Wp, Ho*Wo)
            R[kh * 3 + kw, :, :ho * wo] = op
    # TODO(synk): this fused-operator form is sized for small spatial dims (the tested
    # config); for large H,W switch to shifted-window accumulation over an in-kernel up_pad.
    return R


def init_params(key):
    k1, k2, k3, k4 = jax.random.split(key, 4)
    W1 = jax.random.normal(k1, (32, 1, 3, 3), jnp.float32) * 0.1    # Conv2d(1,32,3): (out,in,kh,kw)
    b1 = jax.random.normal(k2, (32,), jnp.float32) * 0.1
    W2 = jax.random.normal(k3, (32, 32, 3, 3), jnp.float32) * 0.05  # ConvTranspose2d: (in,out,kh,kw)
    b2 = jax.random.normal(k4, (32,), jnp.float32) * 0.1
    return W1, b1, W2, b2


# ---------------------------------- forward --------------------------------------

def autoencoder_forward(x, params):
    """x: (N, 1, H, W) float32 NCHW with H, W even.  Returns (N, 32, H+2, W+2) NCHW."""
    W1, b1, W2, b2 = params
    N, Cin, H, W = x.shape
    assert Cin == 1 and H % 2 == 0 and W % 2 == 0
    C = 32
    Hp, Wp = H // 2, W // 2          # after MaxPool2d(2)
    Hu, Wu = 2 * Hp, 2 * Wp          # after bilinear x2
    Ho, Wo = Hu + 2, Wu + 2          # after ConvTranspose2d(k=3, no padding)
    Mp, Mo = Hp * Wp, Ho * Wo
    Mo_pad = _round_up(Mo, 128)

    # Encoder im2col for the 4 MaxPool sub-positions, merged into ONE stacked array
    # (single DMA stream per image).  C_in == 1, so this is ~9x one single-channel image.
    # TODO(synk): for large H,W move the tap extraction in-kernel (strided pl.ds loads)
    # to avoid the 9x HBM read of the source image.
    xpad = jnp.pad(x[:, 0], ((0, 0), (1, 1), (1, 1)))                    # (N, H+2, W+2)
    subs = []
    for di in range(2):
        for dj in range(2):
            taps = [xpad[:, di + kh: di + kh + 2 * Hp - 1: 2,
                            dj + kw: dj + kw + 2 * Wp - 1: 2]
                    for kh in range(3) for kw in range(3)]               # 9 x (N, Hp, Wp)
            subs.append(jnp.stack(taps, axis=1))                         # (N, 9, Hp, Wp)
    P = jnp.stack(subs, axis=1).reshape(N, 4, 9, Mp)                     # (N, 4, 9, Mp)

    # Weight-derived constants (tiny).
    W1m = W1.reshape(C, 9)
    b1c = b1.reshape(C, 1)
    # ConvTranspose == conv with flipped, in/out-swapped kernel: A[t][co,ci] = W2[ci,co,2-kh,2-kw]
    A = jnp.transpose(W2[:, :, ::-1, ::-1], (2, 3, 1, 0)).reshape(9, C, C)
    b2c = b2.reshape(C, 1)
    # Spatial operators (shape-only, computed with numpy at trace time).
    R = jnp.asarray(_decoder_operators(Hp, Wp))                          # (9, Mp, Mo_pad)

    flops_per_img = (2 * 4 * C * 9 * Mp
                     + 9 * (2 * C * C * Mp + 2 * C * Mp * Mo_pad)
                     + 8 * C * Mo_pad)
    bytes_accessed = 4 * (N * 4 * 9 * Mp + C * 9 + C + 9 * C * C
                          + 9 * Mp * Mo_pad + C + N * C * Mo_pad)

    out = pl.pallas_call(
        _autoencoder_kernel,
        out_shape=jax.ShapeDtypeStruct((N, C, Mo_pad), jnp.float32),
        grid=(N,),
        in_specs=[
            pl.BlockSpec((1, 4, 9, Mp), lambda n: (n, 0, 0, 0)),   # per-image encoder patches
            pl.BlockSpec((C, 9), lambda n: (0, 0)),                # W1 (replicated)
            pl.BlockSpec((C, 1), lambda n: (0, 0)),                # b1
            pl.BlockSpec((9, C, C), lambda n: (0, 0, 0)),          # A taps
            pl.BlockSpec((9, Mp, Mo_pad), lambda n: (0, 0, 0)),    # R operators
            pl.BlockSpec((C, 1), lambda n: (0, 0)),                # b2
        ],
        out_specs=pl.BlockSpec((1, C, Mo_pad), lambda n: (n, 0, 0)),
        compiler_params=_COMPILER_PARAMS,
        cost_estimate=pl.CostEstimate(
            flops=N * flops_per_img, transcendentals=0,
            bytes_accessed=bytes_accessed),
    )(P, W1m, b1c, A, R, b2c)

    # TODO(synk): PyTorch forward print()s intermediate shapes (debug side effect) - not reproduced.
    return out[:, :, :Mo].reshape(N, C, Ho, Wo)


# ------------------------------ pure-JAX reference --------------------------------

def reference_forward(x, params):
    W1, b1, W2, b2 = params
    y = jax.lax.conv_general_dilated(x, W1, (1, 1), ((1, 1), (1, 1)),
                                     dimension_numbers=('NCHW', 'OIHW', 'NCHW'))
    y = jnp.maximum(y + b1[None, :, None, None], 0.0)
    y = jax.lax.reduce_window(y, -jnp.inf, jax.lax.max, (1, 1, 2, 2), (1, 1, 2, 2), 'VALID')
    Hp, Wp = y.shape[2], y.shape[3]
    Uh = jnp.asarray(_bilinear_matrix(2 * Hp, Hp))
    Uw = jnp.asarray(_bilinear_matrix(2 * Wp, Wp))
    y = jnp.einsum('ia,jb,ncab->ncij', Uh, Uw, y)
    Wt = jnp.transpose(W2, (1, 0, 2, 3))[:, :, ::-1, ::-1]
    y = jax.lax.conv_general_dilated(y, Wt, (1, 1), ((2, 2), (2, 2)),
                                     dimension_numbers=('NCHW', 'OIHW', 'NCHW'))
    return jnp.maximum(y + b2[None, :, None, None], 0.0)


if __name__ == "__main__":
    key = jax.random.PRNGKey(0)
    kx, kp = jax.random.split(key)
    x = jax.random.normal(kx, (2, 1, 16, 16), jnp.float32)
    params = init_params(kp)

    fwd = jax.jit(autoencoder_forward)
    out = jax.block_until_ready(fwd(x, params))
    assert out.shape == (2, 32, 18, 18), out.shape

    ref = jax.block_until_ready(reference_forward(x, params))
    np.testing.assert_allclose(np.asarray(out), np.asarray(ref), rtol=1e-4, atol=1e-4)
    print("KERNEL_OK")
</pallas_src>

<mosaic_0001>
module attributes {stable_mosaic.version = 11 : i64} {
  func.func @_autoencoder_kernel(%arg0: i32, %arg1: memref<1x4x9x64xf32, #tpu.memory_space<vmem>>, %arg2: memref<32x9xf32, #tpu.memory_space<vmem>>, %arg3: memref<32x1xf32, #tpu.memory_space<vmem>>, %arg4: memref<9x32x32xf32, #tpu.memory_space<vmem>>, %arg5: memref<9x64x384xf32, #tpu.memory_space<vmem>>, %arg6: memref<32x1xf32, #tpu.memory_space<vmem>>, %arg7: memref<1x32x384xf32, #tpu.memory_space<vmem>>) attributes {dimension_semantics = [#tpu.dimension_semantics<parallel>], iteration_bounds = array<i64: 2>, scalar_prefetch = 0 : i64, scratch_operands = 0 : i64, tpu.core_type = #tpu.core_type<tc>, window_params = [{transform_indices = @transform_0, window_bounds = array<i64: 1, 4, 9, 64>}, {pipeline_mode = #tpu.pipeline_mode<synchronous>, transform_indices = @transform_1, window_bounds = array<i64: 32, 9>}, {pipeline_mode = #tpu.pipeline_mode<synchronous>, transform_indices = @transform_2, window_bounds = array<i64: 32, 1>}, {pipeline_mode = #tpu.pipeline_mode<synchronous>, transform_indices = @transform_3, window_bounds = array<i64: 9, 32, 32>}, {pipeline_mode = #tpu.pipeline_mode<synchronous>, transform_indices = @transform_4, window_bounds = array<i64: 9, 64, 384>}, {pipeline_mode = #tpu.pipeline_mode<synchronous>, transform_indices = @transform_5, window_bounds = array<i64: 32, 1>}, {transform_indices = @transform_6, window_bounds = array<i64: 1, 32, 384>}]} {
    %c0 = arith.constant 0 : index
    %c0_0 = arith.constant 0 : index
    %0 = vector.load %arg2[%c0, %c0_0] : memref<32x9xf32, #tpu.memory_space<vmem>>, vector<32x9xf32>
    %c0_1 = arith.constant 0 : index
    %c0_2 = arith.constant 0 : index
    %c0_3 = arith.constant 0 : index
    %c0_4 = arith.constant 0 : index
    %1 = vector.load %arg1[%c0_1, %c0_2, %c0_3, %c0_4] : memref<1x4x9x64xf32, #tpu.memory_space<vmem>>, vector<1x1x9x64xf32>
    %2 = vector.shape_cast %1 : vector<1x1x9x64xf32> to vector<9x64xf32>
    %cst = arith.constant dense<0.000000e+00> : vector<32x64xf32>
    %3 = tpu.matmul %0, %2, %cst {dimension_numbers = #tpu.dot_dimension_numbers<[1], [0], [0], [1], [0, 0, 1, 1], [], []>} : vector<32x9xf32>, vector<9x64xf32>, vector<32x64xf32> -> vector<32x64xf32>
    %c0_5 = arith.constant 0 : index
    %c1 = arith.constant 1 : index
    %c0_6 = arith.constant 0 : index
    %c0_7 = arith.constant 0 : index
    %4 = vector.load %arg1[%c0_5, %c1, %c0_6, %c0_7] : memref<1x4x9x64xf32, #tpu.memory_space<vmem>>, vector<1x1x9x64xf32>
    %5 = vector.shape_cast %4 : vector<1x1x9x64xf32> to vector<9x64xf32>
    %cst_8 = arith.constant dense<0.000000e+00> : vector<32x64xf32>
    %6 = tpu.matmul %0, %5, %cst_8 {dimension_numbers = #tpu.dot_dimension_numbers<[1], [0], [0], [1], [0, 0, 1, 1], [], []>} : vector<32x9xf32>, vector<9x64xf32>, vector<32x64xf32> -> vector<32x64xf32>
    %7 = arith.maximumf %3, %6 : vector<32x64xf32>
    %c0_9 = arith.constant 0 : index
    %c2 = arith.constant 2 : index
    %c0_10 = arith.constant 0 : index
    %c0_11 = arith.constant 0 : index
    %8 = vector.load %arg1[%c0_9, %c2, %c0_10, %c0_11] : memref<1x4x9x64xf32, #tpu.memory_space<vmem>>, vector<1x1x9x64xf32>
    %9 = vector.shape_cast %8 : vector<1x1x9x64xf32> to vector<9x64xf32>
    %cst_12 = arith.constant dense<0.000000e+00> : vector<32x64xf32>
    %10 = tpu.matmul %0, %9, %cst_12 {dimension_numbers = #tpu.dot_dimension_numbers<[1], [0], [0], [1], [0, 0, 1, 1], [], []>} : vector<32x9xf32>, vector<9x64xf32>, vector<32x64xf32> -> vector<32x64xf32>
    %11 = arith.maximumf %7, %10 : vector<32x64xf32>
    %c0_13 = arith.constant 0 : index
    %c3 = arith.constant 3 : index
    %c0_14 = arith.constant 0 : index
    %c0_15 = arith.constant 0 : index
    %12 = vector.load %arg1[%c0_13, %c3, %c0_14, %c0_15] : memref<1x4x9x64xf32, #tpu.memory_space<vmem>>, vector<1x1x9x64xf32>
    %13 = vector.shape_cast %12 : vector<1x1x9x64xf32> to vector<9x64xf32>
    %cst_16 = arith.constant dense<0.000000e+00> : vector<32x64xf32>
    %14 = tpu.matmul %0, %13, %cst_16 {dimension_numbers = #tpu.dot_dimension_numbers<[1], [0], [0], [1], [0, 0, 1, 1], [], []>} : vector<32x9xf32>, vector<9x64xf32>, vector<32x64xf32> -> vector<32x64xf32>
    %15 = arith.maximumf %11, %14 : vector<32x64xf32>
    %c0_17 = arith.constant 0 : index
    %c0_18 = arith.constant 0 : index
    %16 = vector.load %arg3[%c0_17, %c0_18] : memref<32x1xf32, #tpu.memory_space<vmem>>, vector<32x1xf32>
    %17 = vector.broadcast %16 : vector<32x1xf32> to vector<32x64xf32>
    %18 = arith.addf %15, %17 : vector<32x64xf32>
    %cst_19 = arith.constant 0.000000e+00 : f32
    %19 = vector.broadcast %cst_19 : f32 to vector<32x64xf32>
    %20 = arith.maximumf %18, %19 : vector<32x64xf32>
    %c0_20 = arith.constant 0 : index
    %c0_21 = arith.constant 0 : index
    %c0_22 = arith.constant 0 : index
    %21 = vector.load %arg4[%c0_20, %c0_21, %c0_22] : memref<9x32x32xf32, #tpu.memory_space<vmem>>, vector<1x32x32xf32>
    %22 = vector.shape_cast %21 : vector<1x32x32xf32> to vector<32x32xf32>
    %cst_23 = arith.constant dense<0.000000e+00> : vector<32x64xf32>
    %23 = tpu.matmul %22, %20, %cst_23 {dimension_numbers = #tpu.dot_dimension_numbers<[1], [0], [0], [1], [0, 0, 1, 1], [], []>} : vector<32x32xf32>, vector<32x64xf32>, vector<32x64xf32> -> vector<32x64xf32>
    %c0_24 = arith.constant 0 : index
    %c0_25 = arith.constant 0 : index
    %c0_26 = arith.constant 0 : index
    %24 = vector.load %arg5[%c0_24, %c0_25, %c0_26] : memref<9x64x384xf32, #tpu.memory_space<vmem>>, vector<1x64x384xf32>
    %25 = vector.shape_cast %24 : vector<1x64x384xf32> to vector<64x384xf32>
    %cst_27 = arith.constant dense<0.000000e+00> : vector<32x384xf32>
    %26 = tpu.matmul %23, %25, %cst_27 {dimension_numbers = #tpu.dot_dimension_numbers<[1], [0], [0], [1], [0, 0, 1, 1], [], []>} : vector<32x64xf32>, vector<64x384xf32>, vector<32x384xf32> -> vector<32x384xf32>
    %c1_28 = arith.constant 1 : index
    %c0_29 = arith.constant 0 : index
    %c0_30 = arith.constant 0 : index
    %27 = vector.load %arg4[%c1_28, %c0_29, %c0_30] : memref<9x32x32xf32, #tpu.memory_space<vmem>>, vector<1x32x32xf32>
    %28 = vector.shape_cast %27 : vector<1x32x32xf32> to vector<32x32xf32>
    %cst_31 = arith.constant dense<0.000000e+00> : vector<32x64xf32>
    %29 = tpu.matmul %28, %20, %cst_31 {dimension_numbers = #tpu.dot_dimension_numbers<[1], [0], [0], [1], [0, 0, 1, 1], [], []>} : vector<32x32xf32>, vector<32x64xf32>, vector<32x64xf32> -> vector<32x64xf32>
    %c1_32 = arith.constant 1 : index
    %c0_33 = arith.constant 0 : index
    %c0_34 = arith.constant 0 : index
    %30 = vector.load %arg5[%c1_32, %c0_33, %c0_34] : memref<9x64x384xf32, #tpu.memory_space<vmem>>, vector<1x64x384xf32>
    %31 = vector.shape_cast %30 : vector<1x64x384xf32> to vector<64x384xf32>
    %cst_35 = arith.constant dense<0.000000e+00> : vector<32x384xf32>
    %32 = tpu.matmul %29, %31, %cst_35 {dimension_numbers = #tpu.dot_dimension_numbers<[1], [0], [0], [1], [0, 0, 1, 1], [], []>} : vector<32x64xf32>, vector<64x384xf32>, vector<32x384xf32> -> vector<32x384xf32>
    %33 = arith.addf %26, %32 : vector<32x384xf32>
    %c2_36 = arith.constant 2 : index
    %c0_37 = arith.constant 0 : index
    %c0_38 = arith.constant 0 : index
    %34 = vector.load %arg4[%c2_36, %c0_37, %c0_38] : memref<9x32x32xf32, #tpu.memory_space<vmem>>, vector<1x32x32xf32>
    %35 = vector.shape_cast %34 : vector<1x32x32xf32> to vector<32x32xf32>
    %cst_39 = arith.constant dense<0.000000e+00> : vector<32x64xf32>
    %36 = tpu.matmul %35, %20, %cst_39 {dimension_numbers = #tpu.dot_dimension_numbers<[1], [0], [0], [1], [0, 0, 1, 1], [], []>} : vector<32x32xf32>, vector<32x64xf32>, vector<32x64xf32> -> vector<32x64xf32>
    %c2_40 = arith.constant 2 : index
    %c0_41 = arith.constant 0 : index
    %c0_42 = arith.constant 0 : index
    %37 = vector.load %arg5[%c2_40, %c0_41, %c0_42] : memref<9x64x384xf32, #tpu.memory_space<vmem>>, vector<1x64x384xf32>
    %38 = vector.shape_cast %37 : vector<1x64x384xf32> to vector<64x384xf32>
    %cst_43 = arith.constant dense<0.000000e+00> : vector<32x384xf32>
    %39 = tpu.matmul %36, %38, %cst_43 {dimension_numbers = #tpu.dot_dimension_numbers<[1], [0], [0], [1], [0, 0, 1, 1], [], []>} : vector<32x64xf32>, vector<64x384xf32>, vector<32x384xf32> -> vector<32x384xf32>
    %40 = arith.addf %33, %39 : vector<32x384xf32>
    %c3_44 = arith.constant 3 : index
    %c0_45 = arith.constant 0 : index
    %c0_46 = arith.constant 0 : index
    %41 = vector.load %arg4[%c3_44, %c0_45, %c0_46] : memref<9x32x32xf32, #tpu.memory_space<vmem>>, vector<1x32x32xf32>
    %42 = vector.shape_cast %41 : vector<1x32x32xf32> to vector<32x32xf32>
    %cst_47 = arith.constant dense<0.000000e+00> : vector<32x64xf32>
    %43 = tpu.matmul %42, %20, %cst_47 {dimension_numbers = #tpu.dot_dimension_numbers<[1], [0], [0], [1], [0, 0, 1, 1], [], []>} : vector<32x32xf32>, vector<32x64xf32>, vector<32x64xf32> -> vector<32x64xf32>
    %c3_48 = arith.constant 3 : index
    %c0_49 = arith.constant 0 : index
    %c0_50 = arith.constant 0 : index
    %44 = vector.load %arg5[%c3_48, %c0_49, %c0_50] : memref<9x64x384xf32, #tpu.memory_space<vmem>>, vector<1x64x384xf32>
    %45 = vector.shape_cast %44 : vector<1x64x384xf32> to vector<64x384xf32>
    %cst_51 = arith.constant dense<0.000000e+00> : vector<32x384xf32>
    %46 = tpu.matmul %43, %45, %cst_51 {dimension_numbers = #tpu.dot_dimension_numbers<[1], [0], [0], [1], [0, 0, 1, 1], [], []>} : vector<32x64xf32>, vector<64x384xf32>, vector<32x384xf32> -> vector<32x384xf32>
    %47 = arith.addf %40, %46 : vector<32x384xf32>
    %c4 = arith.constant 4 : index
    %c0_52 = arith.constant 0 : index
    %c0_53 = arith.constant 0 : index
    %48 = vector.load %arg4[%c4, %c0_52, %c0_53] : memref<9x32x32xf32, #tpu.memory_space<vmem>>, vector<1x32x32xf32>
    %49 = vector.shape_cast %48 : vector<1x32x32xf32> to vector<32x32xf32>
    %cst_54 = arith.constant dense<0.000000e+00> : vector<32x64xf32>
    %50 = tpu.matmul %49, %20, %cst_54 {dimension_numbers = #tpu.dot_dimension_numbers<[1], [0], [0], [1], [0, 0, 1, 1], [], []>} : vector<32x32xf32>, vector<32x64xf32>, vector<32x64xf32> -> vector<32x64xf32>
    %c4_55 = arith.constant 4 : index
    %c0_56 = arith.constant 0 : index
    %c0_57 = arith.constant 0 : index
    %51 = vector.load %arg5[%c4_55, %c0_56, %c0_57] : memref<9x64x384xf32, #tpu.memory_space<vmem>>, vector<1x64x384xf32>
    %52 = vector.shape_cast %51 : vector<1x64x384xf32> to vector<64x384xf32>
    %cst_58 = arith.constant dense<0.000000e+00> : vector<32x384xf32>
    %53 = tpu.matmul %50, %52, %cst_58 {dimension_numbers = #tpu.dot_dimension_numbers<[1], [0], [0], [1], [0, 0, 1, 1], [], []>} : vector<32x64xf32>, vector<64x384xf32>, vector<32x384xf32> -> vector<32x384xf32>
    %54 = arith.addf %47, %53 : vector<32x384xf32>
    %c5 = arith.constant 5 : index
    %c0_59 = arith.constant 0 : index
    %c0_60 = arith.constant 0 : index
    %55 = vector.load %arg4[%c5, %c0_59, %c0_60] : memref<9x32x32xf32, #tpu.memory_space<vmem>>, vector<1x32x32xf32>
    %56 = vector.shape_cast %55 : vector<1x32x32xf32> to vector<32x32xf32>
    %cst_61 = arith.constant dense<0.000000e+00> : vector<32x64xf32>
    %57 = tpu.matmul %56, %20, %cst_61 {dimension_numbers = #tpu.dot_dimension_numbers<[1], [0], [0], [1], [0, 0, 1, 1], [], []>} : vector<32x32xf32>, vector<32x64xf32>, vector<32x64xf32> -> vector<32x64xf32>
    %c5_62 = arith.constant 5 : index
    %c0_63 = arith.constant 0 : index
    %c0_64 = arith.constant 0 : index
    %58 = vector.load %arg5[%c5_62, %c0_63, %c0_64] : memref<9x64x384xf32, #tpu.memory_space<vmem>>, vector<1x64x384xf32>
    %59 = vector.shape_cast %58 : vector<1x64x384xf32> to vector<64x384xf32>
    %cst_65 = arith.constant dense<0.000000e+00> : vector<32x384xf32>
    %60 = tpu.matmul %57, %59, %cst_65 {dimension_numbers = #tpu.dot_dimension_numbers<[1], [0], [0], [1], [0, 0, 1, 1], [], []>} : vector<32x64xf32>, vector<64x384xf32>, vector<32x384xf32> -> vector<32x384xf32>
    %61 = arith.addf %54, %60 : vector<32x384xf32>
    %c6 = arith.constant 6 : index
    %c0_66 = arith.constant 0 : index
    %c0_67 = arith.constant 0 : index
    %62 = vector.load %arg4[%c6, %c0_66, %c0_67] : memref<9x32x32xf32, #tpu.memory_space<vmem>>, vector<1x32x32xf32>
    %63 = vector.shape_cast %62 : vector<1x32x32xf32> to vector<32x32xf32>
    %cst_68 = arith.constant dense<0.000000e+00> : vector<32x64xf32>
    %64 = tpu.matmul %63, %20, %cst_68 {dimension_numbers = #tpu.dot_dimension_numbers<[1], [0], [0], [1], [0, 0, 1, 1], [], []>} : vector<32x32xf32>, vector<32x64xf32>, vector<32x64xf32> -> vector<32x64xf32>
    %c6_69 = arith.constant 6 : index
    %c0_70 = arith.constant 0 : index
    %c0_71 = arith.constant 0 : index
    %65 = vector.load %arg5[%c6_69, %c0_70, %c0_71] : memref<9x64x384xf32, #tpu.memory_space<vmem>>, vector<1x64x384xf32>
    %66 = vector.shape_cast %65 : vector<1x64x384xf32> to vector<64x384xf32>
    %cst_72 = arith.constant dense<0.000000e+00> : vector<32x384xf32>
    %67 = tpu.matmul %64, %66, %cst_72 {dimension_numbers = #tpu.dot_dimension_numbers<[1], [0], [0], [1], [0, 0, 1, 1], [], []>} : vector<32x64xf32>, vector<64x384xf32>, vector<32x384xf32> -> vector<32x384xf32>
    %68 = arith.addf %61, %67 : vector<32x384xf32>
    %c7 = arith.constant 7 : index
    %c0_73 = arith.constant 0 : index
    %c0_74 = arith.constant 0 : index
    %69 = vector.load %arg4[%c7, %c0_73, %c0_74] : memref<9x32x32xf32, #tpu.memory_space<vmem>>, vector<1x32x32xf32>
    %70 = vector.shape_cast %69 : vector<1x32x32xf32> to vector<32x32xf32>
    %cst_75 = arith.constant dense<0.000000e+00> : vector<32x64xf32>
    %71 = tpu.matmul %70, %20, %cst_75 {dimension_numbers = #tpu.dot_dimension_numbers<[1], [0], [0], [1], [0, 0, 1, 1], [], []>} : vector<32x32xf32>, vector<32x64xf32>, vector<32x64xf32> -> vector<32x64xf32>
    %c7_76 = arith.constant 7 : index
    %c0_77 = arith.constant 0 : index
    %c0_78 = arith.constant 0 : index
    %72 = vector.load %arg5[%c7_76, %c0_77, %c0_78] : memref<9x64x384xf32, #tpu.memory_space<vmem>>, vector<1x64x384xf32>
    %73 = vector.shape_cast %72 : vector<1x64x384xf32> to vector<64x384xf32>
    %cst_79 = arith.constant dense<0.000000e+00> : vector<32x384xf32>
    %74 = tpu.matmul %71, %73, %cst_79 {dimension_numbers = #tpu.dot_dimension_numbers<[1], [0], [0], [1], [0, 0, 1, 1], [], []>} : vector<32x64xf32>, vector<64x384xf32>, vector<32x384xf32> -> vector<32x384xf32>
    %75 = arith.addf %68, %74 : vector<32x384xf32>
    %c8 = arith.constant 8 : index
    %c0_80 = arith.constant 0 : index
    %c0_81 = arith.constant 0 : index
    %76 = vector.load %arg4[%c8, %c0_80, %c0_81] : memref<9x32x32xf32, #tpu.memory_space<vmem>>, vector<1x32x32xf32>
    %77 = vector.shape_cast %76 : vector<1x32x32xf32> to vector<32x32xf32>
    %cst_82 = arith.constant dense<0.000000e+00> : vector<32x64xf32>
    %78 = tpu.matmul %77, %20, %cst_82 {dimension_numbers = #tpu.dot_dimension_numbers<[1], [0], [0], [1], [0, 0, 1, 1], [], []>} : vector<32x32xf32>, vector<32x64xf32>, vector<32x64xf32> -> vector<32x64xf32>
    %c8_83 = arith.constant 8 : index
    %c0_84 = arith.constant 0 : index
    %c0_85 = arith.constant 0 : index
    %79 = vector.load %arg5[%c8_83, %c0_84, %c0_85] : memref<9x64x384xf32, #tpu.memory_space<vmem>>, vector<1x64x384xf32>
    %80 = vector.shape_cast %79 : vector<1x64x384xf32> to vector<64x384xf32>
    %cst_86 = arith.constant dense<0.000000e+00> : vector<32x384xf32>
    %81 = tpu.matmul %78, %80, %cst_86 {dimension_numbers = #tpu.dot_dimension_numbers<[1], [0], [0], [1], [0, 0, 1, 1], [], []>} : vector<32x64xf32>, vector<64x384xf32>, vector<32x384xf32> -> vector<32x384xf32>
    %82 = arith.addf %75, %81 : vector<32x384xf32>
    %c0_87 = arith.constant 0 : index
    %c0_88 = arith.constant 0 : index
    %83 = vector.load %arg6[%c0_87, %c0_88] : memref<32x1xf32, #tpu.memory_space<vmem>>, vector<32x1xf32>
    %84 = vector.broadcast %83 : vector<32x1xf32> to vector<32x384xf32>
    %85 = arith.addf %82, %84 : vector<32x384xf32>
    %cst_89 = arith.constant 0.000000e+00 : f32
    %86 = vector.broadcast %cst_89 : f32 to vector<32x384xf32>
    %87 = arith.maximumf %85, %86 : vector<32x384xf32>
    %c0_90 = arith.constant 0 : index
    %c0_91 = arith.constant 0 : index
    %c0_92 = arith.constant 0 : index
    %88 = vector.load %arg7[%c0_90, %c0_91, %c0_92] : memref<1x32x384xf32, #tpu.memory_space<vmem>>, vector<1x32x384xf32>
    %89 = vector.shape_cast %88 : vector<1x32x384xf32> to vector<32x384xf32>
    %90 = vector.shape_cast %87 : vector<32x384xf32> to vector<1x32x384xf32>
    tpu.vector_store %arg7[%c0_90, %c0_91, %c0_92], %90 {strides = array<i32>} : memref<1x32x384xf32, #tpu.memory_space<vmem>>, vector<1x32x384xf32>,
    return
  }
  func.func @transform_0(%arg0: i32) -> (i32, i32, i32, i32) {
    %c0_i32 = arith.constant 0 : i32
    %c0_i32_0 = arith.constant 0 : i32
    %c0_i32_1 = arith.constant 0 : i32
    %c0_i32_2 = arith.constant 0 : i32
    return %arg0, %c0_i32, %c0_i32_0, %c0_i32_1 : i32, i32, i32, i32
  }
  func.func @transform_1(%arg0: i32) -> (i32, i32) {
    %c0_i32 = arith.constant 0 : i32
    %c0_i32_0 = arith.constant 0 : i32
    %c0_i32_1 = arith.constant 0 : i32
    return %c0_i32, %c0_i32_0 : i32, i32
  }
  func.func @transform_2(%arg0: i32) -> (i32, i32) {
    %c0_i32 = arith.constant 0 : i32
    %c0_i32_0 = arith.constant 0 : i32
    %c0_i32_1 = arith.constant 0 : i32
    return %c0_i32, %c0_i32_0 : i32, i32
  }
  func.func @transform_3(%arg0: i32) -> (i32, i32, i32) {
    %c0_i32 = arith.constant 0 : i32
    %c0_i32_0 = arith.constant 0 : i32
    %c0_i32_1 = arith.constant 0 : i32
    %c0_i32_2 = arith.constant 0 : i32
    return %c0_i32, %c0_i32_0, %c0_i32_1 : i32, i32, i32
  }
  func.func @transform_4(%arg0: i32) -> (i32, i32, i32) {
    %c0_i32 = arith.constant 0 : i32
    %c0_i32_0 = arith.constant 0 : i32
    %c0_i32_1 = arith.constant 0 : i32
    %c0_i32_2 = arith.constant 0 : i32
    return %c0_i32, %c0_i32_0, %c0_i32_1 : i32, i32, i32
  }
  func.func @transform_5(%arg0: i32) -> (i32, i32) {
    %c0_i32 = arith.constant 0 : i32
    %c0_i32_0 = arith.constant 0 : i32
    %c0_i32_1 = arith.constant 0 : i32
    return %c0_i32, %c0_i32_0 : i32, i32
  }
  func.func @transform_6(%arg0: i32) -> (i32, i32, i32) {
    %c0_i32 = arith.constant 0 : i32
    %c0_i32_0 = arith.constant 0 : i32
    %c0_i32_1 = arith.constant 0 : i32
    return %arg0, %c0_i32, %c0_i32_0 : i32, i32, i32
  }
}

</mosaic_0001>

<llo_original>
// kernel: autoencoder_forward.1
$region0: #{autoencoder_forward.1}
  #allocation0 [shape = 'u32[]', space=smem, size = 0x4, offset = 0x4, fixed_abs, tag = 'smem constant byte address 0x4 - core index']
  #allocation1 [shape = 'u32[144,128]{1,0:T(1,128)}', space=vmem, size = 0x12000, scoped, tag = 'internal scratch']
  %s0 = inlined_call_operand.vmem [shape: f32[2,4,9,64], index: 0, kind: input, shape index: {}]
  %s1 = inlined_call_operand.vmem [shape: f32[32,9], index: 1, kind: input, shape index: {}]
  %s2 = inlined_call_operand.vmem [shape: f32[32,1], index: 2, kind: input, shape index: {}]
  %s3 = inlined_call_operand.vmem [shape: f32[9,32,32], index: 3, kind: input, shape index: {}]
  %s4 = inlined_call_operand.vmem [shape: f32[9,64,384], index: 4, kind: input, shape index: {}]
  %s5 = inlined_call_operand.vmem [shape: f32[32,1], index: 5, kind: input, shape index: {}]
  %s6 = inlined_call_operand.vmem [shape: f32[2,32,384], index: 6, kind: output, shape index: {}]
  %s7 = sld [smem:[#allocation0]]
  $region57: #{autoencoder_forward.1} parent=0
    _
  %s9 = ssub.s32 1, %s7
  %s10 = scalar_select 0, %s9, %s7
  loop: start=0, step=1, limit=4
  $region2: #{autoencoder_forward.1} parent=0 // loop_pre_header
    _
  $region3: #{autoencoder_forward.1} parent=0 // loop_header
    %s12 = sphi 0, %s16
    %p13 = scmp.ge.s32.totalorder %s12, 4
    %s22 = sphi 0, %s24
    %s25 = sphi 0, %s22
    %s26 = sphi 0, %s25
    %s42 = sphi 0, %s26
    %s46 = sphi 0, %s46
    %s48 = sphi 0, %s46
    %s49 = sphi 0, %s48
    %s63 = sphi 0, %s49
    %s67 = sphi 0, %s67
    %s69 = sphi 0, %s67
    %s70 = sphi 0, %s69
    %s84 = sphi 0, %s70
    %s88 = sphi 0, %s88
    %s90 = sphi 0, %s88
    %s91 = sphi 0, %s90
    %s105 = sphi 0, %s91
    %s109 = sphi 0, %s109
    %s111 = sphi 0, %s109
    %s112 = sphi 0, %s111
    %s126 = sphi 0, %s112
    %s130 = sphi 0, %s130
    %s132 = sphi 0, %s130
    %s133 = sphi 0, %s132
    %s147 = sphi 0, %s133
    %s153 = sphi 0, %s155
    %s156 = sphi 0, %s153
    %s157 = sphi 0, %s156
    %s173 = sphi 0, %s157
  $region4: #{autoencoder_forward.1} parent=0 // loop_header_branch
    %15 = sbr.rel (%p13) target = $region8
  $region5: #{autoencoder_forward.1} parent=0 // loop_body
    %s17 = ssub.s32 %s12, 1
    %s18 = ssub.s32 %s12, 2
    %s19 = sadd.s32 %s12, 1
    %s20 = ssub.s32 %s12, %s19
    %p21 = scmp.eq.s32.totalorder %s20, 0
    %s23 = sadd.s32 %s22, 1
    %s24 = scalar_select %p21, %s22, %s23
    %p27 = pneg %p21
    %p28 = scmp.eq.s32.totalorder %s12, 1
    %p29 = por %p27, %p28
    %p30 = scmp.ne.s32.totalorder %s22, %s25
    %p31 = scmp.eq.s32.totalorder %s12, 0
    %p32 = por %p30, %p31
    %p33 = scmp.ne.s32.totalorder %s22, %s25
    %p34 = scmp.eq.s32.totalorder %s17, 1
    %p35 = por %p33, %p34
    %p36 = scmp.ne.s32.totalorder %s25, %s26
    %p37 = scmp.eq.s32.totalorder %s17, 0
    %p38 = por %p36, %p37
    %p39 = scmp.ne.s32.totalorder %s25, %s26
    %p40 = scmp.eq.s32.totalorder %s18, 1
    %p41 = por %p39, %p40
    %p43 = scmp.ne.s32.totalorder %s26, %s42
    %p44 = scmp.eq.s32.totalorder %s18, 0
    %p45 = por %p43, %p44
    %s47 = sadd.s32 %s46, 1
    %p50 = scmp.eq.s32.totalorder %s12, 1
    %p51 = scmp.ne.s32.totalorder %s46, %s48
    %p52 = scmp.eq.s32.totalorder %s12, 0
    %p53 = por %p51, %p52
    %p54 = scmp.ne.s32.totalorder %s46, %s48
    %p55 = scmp.eq.s32.totalorder %s17, 1
    %p56 = por %p54, %p55
    %p57 = scmp.ne.s32.totalorder %s48, %s49
    %p58 = scmp.eq.s32.totalorder %s17, 0
    %p59 = por %p57, %p58
    %p60 = scmp.ne.s32.totalorder %s48, %s49
    %p61 = scmp.eq.s32.totalorder %s18, 1
    %p62 = por %p60, %p61
    %p64 = scmp.ne.s32.totalorder %s49, %s63
    %p65 = scmp.eq.s32.totalorder %s18, 0
    %p66 = por %p64, %p65
    %s68 = sadd.s32 %s67, 1
    %p71 = scmp.eq.s32.totalorder %s12, 1
    %p72 = scmp.ne.s32.totalorder %s67, %s69
    %p73 = scmp.eq.s32.totalorder %s12, 0
    %p74 = por %p72, %p73
    %p75 = scmp.ne.s32.totalorder %s67, %s69
    %p76 = scmp.eq.s32.totalorder %s17, 1
    %p77 = por %p75, %p76
    %p78 = scmp.ne.s32.totalorder %s69, %s70
    %p79 = scmp.eq.s32.totalorder %s17, 0
    %p80 = por %p78, %p79
    %p81 = scmp.ne.s32.totalorder %s69, %s70
    %p82 = scmp.eq.s32.totalorder %s18, 1
    %p83 = por %p81, %p82
    %p85 = scmp.ne.s32.totalorder %s70, %s84
    %p86 = scmp.eq.s32.totalorder %s18, 0
    %p87 = por %p85, %p86
    %s89 = sadd.s32 %s88, 1
    %p92 = scmp.eq.s32.totalorder %s12, 1
    %p93 = scmp.ne.s32.totalorder %s88, %s90
    %p94 = scmp.eq.s32.totalorder %s12, 0
    %p95 = por %p93, %p94
    %p96 = scmp.ne.s32.totalorder %s88, %s90
    %p97 = scmp.eq.s32.totalorder %s17, 1
    %p98 = por %p96, %p97
    %p99 = scmp.ne.s32.totalorder %s90, %s91
    %p100 = scmp.eq.s32.totalorder %s17, 0
    %p101 = por %p99, %p100
    %p102 = scmp.ne.s32.totalorder %s90, %s91
    %p103 = scmp.eq.s32.totalorder %s18, 1
    %p104 = por %p102, %p103
    %p106 = scmp.ne.s32.totalorder %s91, %s105
    %p107 = scmp.eq.s32.totalorder %s18, 0
    %p108 = por %p106, %p107
    %s110 = sadd.s32 %s109, 1
    %p113 = scmp.eq.s32.totalorder %s12, 1
    %p114 = scmp.ne.s32.totalorder %s109, %s111
    %p115 = scmp.eq.s32.totalorder %s12, 0
    %p116 = por %p114, %p115
    %p117 = scmp.ne.s32.totalorder %s109, %s111
    %p118 = scmp.eq.s32.totalorder %s17, 1
    %p119 = por %p117, %p118
    %p120 = scmp.ne.s32.totalorder %s111, %s112
    %p121 = scmp.eq.s32.totalorder %s17, 0
    %p122 = por %p120, %p121
    %p123 = scmp.ne.s32.totalorder %s111, %s112
    %p124 = scmp.eq.s32.totalorder %s18, 1
    %p125 = por %p123, %p124
    %p127 = scmp.ne.s32.totalorder %s112, %s126
    %p128 = scmp.eq.s32.totalorder %s18, 0
    %p129 = por %p127, %p128
    %s131 = sadd.s32 %s130, 1
    %p134 = scmp.eq.s32.totalorder %s12, 1
    %p135 = scmp.ne.s32.totalorder %s130, %s132
    %p136 = scmp.eq.s32.totalorder %s12, 0
    %p137 = por %p135, %p136
    %p138 = scmp.ne.s32.totalorder %s130, %s132
    %p139 = scmp.eq.s32.totalorder %s17, 1
    %p140 = por %p138, %p139
    %p141 = scmp.ne.s32.totalorder %s132, %s133
    %p142 = scmp.eq.s32.totalorder %s17, 0
    %p143 = por %p141, %p142
    %p144 = scmp.ne.s32.totalorder %s132, %s133
    %p145 = scmp.eq.s32.totalorder %s18, 1
    %p146 = por %p144, %p145
    %p148 = scmp.ne.s32.totalorder %s133, %s147
    %p149 = scmp.eq.s32.totalorder %s18, 0
    %p150 = por %p148, %p149
    %s151 = ssub.s32 %s12, %s19
    %p152 = scmp.eq.s32.totalorder %s151, 0
    %s154 = sadd.s32 %s153, 1
    %s155 = scalar_select %p152, %s153, %s154
    %p158 = pneg %p152
    %p159 = scmp.eq.s32.totalorder %s12, 1
    %p160 = por %p158, %p159
    %p161 = scmp.ne.s32.totalorder %s153, %s156
    %p162 = scmp.eq.s32.totalorder %s12, 0
    %p163 = por %p161, %p162
    %p164 = scmp.ne.s32.totalorder %s153, %s156
    %p165 = scmp.eq.s32.totalorder %s17, 1
    %p166 = por %p164, %p165
    %p167 = scmp.ne.s32.totalorder %s156, %s157
    %p168 = scmp.eq.s32.totalorder %s17, 0
    %p169 = por %p167, %p168
    %p170 = scmp.ne.s32.totalorder %s156, %s157
    %p171 = scmp.eq.s32.totalorder %s18, 1
    %p172 = por %p170, %p171
    %p174 = scmp.ne.s32.totalorder %s157, %s173
    %p175 = scmp.eq.s32.totalorder %s18, 0
    %p176 = por %p174, %p175
    %p177 = scmp.le.s32.totalorder 1, %s12
    %p178 = scmp.lt.s32.totalorder %s12, 3
    %p179 = pnand %p177, %p178
    %p180 = pneg %p179
    // Predicated region
    $region9: #{autoencoder_forward.1} parent=5 // pred_check
      _
    $region10: #{autoencoder_forward.1} parent=5 // pred_check_branch
      %182 = sbr.rel (%p179) target = $region12
    $region11: #{autoencoder_forward.1} parent=5 // pred_region
      %s183 = ssub.s32 %s12, 1
      // Predicated region
      $region13: #{autoencoder_forward.1} parent=11 // pred_check
        %p184 = pneg %p59
      $region14: #{autoencoder_forward.1} parent=11 // pred_check_branch
        %186 = sbr.rel (%p184) target = $region16
      $region15: #{autoencoder_forward.1} parent=11 // pred_region
        _
      $region16: #{autoencoder_forward.1} parent=11 // pred_fallthru
        _
      // Predicated region
      $region17: #{autoencoder_forward.1} parent=11 // pred_check
        %p187 = pneg %p80
      $region18: #{autoencoder_forward.1} parent=11 // pred_check_branch
        %189 = sbr.rel (%p187) target = $region20
      $region19: #{autoencoder_forward.1} parent=11 // pred_region
        _
      $region20: #{autoencoder_forward.1} parent=11 // pred_fallthru
        _
      // Predicated region
      $region21: #{autoencoder_forward.1} parent=11 // pred_check
        %p190 = pneg %p101
      $region22: #{autoencoder_forward.1} parent=11 // pred_check_branch
        %192 = sbr.rel (%p190) target = $region24
      $region23: #{autoencoder_forward.1} parent=11 // pred_region
        _
      $region24: #{autoencoder_forward.1} parent=11 // pred_fallthru
        _
      // Predicated region
      $region25: #{autoencoder_forward.1} parent=11 // pred_check
        %p193 = pneg %p122
      $region26: #{autoencoder_forward.1} parent=11 // pred_check_branch
        %195 = sbr.rel (%p193) target = $region28
      $region27: #{autoencoder_forward.1} parent=11 // pred_region
        _
      $region28: #{autoencoder_forward.1} parent=11 // pred_fallthru
        _
      // Predicated region
      $region29: #{autoencoder_forward.1} parent=11 // pred_check
        %p196 = pneg %p143
      $region30: #{autoencoder_forward.1} parent=11 // pred_check_branch
        %198 = sbr.rel (%p196) target = $region32
      $region31: #{autoencoder_forward.1} parent=11 // pred_region
        _
      $region32: #{autoencoder_forward.1} parent=11 // pred_fallthru
        _
    $region12: #{autoencoder_forward.1} parent=5 // pred_fallthru
      _
    %p199 = scmp.lt.s32.totalorder %s12, 2
    // Predicated region
    $region33: #{autoencoder_forward.1} parent=5 // pred_check
      %p200 = pneg %p199
    $region34: #{autoencoder_forward.1} parent=5 // pred_check_branch
      %202 = sbr.rel (%p200) target = $region36
    $region35: #{autoencoder_forward.1} parent=5 // pred_region
      // Predicated region
      $region37: #{autoencoder_forward.1} parent=35 // pred_check
        %p203 = pneg %p32
      $region38: #{autoencoder_forward.1} parent=35 // pred_check_branch
        %205 = sbr.rel (%p203) target = $region40
      $region39: #{autoencoder_forward.1} parent=35 // pred_region
        %p206 = scmp.lt.s32.totalorder %s12, 1
        %s207 = scalar_select %p206, %s12, 1
        %s208 = smul.addr %s207, 8
        %s209 = smul.addr %s208, 8
        %s210 = scalar_lea.vmem %s0, %s209
      $region40: #{autoencoder_forward.1} parent=35 // pred_fallthru
        _
    $region36: #{autoencoder_forward.1} parent=5 // pred_fallthru
      _
    %p211 = scmp.le.s32.totalorder 1, %s12
    %p212 = scmp.lt.s32.totalorder %s12, 3
    %p213 = pnand %p211, %p212
    %p214 = pneg %p213
    // Predicated region
    $region41: #{autoencoder_forward.1} parent=5 // pred_check
      _
    $region42: #{autoencoder_forward.1} parent=5 // pred_check_branch
      %216 = sbr.rel (%p213) target = $region44
    $region43: #{autoencoder_forward.1} parent=5 // pred_region
      %s217 = ssub.s32 %s12, 1
      %p218 = scmp.lt.s32.totalorder %s17, 1
      %s219 = scalar_select %p218, %s17, 1
      %s220 = smul.addr %s219, 8
      %s221 = smul.addr %s220, 8
      %s222 = scalar_lea.vmem %s0, %s221
      %p223 = pneg %p38
      %p224 = pneg %p35
      %p225 = pneg %p59
      %p226 = pneg %p56
      %p227 = pneg %p80
      %p228 = pneg %p77
      %p229 = pneg %p101
      %p230 = pneg %p98
      %p231 = pneg %p122
      %p232 = pneg %p119
      %p233 = pneg %p143
      %p234 = pneg %p140
      %p235 = pneg %p169
      %p236 = pneg %p166
      %p237 = scmp.lt.s32.totalorder %s17, 1
      %s238 = scalar_select %p237, %s17, 1
      %s239 = smul.addr %s238, 12
      %s240 = smul.addr %s239, 8
      %s241 = scalar_lea.vmem %s6, %s240
      %p242 = scmp.lt.s32.totalorder %s17, 1
      %s243 = scalar_select %p242, %s17, 1
      %s244 = smul.addr %s243, 8
      %s245 = smul.addr %s244, 8
      %s246 = scalar_lea.vmem %s0, %s245
      %p247 = scmp.lt.s32.totalorder %s17, 1
      %s248 = scalar_select %p247, %s17, 1
      %s249 = smul.addr %s248, 12
      %s250 = smul.addr %s249, 8
      %s251 = scalar_lea.vmem %s6, %s250
      %v252 = vld [vmem:[%s1] sm:$0xff]
      %v253 = vld [vmem:[%s1 + $0x8] sm:$0xff]
      %v254 = vld [vmem:[%s1 + $0x10] sm:$0xff]
      %v255 = vld [vmem:[%s1 + $0x18] sm:$0xff]
      %v256 = vld [vmem:[%s246] sm:$0xff]
      %v257 = vld [vmem:[%s246 + $0x8] sm:$0x1]
      %vm258 = vcmask 72704
      %v260 = vsel %vm258, %v252, 0
      %v263 = vsel %vm258, %v253, 0
      %v266 = vsel %vm258, %v254, 0
      %v269 = vsel %vm258, %v255, 0
      %vm271 = vcmask 1040384
      %v273 = vsel %vm271, %v257, 0
      %275 = vmatprep.subr.mxu0 0.0
      %276 = vmatpush1.msra.mxu0 %v256
      %277 = vmatprep.subr.mxu0 0.0
      %278 = vmatpush1.msra.mxu0 %v273
      %279 = vmatprep.subr.mxu0 0.0
      %280 = vmatpush1.msra.mxu0 0.0
      %281 = vmatprep.subr.mxu0 0.0
      %282 = vmatpush1.msra.mxu0 0.0
      %283 = vmatprep.subr.mxu0 0.0
      %284 = vmatpush1.msra.mxu0 0.0
      %285 = vmatprep.subr.mxu0 0.0
      %286 = vmatpush1.msra.mxu0 0.0
      %287 = vmatprep.subr.mxu0 0.0
      %288 = vmatpush1.msra.mxu0 0.0
      %289 = vmatprep.subr.mxu0 0.0
      %290 = vmatpush1.msra.mxu0 0.0
      %291 = vmatprep.subr.mxu0 0.0
      %292 = vmatpush1.msra.mxu0 0.0
      %293 = vmatprep.subr.mxu0 0.0
      %294 = vmatpush1.msra.mxu0 0.0
      %295 = vmatprep.subr.mxu0 0.0
      %296 = vmatpush1.msra.mxu0 0.0
      %297 = vmatprep.subr.mxu0 0.0
      %298 = vmatpush1.msra.mxu0 0.0
      %299 = vmatprep.subr.mxu0 0.0
      %300 = vmatpush1.msra.mxu0 0.0
      %301 = vmatprep.subr.mxu0 0.0
      %302 = vmatpush1.msra.mxu0 0.0
      %303 = vmatprep.subr.mxu0 0.0
      %304 = vmatpush1.msra.mxu0 0.0
      %305 = vmatprep.subr.mxu0 0.0
      %306 = vmatpush1.msra.mxu0 0.0
      %307 = vmatprep.subr.mxu0 0.0
      %308 = vmatpush1.msra.mxu0 0.0
      %309 = vmatprep.subr.mxu0 0.0
      %310 = vmatpush1.msra.mxu0 0.0
      %311 = vmatprep.subr.mxu0 0.0
      %312 = vmatpush1.msra.mxu0 0.0
      %313 = vmatprep.subr.mxu0 0.0
      %314 = vmatpush1.msra.mxu0 0.0
      %315 = vmatprep.subr.mxu0 0.0
      %316 = vmatpush1.msra.mxu0 0.0
      %317 = vmatprep.subr.mxu0 0.0
      %318 = vmatpush1.msra.mxu0 0.0
      %319 = vmatprep.subr.mxu0 0.0
      %320 = vmatpush1.msra.mxu0 0.0
      %321 = vmatprep.subr.mxu0 0.0
      %322 = vmatpush1.msra.mxu0 0.0
      %323 = vmatprep.subr.mxu0 0.0
      %324 = vmatpush1.msra.mxu0 0.0
      %325 = vmatprep.subr.mxu0 0.0
      %326 = vmatpush1.msra.mxu0 0.0
      %327 = vmatprep.subr.mxu0 0.0
      %328 = vmatpush1.msra.mxu0 0.0
      %329 = vmatprep.subr.mxu0 0.0
      %330 = vmatpush1.msra.mxu0 0.0
      %331 = vmatprep.subr.mxu0 0.0
      %332 = vmatpush1.msra.mxu0 0.0
      %333 = vmatprep.subr.mxu0 0.0
      %334 = vmatpush1.msra.mxu0 0.0
      %335 = vmatprep.subr.mxu0 0.0
      %336 = vmatpush1.msra.mxu0 0.0
      %337 = vmatprep.subr.mxu0 0.0
      %338 = vmatpush1.msra.mxu0 0.0
      %339 = vmatprep.mubr.f32.mxu0 0.0
      %340 = vmatmul.mubr.f32.gmra.mrb[0].mxu0 %v260
      %v341 = vpop.f32.mrb[0].mxu0
      %v342 = vadd.f32 0.0, %v341
      %v343 = vpop.f32.mrb[0].mxu0
      %344 = vmatprep.mubr.f32.mxu0 0.0
      %345 = vmatmul.mubr.f32.gmra.mrb[0].mxu0 %v263
      %v346 = vpop.f32.mrb[0].mxu0
      %v347 = vadd.f32 0.0, %v346
      %v348 = vpop.f32.mrb[0].mxu0
      %349 = vmatprep.mubr.f32.mxu0 0.0
      %350 = vmatmul.mubr.f32.gmra.mrb[0].mxu0 %v266
      %v351 = vpop.f32.mrb[0].mxu0
      %v352 = vadd.f32 0.0, %v351
      %v353 = vpop.f32.mrb[0].mxu0
      %354 = vmatprep.mubr.f32.mxu0 0.0
      %355 = vmatmul.mubr.f32.gmra.mrb[0].mxu0 %v269
      %v356 = vpop.f32.mrb[0].mxu0
      %v357 = vadd.f32 0.0, %v356
      %v358 = vpop.f32.mrb[0].mxu0
      %359 = vdwg.mxu0
      %s360 = scalar_lea.vmem %s246, 16
      %v361 = vld [vmem:[%s360] sm:$0xff]
      %v362 = vld [vmem:[%s360 + $0x8] sm:$0x1]
      %v364 = vsel %vm271, %v362, 0
      %366 = vmatprep.subr.mxu0 0.0
      %367 = vmatpush1.msra.mxu0 %v361
      %368 = vmatprep.subr.mxu0 0.0
      %369 = vmatpush1.msra.mxu0 %v364
      %370 = vmatprep.subr.mxu0 0.0
      %371 = vmatpush1.msra.mxu0 0.0
      %372 = vmatprep.subr.mxu0 0.0
      %373 = vmatpush1.msra.mxu0 0.0
      %374 = vmatprep.subr.mxu0 0.0
      %375 = vmatpush1.msra.mxu0 0.0
      %376 = vmatprep.subr.mxu0 0.0
      %377 = vmatpush1.msra.mxu0 0.0
      %378 = vmatprep.subr.mxu0 0.0
      %379 = vmatpush1.msra.mxu0 0.0
      %380 = vmatprep.subr.mxu0 0.0
      %381 = vmatpush1.msra.mxu0 0.0
      %382 = vmatprep.subr.mxu0 0.0
      %383 = vmatpush1.msra.mxu0 0.0
      %384 = vmatprep.subr.mxu0 0.0
      %385 = vmatpush1.msra.mxu0 0.0
      %386 = vmatprep.subr.mxu0 0.0
      %387 = vmatpush1.msra.mxu0 0.0
      %388 = vmatprep.subr.mxu0 0.0
      %389 = vmatpush1.msra.mxu0 0.0
      %390 = vmatprep.subr.mxu0 0.0
      %391 = vmatpush1.msra.mxu0 0.0
      %392 = vmatprep.subr.mxu0 0.0
      %393 = vmatpush1.msra.mxu0 0.0
      %394 = vmatprep.subr.mxu0 0.0
      %395 = vmatpush1.msra.mxu0 0.0
      %396 = vmatprep.subr.mxu0 0.0
      %397 = vmatpush1.msra.mxu0 0.0
      %398 = vmatprep.subr.mxu0 0.0
      %399 = vmatpush1.msra.mxu0 0.0
      %400 = vmatprep.subr.mxu0 0.0
      %401 = vmatpush1.msra.mxu0 0.0
      %402 = vmatprep.subr.mxu0 0.0
      %403 = vmatpush1.msra.mxu0 0.0
      %404 = vmatprep.subr.mxu0 0.0
      %405 = vmatpush1.msra.mxu0 0.0
      %406 = vmatprep.subr.mxu0 0.0
      %407 = vmatpush1.msra.mxu0 0.0
      %408 = vmatprep.subr.mxu0 0.0
      %409 = vmatpush1.msra.mxu0 0.0
      %410 = vmatprep.subr.mxu0 0.0
      %411 = vmatpush1.msra.mxu0 0.0
      %412 = vmatprep.subr.mxu0 0.0
      %413 = vmatpush1.msra.mxu0 0.0
      %414 = vmatprep.subr.mxu0 0.0
      %415 = vmatpush1.msra.mxu0 0.0
      %416 = vmatprep.subr.mxu0 0.0
      %417 = vmatpush1.msra.mxu0 0.0
      %418 = vmatprep.subr.mxu0 0.0
      %419 = vmatpush1.msra.mxu0 0.0
      %420 = vmatprep.subr.mxu0 0.0
      %421 = vmatpush1.msra.mxu0 0.0
      %422 = vmatprep.subr.mxu0 0.0
      %423 = vmatpush1.msra.mxu0 0.0
      %424 = vmatprep.subr.mxu0 0.0
      %425 = vmatpush1.msra.mxu0 0.0
      %426 = vmatprep.subr.mxu0 0.0
      %427 = vmatpush1.msra.mxu0 0.0
      %428 = vmatprep.subr.mxu0 0.0
      %429 = vmatpush1.msra.mxu0 0.0
      %430 = vmatprep.mubr.f32.mxu0 0.0
      %431 = vmatmul.mubr.f32.gmra.mrb[0].mxu0 %v260
      %v432 = vpop.f32.mrb[0].mxu0
      %v433 = vadd.f32 0.0, %v432
      %v434 = vpop.f32.mrb[0].mxu0
      %435 = vmatprep.mubr.f32.mxu0 0.0
      %436 = vmatmul.mubr.f32.gmra.mrb[0].mxu0 %v263
      %v437 = vpop.f32.mrb[0].mxu0
      %v438 = vadd.f32 0.0, %v437
      %v439 = vpop.f32.mrb[0].mxu0
      %440 = vmatprep.mubr.f32.mxu0 0.0
      %441 = vmatmul.mubr.f32.gmra.mrb[0].mxu0 %v266
      %v442 = vpop.f32.mrb[0].mxu0
      %v443 = vadd.f32 0.0, %v442
      %v444 = vpop.f32.mrb[0].mxu0
      %445 = vmatprep.mubr.f32.mxu0 0.0
      %446 = vmatmul.mubr.f32.gmra.mrb[0].mxu0 %v269
      %v447 = vpop.f32.mrb[0].mxu0
      %v448 = vadd.f32 0.0, %v447
      %v449 = vpop.f32.mrb[0].mxu0
      %450 = vdwg.mxu0
      %v451 = vmax.f32 %v342, %v433
      %v452 = vmax.f32 %v347, %v438
      %v453 = vmax.f32 %v352, %v443
      %v454 = vmax.f32 %v357, %v448
      %s455 = scalar_lea.vmem %s246, 32
      %v456 = vld [vmem:[%s455] sm:$0xff]
      %v457 = vld [vmem:[%s455 + $0x8] sm:$0x1]
      %v459 = vsel %vm271, %v457, 0
      %461 = vmatprep.subr.mxu0 0.0
      %462 = vmatpush1.msra.mxu0 %v456
      %463 = vmatprep.subr.mxu0 0.0
      %464 = vmatpush1.msra.mxu0 %v459
      %465 = vmatprep.subr.mxu0 0.0
      %466 = vmatpush1.msra.mxu0 0.0
      %467 = vmatprep.subr.mxu0 0.0
      %468 = vmatpush1.msra.mxu0 0.0
      %469 = vmatprep.subr.mxu0 0.0
      %470 = vmatpush1.msra.mxu0 0.0
      %471 = vmatprep.subr.mxu0 0.0
      %472 = vmatpush1.msra.mxu0 0.0
      %473 = vmatprep.subr.mxu0 0.0
      %474 = vmatpush1.msra.mxu0 0.0
      %475 = vmatprep.subr.mxu0 0.0
      %476 = vmatpush1.msra.mxu0 0.0
      %477 = vmatprep.subr.mxu0 0.0
      %478 = vmatpush1.msra.mxu0 0.0
      %479 = vmatprep.subr.mxu0 0.0
      %480 = vmatpush1.msra.mxu0 0.0
      %481 = vmatprep.subr.mxu0 0.0
      %482 = vmatpush1.msra.mxu0 0.0
      %483 = vmatprep.subr.mxu0 0.0
      %484 = vmatpush1.msra.mxu0 0.0
      %485 = vmatprep.subr.mxu0 0.0
      %486 = vmatpush1.msra.mxu0 0.0
      %487 = vmatprep.subr.mxu0 0.0
      %488 = vmatpush1.msra.mxu0 0.0
      %489 = vmatprep.subr.mxu0 0.0
      %490 = vmatpush1.msra.mxu0 0.0
      %491 = vmatprep.subr.mxu0 0.0
      %492 = vmatpush1.msra.mxu0 0.0
      %493 = vmatprep.subr.mxu0 0.0
      %494 = vmatpush1.msra.mxu0 0.0
      %495 = vmatprep.subr.mxu0 0.0
      %496 = vmatpush1.msra.mxu0 0.0
      %497 = vmatprep.subr.mxu0 0.0
      %498 = vmatpush1.msra.mxu0 0.0
      %499 = vmatprep.subr.mxu0 0.0
      %500 = vmatpush1.msra.mxu0 0.0
      %501 = vmatprep.subr.mxu0 0.0
      %502 = vmatpush1.msra.mxu0 0.0
      %503 = vmatprep.subr.mxu0 0.0
      %504 = vmatpush1.msra.mxu0 0.0
      %505 = vmatprep.subr.mxu0 0.0
      %506 = vmatpush1.msra.mxu0 0.0
      %507 = vmatprep.subr.mxu0 0.0
      %508 = vmatpush1.msra.mxu0 0.0
      %509 = vmatprep.subr.mxu0 0.0
      %510 = vmatpush1.msra.mxu0 0.0
      %511 = vmatprep.subr.mxu0 0.0
      %512 = vmatpush1.msra.mxu0 0.0
      %513 = vmatprep.subr.mxu0 0.0
      %514 = vmatpush1.msra.mxu0 0.0
      %515 = vmatprep.subr.mxu0 0.0
      %516 = vmatpush1.msra.mxu0 0.0
      %517 = vmatprep.subr.mxu0 0.0
      %518 = vmatpush1.msra.mxu0 0.0
      %519 = vmatprep.subr.mxu0 0.0
      %520 = vmatpush1.msra.mxu0 0.0
      %521 = vmatprep.subr.mxu0 0.0
      %522 = vmatpush1.msra.mxu0 0.0
      %523 = vmatprep.subr.mxu0 0.0
      %524 = vmatpush1.msra.mxu0 0.0
      %525 = vmatprep.mubr.f32.mxu0 0.0
      %526 = vmatmul.mubr.f32.gmra.mrb[0].mxu0 %v260
      %v527 = vpop.f32.mrb[0].mxu0
      %v528 = vadd.f32 0.0, %v527
      %v529 = vpop.f32.mrb[0].mxu0
      %530 = vmatprep.mubr.f32.mxu0 0.0
      %531 = vmatmul.mubr.f32.gmra.mrb[0].mxu0 %v263
      %v532 = vpop.f32.mrb[0].mxu0
      %v533 = vadd.f32 0.0, %v532
      %v534 = vpop.f32.mrb[0].mxu0
      %535 = vmatprep.mubr.f32.mxu0 0.0
      %536 = vmatmul.mubr.f32.gmra.mrb[0].mxu0 %v266
      %v537 = vpop.f32.mrb[0].mxu0
      %v538 = vadd.f32 0.0, %v537
      %v539 = vpop.f32.mrb[0].mxu0
      %540 = vmatprep.mubr.f32.mxu0 0.0
      %541 = vmatmul.mubr.f32.gmra.mrb[0].mxu0 %v269
      %v542 = vpop.f32.mrb[0].mxu0
      %v543 = vadd.f32 0.0, %v542
      %v544 = vpop.f32.mrb[0].mxu0
      %545 = vdwg.mxu0
      %v546 = vmax.f32 %v451, %v528
      %v547 = vmax.f32 %v452, %v533
      %v548 = vmax.f32 %v453, %v538
      %v549 = vmax.f32 %v454, %v543
      %s550 = scalar_lea.vmem %s246, 48
      %v551 = vld [vmem:[%s550] sm:$0xff]
      %v552 = vld [vmem:[%s550 + $0x8] sm:$0x1]
      %v554 = vsel %vm271, %v552, 0
      %556 = vmatprep.subr.mxu0 0.0
      %557 = vmatpush1.msra.mxu0 %v551
      %558 = vmatprep.subr.mxu0 0.0
      %559 = vmatpush1.msra.mxu0 %v554
      %560 = vmatprep.subr.mxu0 0.0
      %561 = vmatpush1.msra.mxu0 0.0
      %562 = vmatprep.subr.mxu0 0.0
      %563 = vmatpush1.msra.mxu0 0.0
      %564 = vmatprep.subr.mxu0 0.0
      %565 = vmatpush1.msra.mxu0 0.0
      %566 = vmatprep.subr.mxu0 0.0
      %567 = vmatpush1.msra.mxu0 0.0
      %568 = vmatprep.subr.mxu0 0.0
      %569 = vmatpush1.msra.mxu0 0.0
      %570 = vmatprep.subr.mxu0 0.0
      %571 = vmatpush1.msra.mxu0 0.0
      %572 = vmatprep.subr.mxu0 0.0
      %573 = vmatpush1.msra.mxu0 0.0
      %574 = vmatprep.subr.mxu0 0.0
      %575 = vmatpush1.msra.mxu0 0.0
      %576 = vmatprep.subr.mxu0 0.0
      %577 = vmatpush1.msra.mxu0 0.0
      %578 = vmatprep.subr.mxu0 0.0
      %579 = vmatpush1.msra.mxu0 0.0
      %580 = vmatprep.subr.mxu0 0.0
      %581 = vmatpush1.msra.mxu0 0.0
      %582 = vmatprep.subr.mxu0 0.0
      %583 = vmatpush1.msra.mxu0 0.0
      %584 = vmatprep.subr.mxu0 0.0
      %585 = vmatpush1.msra.mxu0 0.0
      %586 = vmatprep.subr.mxu0 0.0
      %587 = vmatpush1.msra.mxu0 0.0
      %588 = vmatprep.subr.mxu0 0.0
      %589 = vmatpush1.msra.mxu0 0.0
      %590 = vmatprep.subr.mxu0 0.0
      %591 = vmatpush1.msra.mxu0 0.0
      %592 = vmatprep.subr.mxu0 0.0
      %593 = vmatpush1.msra.mxu0 0.0
      %594 = vmatprep.subr.mxu0 0.0
      %595 = vmatpush1.msra.mxu0 0.0
      %596 = vmatprep.subr.mxu0 0.0
      %597 = vmatpush1.msra.mxu0 0.0
      %598 = vmatprep.subr.mxu0 0.0
      %599 = vmatpush1.msra.mxu0 0.0
      %600 = vmatprep.subr.mxu0 0.0
      %601 = vmatpush1.msra.mxu0 0.0
      %602 = vmatprep.subr.mxu0 0.0
      %603 = vmatpush1.msra.mxu0 0.0
      %604 = vmatprep.subr.mxu0 0.0
      %605 = vmatpush1.msra.mxu0 0.0
      %606 = vmatprep.subr.mxu0 0.0
      %607 = vmatpush1.msra.mxu0 0.0
      %608 = vmatprep.subr.mxu0 0.0
      %609 = vmatpush1.msra.mxu0 0.0
      %610 = vmatprep.subr.mxu0 0.0
      %611 = vmatpush1.msra.mxu0 0.0
      %612 = vmatprep.subr.mxu0 0.0
      %613 = vmatpush1.msra.mxu0 0.0
      %614 = vmatprep.subr.mxu0 0.0
      %615 = vmatpush1.msra.mxu0 0.0
      %616 = vmatprep.subr.mxu0 0.0
      %617 = vmatpush1.msra.mxu0 0.0
      %618 = vmatprep.subr.mxu0 0.0
      %619 = vmatpush1.msra.mxu0 0.0
      %620 = vmatprep.mubr.f32.mxu0 0.0
      %621 = vmatmul.mubr.f32.gmra.mrb[0].mxu0 %v260
      %v622 = vpop.f32.mrb[0].mxu0
      %v623 = vadd.f32 0.0, %v622
      %v624 = vpop.f32.mrb[0].mxu0
      %625 = vmatprep.mubr.f32.mxu0 0.0
      %626 = vmatmul.mubr.f32.gmra.mrb[0].mxu0 %v263
      %v627 = vpop.f32.mrb[0].mxu0
      %v628 = vadd.f32 0.0, %v627
      %v629 = vpop.f32.mrb[0].mxu0
      %630 = vmatprep.mubr.f32.mxu0 0.0
      %631 = vmatmul.mubr.f32.gmra.mrb[0].mxu0 %v266
      %v632 = vpop.f32.mrb[0].mxu0
      %v633 = vadd.f32 0.0, %v632
      %v634 = vpop.f32.mrb[0].mxu0
      %635 = vmatprep.mubr.f32.mxu0 0.0
      %636 = vmatmul.mubr.f32.gmra.mrb[0].mxu0 %v269
      %v637 = vpop.f32.mrb[0].mxu0
      %v638 = vadd.f32 0.0, %v637
      %v639 = vpop.f32.mrb[0].mxu0
      %640 = vdwg.mxu0
      %v641 = vmax.f32 %v546, %v623
      %v642 = vmax.f32 %v547, %v628
      %v643 = vmax.f32 %v548, %v633
      %v644 = vmax.f32 %v549, %v638
      %v645 = vld [vmem:[%s2] sm:$0xff]
      %v646 = vld [vmem:[%s2 + $0x8] sm:$0xff]
      %v647 = vld [vmem:[%s2 + $0x10] sm:$0xff]
      %v648 = vld [vmem:[%s2 + $0x18] sm:$0xff]
      %650 = vset.pattern.permute.xlu0 0
      %651 = vperm.xlu0 %650, %v645
      %v652 = vpop.permute.xlu0 %651
      %655 = vset.pattern.permute.xlu0 0
      %656 = vperm.xlu0 %655, %v646
      %v657 = vpop.permute.xlu0 %656
      %660 = vset.pattern.permute.xlu0 0
      %661 = vperm.xlu0 %660, %v647
      %v662 = vpop.permute.xlu0 %661
      %665 = vset.pattern.permute.xlu0 0
      %666 = vperm.xlu0 %665, %v648
      %v667 = vpop.permute.xlu0 %666
      %v669 = vadd.f32 %v641, %v652
      %v670 = vadd.f32 %v642, %v657
      %v671 = vadd.f32 %v643, %v662
      %v672 = vadd.f32 %v644, %v667
      %v673 = vmax.f32 %v669, 0.0
      %v674 = vmax.f32 %v670, 0.0
      %v675 = vmax.f32 %v671, 0.0
      %v676 = vmax.f32 %v672, 0.0
      %v677 = vld [vmem:[%s3] sm:$0xff]
      %v678 = vld [vmem:[%s3 + $0x8] sm:$0xff]
      %v679 = vld [vmem:[%s3 + $0x10] sm:$0xff]
      %v680 = vld [vmem:[%s3 + $0x18] sm:$0xff]
      %vm681 = vcmask 261120
      %v683 = vsel %vm681, %v677, 0
      %v686 = vsel %vm681, %v678, 0
      %v689 = vsel %vm681, %v679, 0
      %v692 = vsel %vm681, %v680, 0
      %694 = vmatprep.subr.mxu0 0.0
      %695 = vmatpush1.msra.mxu0 %v673
      %696 = vmatprep.subr.mxu0 0.0
      %697 = vmatpush1.msra.mxu0 %v674
      %698 = vmatprep.subr.mxu0 0.0
      %699 = vmatpush1.msra.mxu0 %v675
      %700 = vmatprep.subr.mxu0 0.0
      %701 = vmatpush1.msra.mxu0 %v676
      %702 = vmatprep.subr.mxu0 0.0
      %703 = vmatpush1.msra.mxu0 0.0
      %704 = vmatprep.subr.mxu0 0.0
      %705 = vmatpush1.msra.mxu0 0.0
      %706 = vmatprep.subr.mxu0 0.0
      %707 = vmatpush1.msra.mxu0 0.0
      %708 = vmatprep.subr.mxu0 0.0
      %709 = vmatpush1.msra.mxu0 0.0
      %710 = vmatprep.subr.mxu0 0.0
      %711 = vmatpush1.msra.mxu0 0.0
      %712 = vmatprep.subr.mxu0 0.0
      %713 = vmatpush1.msra.mxu0 0.0
      %714 = vmatprep.subr.mxu0 0.0
      %715 = vmatpush1.msra.mxu0 0.0
      %716 = vmatprep.subr.mxu0 0.0
      %717 = vmatpush1.msra.mxu0 0.0
      %718 = vmatprep.subr.mxu0 0.0
      %719 = vmatpush1.msra.mxu0 0.0
      %720 = vmatprep.subr.mxu0 0.0
      %721 = vmatpush1.msra.mxu0 0.0
      %722 = vmatprep.subr.mxu0 0.0
      %723 = vmatpush1.msra.mxu0 0.0
      %724 = vmatprep.subr.mxu0 0.0
      %725 = vmatpush1.msra.mxu0 0.0
      %726 = vmatprep.subr.mxu0 0.0
      %727 = vmatpush1.msra.mxu0 0.0
      %728 = vmatprep.subr.mxu0 0.0
      %729 = vmatpush1.msra.mxu0 0.0
      %730 = vmatprep.subr.mxu0 0.0
      %731 = vmatpush1.msra.mxu0 0.0
      %732 = vmatprep.subr.mxu0 0.0
      %733 = vmatpush1.msra.mxu0 0.0
      %734 = vmatprep.subr.mxu0 0.0
      %735 = vmatpush1.msra.mxu0 0.0
      %736 = vmatprep.subr.mxu0 0.0
      %737 = vmatpush1.msra.mxu0 0.0
      %738 = vmatprep.subr.mxu0 0.0
      %739 = vmatpush1.msra.mxu0 0.0
      %740 = vmatprep.subr.mxu0 0.0
      %741 = vmatpush1.msra.mxu0 0.0
      %742 = vmatprep.subr.mxu0 0.0
      %743 = vmatpush1.msra.mxu0 0.0
      %744 = vmatprep.subr.mxu0 0.0
      %745 = vmatpush1.msra.mxu0 0.0
      %746 = vmatprep.subr.mxu0 0.0
      %747 = vmatpush1.msra.mxu0 0.0
      %748 = vmatprep.subr.mxu0 0.0
      %749 = vmatpush1.msra.mxu0 0.0
      %750 = vmatprep.subr.mxu0 0.0
      %751 = vmatpush1.msra.mxu0 0.0
      %752 = vmatprep.subr.mxu0 0.0
      %753 = vmatpush1.msra.mxu0 0.0
      %754 = vmatprep.subr.mxu0 0.0
      %755 = vmatpush1.msra.mxu0 0.0
      %756 = vmatprep.subr.mxu0 0.0
      %757 = vmatpush1.msra.mxu0 0.0
      %758 = vmatprep.mubr.f32.mxu0 0.0
      %759 = vmatmul.mubr.f32.gmra.mrb[0].mxu0 %v683
      %v760 = vpop.f32.mrb[0].mxu0
      %v761 = vadd.f32 0.0, %v760
      %v762 = vpop.f32.mrb[0].mxu0
      %763 = vmatprep.mubr.f32.mxu0 0.0
      %764 = vmatmul.mubr.f32.gmra.mrb[0].mxu0 %v686
      %v765 = vpop.f32.mrb[0].mxu0
      %v766 = vadd.f32 0.0, %v765
      %v767 = vpop.f32.mrb[0].mxu0
      %768 = vmatprep.mubr.f32.mxu0 0.0
      %769 = vmatmul.mubr.f32.gmra.mrb[0].mxu0 %v689
      %v770 = vpop.f32.mrb[0].mxu0
      %v771 = vadd.f32 0.0, %v770
      %v772 = vpop.f32.mrb[0].mxu0
      %773 = vmatprep.mubr.f32.mxu0 0.0
      %774 = vmatmul.mubr.f32.gmra.mrb[0].mxu0 %v692
      %v775 = vpop.f32.mrb[0].mxu0
      %v776 = vadd.f32 0.0, %v775
      %v777 = vpop.f32.mrb[0].mxu0
      %778 = vdwg.mxu0
      %v779 = vld [vmem:[%s4] sm:$0xff]
      %v780 = vld [vmem:[%s4 + $0x8] sm:$0xff]
      %v781 = vld [vmem:[%s4 + $0x10] sm:$0xff]
      %v782 = vld [vmem:[%s4 + $0x18] sm:$0xff]
      %v783 = vld [vmem:[%s4 + $0x20] sm:$0xff]
      %v784 = vld [vmem:[%s4 + $0x28] sm:$0xff]
      %v785 = vld [vmem:[%s4 + $0x30] sm:$0xff]
      %v786 = vld [vmem:[%s4 + $0x38] sm:$0xff]
      %v787 = vld [vmem:[%s4 + $0x40] sm:$0xff]
      %v788 = vld [vmem:[%s4 + $0x48] sm:$0xff]
      %v789 = vld [vmem:[%s4 + $0x50] sm:$0xff]
      %v790 = vld [vmem:[%s4 + $0x58] sm:$0xff]
      %v791 = vld [vmem:[%s4 + $0x60] sm:$0xff]
      %v792 = vld [vmem:[%s4 + $0x68] sm:$0xff]
      %v793 = vld [vmem:[%s4 + $0x70] sm:$0xff]
      %v794 = vld [vmem:[%s4 + $0x78] sm:$0xff]
      %v795 = vld [vmem:[%s4 + $0x80] sm:$0xff]
      %v796 = vld [vmem:[%s4 + $0x88] sm:$0xff]
      %v797 = vld [vmem:[%s4 + $0x90] sm:$0xff]
      %v798 = vld [vmem:[%s4 + $0x98] sm:$0xff]
      %v799 = vld [vmem:[%s4 + $0xa0] sm:$0xff]
      %v800 = vld [vmem:[%s4 + $0xa8] sm:$0xff]
      %v801 = vld [vmem:[%s4 + $0xb0] sm:$0xff]
      %v802 = vld [vmem:[%s4 + $0xb8] sm:$0xff]
      %s803 = scalar_lea.vmem %s3, 32
      %v804 = vld [vmem:[%s803] sm:$0xff]
      %v805 = vld [vmem:[%s803 + $0x8] sm:$0xff]
      %v806 = vld [vmem:[%s803 + $0x10] sm:$0xff]
      %v807 = vld [vmem:[%s803 + $0x18] sm:$0xff]
      %v809 = vsel %vm681, %v804, 0
      %v812 = vsel %vm681, %v805, 0
      %v815 = vsel %vm681, %v806, 0
      %v818 = vsel %vm681, %v807, 0
      %820 = vmatprep.subr.mxu0 0.0
      %821 = vmatpush1.msra.mxu0 %v673
      %822 = vmatprep.subr.mxu0 0.0
      %823 = vmatpush1.msra.mxu0 %v674
      %824 = vmatprep.subr.mxu0 0.0
      %825 = vmatpush1.msra.mxu0 %v675
      %826 = vmatprep.subr.mxu0 0.0
      %827 = vmatpush1.msra.mxu0 %v676
      %828 = vmatprep.subr.mxu0 0.0
      %829 = vmatpush1.msra.mxu0 0.0
      %830 = vmatprep.subr.mxu0 0.0
      %831 = vmatpush1.msra.mxu0 0.0
      %832 = vmatprep.subr.mxu0 0.0
      %833 = vmatpush1.msra.mxu0 0.0
      %834 = vmatprep.subr.mxu0 0.0
      %835 = vmatpush1.msra.mxu0 0.0
      %836 = vmatprep.subr.mxu0 0.0
      %837 = vmatpush1.msra.mxu0 0.0
      %838 = vmatprep.subr.mxu0 0.0
      %839 = vmatpush1.msra.mxu0 0.0
      %840 = vmatprep.subr.mxu0 0.0
      %841 = vmatpush1.msra.mxu0 0.0
      %842 = vmatprep.subr.mxu0 0.0
      %843 = vmatpush1.msra.mxu0 0.0
      %844 = vmatprep.subr.mxu0 0.0
      %845 = vmatpush1.msra.mxu0 0.0
      %846 = vmatprep.subr.mxu0 0.0
      %847 = vmatpush1.msra.mxu0 0.0
      %848 = vmatprep.subr.mxu0 0.0
      %849 = vmatpush1.msra.mxu0 0.0
      %850 = vmatprep.subr.mxu0 0.0
      %851 = vmatpush1.msra.mxu0 0.0
      %852 = vmatprep.subr.mxu0 0.0
      %853 = vmatpush1.msra.mxu0 0.0
      %854 = vmatprep.subr.mxu0 0.0
      %855 = vmatpush1.msra.mxu0 0.0
      %856 = vmatprep.subr.mxu0 0.0
      %857 = vmatpush1.msra.mxu0 0.0
      %858 = vmatprep.subr.mxu0 0.0
      %859 = vmatpush1.msra.mxu0 0.0
      %860 = vmatprep.subr.mxu0 0.0
      %861 = vmatpush1.msra.mxu0 0.0
      %862 = vmatprep.subr.mxu0 0.0
      %863 = vmatpush1.msra.mxu0 0.0
      %864 = vmatprep.subr.mxu0 0.0
      %865 = vmatpush1.msra.mxu0 0.0
      %866 = vmatprep.subr.mxu0 0.0
      %867 = vmatpush1.msra.mxu0 0.0
      %868 = vmatprep.subr.mxu0 0.0
      %869 = vmatpush1.msra.mxu0 0.0
      %870 = vmatprep.subr.mxu0 0.0
      %871 = vmatpush1.msra.mxu0 0.0
      %872 = vmatprep.subr.mxu0 0.0
      %873 = vmatpush1.msra.mxu0 0.0
      %874 = vmatprep.subr.mxu0 0.0
      %875 = vmatpush1.msra.mxu0 0.0
      %876 = vmatprep.subr.mxu0 0.0
      %877 = vmatpush1.msra.mxu0 0.0
      %878 = vmatprep.subr.mxu0 0.0
      %879 = vmatpush1.msra.mxu0 0.0
      %880 = vmatprep.subr.mxu0 0.0
      %881 = vmatpush1.msra.mxu0 0.0
      %882 = vmatprep.subr.mxu0 0.0
      %883 = vmatpush1.msra.mxu0 0.0
      %884 = vmatprep.mubr.f32.mxu0 0.0
      %885 = vmatmul.mubr.f32.gmra.mrb[0].mxu0 %v809
      %v886 = vpop.f32.mrb[0].mxu0
      %v887 = vadd.f32 0.0, %v886
      %v888 = vpop.f32.mrb[0].mxu0
      %889 = vmatprep.mubr.f32.mxu0 0.0
      %890 = vmatmul.mubr.f32.gmra.mrb[0].mxu0 %v812
      %v891 = vpop.f32.mrb[0].mxu0
      %v892 = vadd.f32 0.0, %v891
      %v893 = vpop.f32.mrb[0].mxu0
      %894 = vmatprep.mubr.f32.mxu0 0.0
      %895 = vmatmul.mubr.f32.gmra.mrb[0].mxu0 %v815
      %v896 = vpop.f32.mrb[0].mxu0
      %v897 = vadd.f32 0.0, %v896
      %v898 = vpop.f32.mrb[0].mxu0
      %899 = vmatprep.mubr.f32.mxu0 0.0
      %900 = vmatmul.mubr.f32.gmra.mrb[0].mxu0 %v818
      %v901 = vpop.f32.mrb[0].mxu0
      %v902 = vadd.f32 0.0, %v901
      %v903 = vpop.f32.mrb[0].mxu0
      %904 = vdwg.mxu0
      %s905 = scalar_lea.vmem %s4, 192
      %v906 = vld [vmem:[%s905] sm:$0xff]
      %v907 = vld [vmem:[%s905 + $0x8] sm:$0xff]
      %v908 = vld [vmem:[%s905 + $0x10] sm:$0xff]
      %v909 = vld [vmem:[%s905 + $0x18] sm:$0xff]
      %v910 = vld [vmem:[%s905 + $0x20] sm:$0xff]
      %v911 = vld [vmem:[%s905 + $0x28] sm:$0xff]
      %v912 = vld [vmem:[%s905 + $0x30] sm:$0xff]
      %v913 = vld [vmem:[%s905 + $0x38] sm:$0xff]
      %v914 = vld [vmem:[%s905 + $0x40] sm:$0xff]
      %v915 = vld [vmem:[%s905 + $0x48] sm:$0xff]
      %v916 = vld [vmem:[%s905 + $0x50] sm:$0xff]
      %v917 = vld [vmem:[%s905 + $0x58] sm:$0xff]
      %v918 = vld [vmem:[%s905 + $0x60] sm:$0xff]
      %v919 = vld [vmem:[%s905 + $0x68] sm:$0xff]
      %v920 = vld [vmem:[%s905 + $0x70] sm:$0xff]
      %v921 = vld [vmem:[%s905 + $0x78] sm:$0xff]
      %v922 = vld [vmem:[%s905 + $0x80] sm:$0xff]
      %v923 = vld [vmem:[%s905 + $0x88] sm:$0xff]
      %v924 = vld [vmem:[%s905 + $0x90] sm:$0xff]
      %v925 = vld [vmem:[%s905 + $0x98] sm:$0xff]
      %v926 = vld [vmem:[%s905 + $0xa0] sm:$0xff]
      %v927 = vld [vmem:[%s905 + $0xa8] sm:$0xff]
      %v928 = vld [vmem:[%s905 + $0xb0] sm:$0xff]
      %v929 = vld [vmem:[%s905 + $0xb8] sm:$0xff]
      %vm930 = vcmask 523264
      %v932 = vsel %vm930, %v887, 0
      %v935 = vsel %vm930, %v892, 0
      %v938 = vsel %vm930, %v897, 0
      %v941 = vsel %vm930, %v902, 0
      %943 = vmatprep.subr.mxu0 %v907
      %944 = vmatpush1.msra.mxu0 %v906
      %945 = vmatprep.subr.mxu0 %v910
      %946 = vmatpush1.msra.mxu0 %v909
      %947 = vmatprep.subr.mxu0 %v913
      %948 = vmatpush1.msra.mxu0 %v912
      %949 = vmatprep.subr.mxu0 %v916
      %950 = vmatpush1.msra.mxu0 %v915
      %951 = vmatprep.subr.mxu0 %v919
      %952 = vmatpush1.msra.mxu0 %v918
      %953 = vmatprep.subr.mxu0 %v922
      %954 = vmatpush1.msra.mxu0 %v921
      %955 = vmatprep.subr.mxu0 %v925
      %956 = vmatpush1.msra.mxu0 %v924
      %957 = vmatprep.subr.mxu0 %v928
      %958 = vmatpush1.msra.mxu0 %v927
      %959 = vmatprep.subr.mxu0 0.0
      %960 = vmatpush1.msra.mxu0 0.0
      %961 = vmatprep.subr.mxu0 0.0
      %962 = vmatpush1.msra.mxu0 0.0
      %963 = vmatprep.subr.mxu0 0.0
      %964 = vmatpush1.msra.mxu0 0.0
      %965 = vmatprep.subr.mxu0 0.0
      %966 = vmatpush1.msra.mxu0 0.0
      %967 = vmatprep.subr.mxu0 0.0
      %968 = vmatpush1.msra.mxu0 0.0
      %969 = vmatprep.subr.mxu0 0.0
      %970 = vmatpush1.msra.mxu0 0.0
      %971 = vmatprep.subr.mxu0 0.0
      %972 = vmatpush1.msra.mxu0 0.0
      %973 = vmatprep.subr.mxu0 0.0
      %974 = vmatpush1.msra.mxu0 0.0
      %975 = vmatprep.subr.mxu0 0.0
      %976 = vmatpush1.msra.mxu0 0.0
      %977 = vmatprep.subr.mxu0 0.0
      %978 = vmatpush1.msra.mxu0 0.0
      %979 = vmatprep.subr.mxu0 0.0
      %980 = vmatpush1.msra.mxu0 0.0
      %981 = vmatprep.subr.mxu0 0.0
      %982 = vmatpush1.msra.mxu0 0.0
      %983 = vmatprep.subr.mxu0 0.0
      %984 = vmatpush1.msra.mxu0 0.0
      %985 = vmatprep.subr.mxu0 0.0
      %986 = vmatpush1.msra.mxu0 0.0
      %987 = vmatprep.subr.mxu0 0.0
      %988 = vmatpush1.msra.mxu0 0.0
      %989 = vmatprep.subr.mxu0 0.0
      %990 = vmatpush1.msra.mxu0 0.0
      %991 = vmatprep.subr.mxu0 0.0
      %992 = vmatpush1.msra.mxu0 0.0
      %993 = vmatprep.subr.mxu0 0.0
      %994 = vmatpush1.msra.mxu0 0.0
      %995 = vmatprep.subr.mxu0 0.0
      %996 = vmatpush1.msra.mxu0 0.0
      %997 = vmatprep.subr.mxu0 0.0
      %998 = vmatpush1.msra.mxu0 0.0
      %999 = vmatprep.subr.mxu0 0.0
      %1000 = vmatpush1.msra.mxu0 0.0
      %1001 = vmatprep.subr.mxu0 0.0
      %1002 = vmatpush1.msra.mxu0 0.0
      %1003 = vmatprep.subr.mxu0 0.0
      %1004 = vmatpush1.msra.mxu0 0.0
      %1005 = vmatprep.subr.mxu0 0.0
      %1006 = vmatpush1.msra.mxu0 0.0
      %1007 = vmatprep.mubr.f32.mxu0 0.0
      %1008 = vmatmul.mubr.f32.gmra.mrb[0].mxu0 %v932
      %v1009 = vpop.f32.mrb[0].mxu0
      %v1010 = vadd.f32 0.0, %v1009
      %v1011 = vpop.f32.mrb[0].mxu0
      %v1012 = vadd.f32 0.0, %v1011
      %1013 = vmatprep.mubr.f32.mxu0 0.0
      %1014 = vmatmul.mubr.f32.gmra.mrb[0].mxu0 %v935
      %v1015 = vpop.f32.mrb[0].mxu0
      %v1016 = vadd.f32 0.0, %v1015
      %v1017 = vpop.f32.mrb[0].mxu0
      %v1018 = vadd.f32 0.0, %v1017
      %1019 = vmatprep.mubr.f32.mxu0 0.0
      %1020 = vmatmul.mubr.f32.gmra.mrb[0].mxu0 %v938
      %v1021 = vpop.f32.mrb[0].mxu0
      %v1022 = vadd.f32 0.0, %v1021
      %v1023 = vpop.f32.mrb[0].mxu0
      %v1024 = vadd.f32 0.0, %v1023
      %1025 = vmatprep.mubr.f32.mxu0 0.0
      %1026 = vmatmul.mubr.f32.gmra.mrb[0].mxu0 %v941
      %v1027 = vpop.f32.mrb[0].mxu0
      %v1028 = vadd.f32 0.0, %v1027
      %v1029 = vpop.f32.mrb[0].mxu0
      %v1030 = vadd.f32 0.0, %v1029
      %1031 = vdwg.mxu0
      %1032 = vmatprep.subr.mxu0 0.0
      %1033 = vmatpush1.msra.mxu0 %v908
      %1034 = vmatprep.subr.mxu0 0.0
      %1035 = vmatpush1.msra.mxu0 %v911
      %1036 = vmatprep.subr.mxu0 0.0
      %1037 = vmatpush1.msra.mxu0 %v914
      %1038 = vmatprep.subr.mxu0 0.0
      %1039 = vmatpush1.msra.mxu0 %v917
      %1040 = vmatprep.subr.mxu0 0.0
      %1041 = vmatpush1.msra.mxu0 %v920
      %1042 = vmatprep.subr.mxu0 0.0
      %1043 = vmatpush1.msra.mxu0 %v923
      %1044 = vmatprep.subr.mxu0 0.0
      %1045 = vmatpush1.msra.mxu0 %v926
      %1046 = vmatprep.subr.mxu0 0.0
      %1047 = vmatpush1.msra.mxu0 %v929
      %1048 = vmatprep.subr.mxu0 0.0
      %1049 = vmatpush1.msra.mxu0 0.0
      %1050 = vmatprep.subr.mxu0 0.0
      %1051 = vmatpush1.msra.mxu0 0.0
      %1052 = vmatprep.subr.mxu0 0.0
      %1053 = vmatpush1.msra.mxu0 0.0
      %1054 = vmatprep.subr.mxu0 0.0
      %1055 = vmatpush1.msra.mxu0 0.0
      %1056 = vmatprep.subr.mxu0 0.0
      %1057 = vmatpush1.msra.mxu0 0.0
      %1058 = vmatprep.subr.mxu0 0.0
      %1059 = vmatpush1.msra.mxu0 0.0
      %1060 = vmatprep.subr.mxu0 0.0
      %1061 = vmatpush1.msra.mxu0 0.0
      %1062 = vmatprep.subr.mxu0 0.0
      %1063 = vmatpush1.msra.mxu0 0.0
      %1064 = vmatprep.subr.mxu0 0.0
      %1065 = vmatpush1.msra.mxu0 0.0
      %1066 = vmatprep.subr.mxu0 0.0
      %1067 = vmatpush1.msra.mxu0 0.0
      %1068 = vmatprep.subr.mxu0 0.0
      %1069 = vmatpush1.msra.mxu0 0.0
      %1070 = vmatprep.subr.mxu0 0.0
      %1071 = vmatpush1.msra.mxu0 0.0
      %1072 = vmatprep.subr.mxu0 0.0
      %1073 = vmatpush1.msra.mxu0 0.0
      %1074 = vmatprep.subr.mxu0 0.0
      %1075 = vmatpush1.msra.mxu0 0.0
      %1076 = vmatprep.subr.mxu0 0.0
      %1077 = vmatpush1.msra.mxu0 0.0
      %1078 = vmatprep.subr.mxu0 0.0
      %1079 = vmatpush1.msra.mxu0 0.0
      %1080 = vmatprep.subr.mxu0 0.0
      %1081 = vmatpush1.msra.mxu0 0.0
      %1082 = vmatprep.subr.mxu0 0.0
      %1083 = vmatpush1.msra.mxu0 0.0
      %1084 = vmatprep.subr.mxu0 0.0
      %1085 = vmatpush1.msra.mxu0 0.0
      %1086 = vmatprep.subr.mxu0 0.0
      %1087 = vmatpush1.msra.mxu0 0.0
      %1088 = vmatprep.subr.mxu0 0.0
      %1089 = vmatpush1.msra.mxu0 0.0
      %1090 = vmatprep.subr.mxu0 0.0
      %1091 = vmatpush1.msra.mxu0 0.0
      %1092 = vmatprep.subr.mxu0 0.0
      %1093 = vmatpush1.msra.mxu0 0.0
      %1094 = vmatprep.subr.mxu0 0.0
      %1095 = vmatpush1.msra.mxu0 0.0
      %1096 = vmatprep.mubr.f32.mxu0 0.0
      %1097 = vmatmul.mubr.f32.gmra.mrb[0].mxu0 %v932
      %v1098 = vpop.f32.mrb[0].mxu0
      %v1099 = vadd.f32 0.0, %v1098
      %v1100 = vpop.f32.mrb[0].mxu0
      %1101 = vmatprep.mubr.f32.mxu0 0.0
      %1102 = vmatmul.mubr.f32.gmra.mrb[0].mxu0 %v935
      %v1103 = vpop.f32.mrb[0].mxu0
      %v1104 = vadd.f32 0.0, %v1103
      %v1105 = vpop.f32.mrb[0].mxu0
      %1106 = vmatprep.mubr.f32.mxu0 0.0
      %1107 = vmatmul.mubr.f32.gmra.mrb[0].mxu0 %v938
      %v1108 = vpop.f32.mrb[0].mxu0
      %v1109 = vadd.f32 0.0, %v1108
      %v1110 = vpop.f32.mrb[0].mxu0
      %1111 = vmatprep.mubr.f32.mxu0 0.0
      %1112 = vmatmul.mubr.f32.gmra.mrb[0].mxu0 %v941
      %v1113 = vpop.f32.mrb[0].mxu0
      %v1114 = vadd.f32 0.0, %v1113
      %v1115 = vpop.f32.mrb[0].mxu0
      %1116 = vdwg.mxu0
      %v1118 = vsel %vm930, %v761, 0
      %v1121 = vsel %vm930, %v766, 0
      %v1124 = vsel %vm930, %v771, 0
      %v1127 = vsel %vm930, %v776, 0
      %1129 = vmatprep.subr.mxu0 %v780
      %1130 = vmatpush1.msra.mxu0 %v779
      %1131 = vmatprep.subr.mxu0 %v783
      %1132 = vmatpush1.msra.mxu0 %v782
      %1133 = vmatprep.subr.mxu0 %v786
      %1134 = vmatpush1.msra.mxu0 %v785
      %1135 = vmatprep.subr.mxu0 %v789
      %1136 = vmatpush1.msra.mxu0 %v788
      %1137 = vmatprep.subr.mxu0 %v792
      %1138 = vmatpush1.msra.mxu0 %v791
      %1139 = vmatprep.subr.mxu0 %v795
      %1140 = vmatpush1.msra.mxu0 %v794
      %1141 = vmatprep.subr.mxu0 %v798
      %1142 = vmatpush1.msra.mxu0 %v797
      %1143 = vmatprep.subr.mxu0 %v801
      %1144 = vmatpush1.msra.mxu0 %v800
      %1145 = vmatprep.subr.mxu0 0.0
      %1146 = vmatpush1.msra.mxu0 0.0
      %1147 = vmatprep.subr.mxu0 0.0
      %1148 = vmatpush1.msra.mxu0 0.0
      %1149 = vmatprep.subr.mxu0 0.0
      %1150 = vmatpush1.msra.mxu0 0.0
      %1151 = vmatprep.subr.mxu0 0.0
      %1152 = vmatpush1.msra.mxu0 0.0
      %1153 = vmatprep.subr.mxu0 0.0
      %1154 = vmatpush1.msra.mxu0 0.0
      %1155 = vmatprep.subr.mxu0 0.0
      %1156 = vmatpush1.msra.mxu0 0.0
      %1157 = vmatprep.subr.mxu0 0.0
      %1158 = vmatpush1.msra.mxu0 0.0
      %1159 = vmatprep.subr.mxu0 0.0
      %1160 = vmatpush1.msra.mxu0 0.0
      %1161 = vmatprep.subr.mxu0 0.0
      %1162 = vmatpush1.msra.mxu0 0.0
      %1163 = vmatprep.subr.mxu0 0.0
      %1164 = vmatpush1.msra.mxu0 0.0
      %1165 = vmatprep.subr.mxu0 0.0
      %1166 = vmatpush1.msra.mxu0 0.0
      %1167 = vmatprep.subr.mxu0 0.0
      %1168 = vmatpush1.msra.mxu0 0.0
      %1169 = vmatprep.subr.mxu0 0.0
      %1170 = vmatpush1.msra.mxu0 0.0
      %1171 = vmatprep.subr.mxu0 0.0
      %1172 = vmatpush1.msra.mxu0 0.0
      %1173 = vmatprep.subr.mxu0 0.0
      %1174 = vmatpush1.msra.mxu0 0.0
      %1175 = vmatprep.subr.mxu0 0.0
      %1176 = vmatpush1.msra.mxu0 0.0
      %1177 = vmatprep.subr.mxu0 0.0
      %1178 = vmatpush1.msra.mxu0 0.0
      %1179 = vmatprep.subr.mxu0 0.0
      %1180 = vmatpush1.msra.mxu0 0.0
      %1181 = vmatprep.subr.mxu0 0.0
      %1182 = vmatpush1.msra.mxu0 0.0
      %1183 = vmatprep.subr.mxu0 0.0
      %1184 = vmatpush1.msra.mxu0 0.0
      %1185 = vmatprep.subr.mxu0 0.0
      %1186 = vmatpush1.msra.mxu0 0.0
      %1187 = vmatprep.subr.mxu0 0.0
      %1188 = vmatpush1.msra.mxu0 0.0
      %1189 = vmatprep.subr.mxu0 0.0
      %1190 = vmatpush1.msra.mxu0 0.0
      %1191 = vmatprep.subr.mxu0 0.0
      %1192 = vmatpush1.msra.mxu0 0.0
      %1193 = vmatprep.mubr.f32.mxu0 0.0
      %1194 = vmatmul.mubr.f32.gmra.mrb[0].mxu0 %v1118
      %v1195 = vpop.f32.mrb[0].mxu0
      %v1196 = vadd.f32 %v1010, %v1195
      %v1197 = vpop.f32.mrb[0].mxu0
      %v1198 = vadd.f32 %v1012, %v1197
      %1199 = vmatprep.mubr.f32.mxu0 0.0
      %1200 = vmatmul.mubr.f32.gmra.mrb[0].mxu0 %v1121
      %v1201 = vpop.f32.mrb[0].mxu0
      %v1202 = vadd.f32 %v1016, %v1201
      %v1203 = vpop.f32.mrb[0].mxu0
      %v1204 = vadd.f32 %v1018, %v1203
      %1205 = vmatprep.mubr.f32.mxu0 0.0
      %1206 = vmatmul.mubr.f32.gmra.mrb[0].mxu0 %v1124
      %v1207 = vpop.f32.mrb[0].mxu0
      %v1208 = vadd.f32 %v1022, %v1207
      %v1209 = vpop.f32.mrb[0].mxu0
      %v1210 = vadd.f32 %v1024, %v1209
      %1211 = vmatprep.mubr.f32.mxu0 0.0
      %1212 = vmatmul.mubr.f32.gmra.mrb[0].mxu0 %v1127
      %v1213 = vpop.f32.mrb[0].mxu0
      %v1214 = vadd.f32 %v1028, %v1213
      %v1215 = vpop.f32.mrb[0].mxu0
      %v1216 = vadd.f32 %v1030, %v1215
      %1217 = vdwg.mxu0
      %1218 = vmatprep.subr.mxu0 0.0
      %1219 = vmatpush1.msra.mxu0 %v781
      %1220 = vmatprep.subr.mxu0 0.0
      %1221 = vmatpush1.msra.mxu0 %v784
      %1222 = vmatprep.subr.mxu0 0.0
      %1223 = vmatpush1.msra.mxu0 %v787
      %1224 = vmatprep.subr.mxu0 0.0
      %1225 = vmatpush1.msra.mxu0 %v790
      %1226 = vmatprep.subr.mxu0 0.0
      %1227 = vmatpush1.msra.mxu0 %v793
      %1228 = vmatprep.subr.mxu0 0.0
      %1229 = vmatpush1.msra.mxu0 %v796
      %1230 = vmatprep.subr.mxu0 0.0
      %1231 = vmatpush1.msra.mxu0 %v799
      %1232 = vmatprep.subr.mxu0 0.0
      %1233 = vmatpush1.msra.mxu0 %v802
      %1234 = vmatprep.subr.mxu0 0.0
      %1235 = vmatpush1.msra.mxu0 0.0
      %1236 = vmatprep.subr.mxu0 0.0
      %1237 = vmatpush1.msra.mxu0 0.0
      %1238 = vmatprep.subr.mxu0 0.0
      %1239 = vmatpush1.msra.mxu0 0.0
      %1240 = vmatprep.subr.mxu0 0.0
      %1241 = vmatpush1.msra.mxu0 0.0
      %1242 = vmatprep.subr.mxu0 0.0
      %1243 = vmatpush1.msra.mxu0 0.0
      %1244 = vmatprep.subr.mxu0 0.0
      %1245 = vmatpush1.msra.mxu0 0.0
      %1246 = vmatprep.subr.mxu0 0.0
      %1247 = vmatpush1.msra.mxu0 0.0
      %1248 = vmatprep.subr.mxu0 0.0
      %1249 = vmatpush1.msra.mxu0 0.0
      %1250 = vmatprep.subr.mxu0 0.0
      %1251 = vmatpush1.msra.mxu0 0.0
      %1252 = vmatprep.subr.mxu0 0.0
      %1253 = vmatpush1.msra.mxu0 0.0
      %1254 = vmatprep.subr.mxu0 0.0
      %1255 = vmatpush1.msra.mxu0 0.0
      %1256 = vmatprep.subr.mxu0 0.0
      %1257 = vmatpush1.msra.mxu0 0.0
      %1258 = vmatprep.subr.mxu0 0.0
      %1259 = vmatpush1.msra.mxu0 0.0
      %1260 = vmatprep.subr.mxu0 0.0
      %1261 = vmatpush1.msra.mxu0 0.0
      %1262 = vmatprep.subr.mxu0 0.0
      %1263 = vmatpush1.msra.mxu0 0.0
      %1264 = vmatprep.subr.mxu0 0.0
      %1265 = vmatpush1.msra.mxu0 0.0
      %1266 = vmatprep.subr.mxu0 0.0
      %1267 = vmatpush1.msra.mxu0 0.0
      %1268 = vmatprep.subr.mxu0 0.0
      %1269 = vmatpush1.msra.mxu0 0.0
      %1270 = vmatprep.subr.mxu0 0.0
      %1271 = vmatpush1.msra.mxu0 0.0
      %1272 = vmatprep.subr.mxu0 0.0
      %1273 = vmatpush1.msra.mxu0 0.0
      %1274 = vmatprep.subr.mxu0 0.0
      %1275 = vmatpush1.msra.mxu0 0.0
      %1276 = vmatprep.subr.mxu0 0.0
      %1277 = vmatpush1.msra.mxu0 0.0
      %1278 = vmatprep.subr.mxu0 0.0
      %1279 = vmatpush1.msra.mxu0 0.0
      %1280 = vmatprep.subr.mxu0 0.0
      %1281 = vmatpush1.msra.mxu0 0.0
      %1282 = vmatprep.mubr.f32.mxu0 0.0
      %1283 = vmatmul.mubr.f32.gmra.mrb[0].mxu0 %v1118
      %v1284 = vpop.f32.mrb[0].mxu0
      %v1285 = vadd.f32 %v1099, %v1284
      %v1286 = vpop.f32.mrb[0].mxu0
      %1287 = vmatprep.mubr.f32.mxu0 0.0
      %1288 = vmatmul.mubr.f32.gmra.mrb[0].mxu0 %v1121
      %v1289 = vpop.f32.mrb[0].mxu0
      %v1290 = vadd.f32 %v1104, %v1289
      %v1291 = vpop.f32.mrb[0].mxu0
      %1292 = vmatprep.mubr.f32.mxu0 0.0
      %1293 = vmatmul.mubr.f32.gmra.mrb[0].mxu0 %v1124
      %v1294 = vpop.f32.mrb[0].mxu0
      %v1295 = vadd.f32 %v1109, %v1294
      %v1296 = vpop.f32.mrb[0].mxu0
      %1297 = vmatprep.mubr.f32.mxu0 0.0
      %1298 = vmatmul.mubr.f32.gmra.mrb[0].mxu0 %v1127
      %v1299 = vpop.f32.mrb[0].mxu0
      %v1300 = vadd.f32 %v1114, %v1299
      %v1301 = vpop.f32.mrb[0].mxu0
      %1302 = vdwg.mxu0
      %s1303 = scalar_lea.vmem %s3, 64
      %v1304 = vld [vmem:[%s1303] sm:$0xff]
      %v1305 = vld [vmem:[%s1303 + $0x8] sm:$0xff]
      %v1306 = vld [vmem:[%s1303 + $0x10] sm:$0xff]
      %v1307 = vld [vmem:[%s1303 + $0x18] sm:$0xff]
      %v1309 = vsel %vm681, %v1304, 0
      %v1312 = vsel %vm681, %v1305, 0
      %v1315 = vsel %vm681, %v1306, 0
      %v1318 = vsel %vm681, %v1307, 0
      %1320 = vmatprep.subr.mxu0 0.0
      %1321 = vmatpush1.msra.mxu0 %v673
      %1322 = vmatprep.subr.mxu0 0.0
      %1323 = vmatpush1.msra.mxu0 %v674
      %1324 = vmatprep.subr.mxu0 0.0
      %1325 = vmatpush1.msra.mxu0 %v675
      %1326 = vmatprep.subr.mxu0 0.0
      %1327 = vmatpush1.msra.mxu0 %v676
      %1328 = vmatprep.subr.mxu0 0.0
      %1329 = vmatpush1.msra.mxu0 0.0
      %1330 = vmatprep.subr.mxu0 0.0
      %1331 = vmatpush1.msra.mxu0 0.0
      %1332 = vmatprep.subr.mxu0 0.0
      %1333 = vmatpush1.msra.mxu0 0.0
      %1334 = vmatprep.subr.mxu0 0.0
      %1335 = vmatpush1.msra.mxu0 0.0
      %1336 = vmatprep.subr.mxu0 0.0
      %1337 = vmatpush1.msra.mxu0 0.0
      %1338 = vmatprep.subr.mxu0 0.0
      %1339 = vmatpush1.msra.mxu0 0.0
      %1340 = vmatprep.subr.mxu0 0.0
      %1341 = vmatpush1.msra.mxu0 0.0
      %1342 = vmatprep.subr.mxu0 0.0
      %1343 = vmatpush1.msra.mxu0 0.0
      %1344 = vmatprep.subr.mxu0 0.0
      %1345 = vmatpush1.msra.mxu0 0.0
      %1346 = vmatprep.subr.mxu0 0.0
      %1347 = vmatpush1.msra.mxu0 0.0
      %1348 = vmatprep.subr.mxu0 0.0
      %1349 = vmatpush1.msra.mxu0 0.0
      %1350 = vmatprep.subr.mxu0 0.0
      %1351 = vmatpush1.msra.mxu0 0.0
      %1352 = vmatprep.subr.mxu0 0.0
      %1353 = vmatpush1.msra.mxu0 0.0
      %1354 = vmatprep.subr.mxu0 0.0
      %1355 = vmatpush1.msra.mxu0 0.0
      %1356 = vmatprep.subr.mxu0 0.0
      %1357 = vmatpush1.msra.mxu0 0.0
      %1358 = vmatprep.subr.mxu0 0.0
      %1359 = vmatpush1.msra.mxu0 0.0
      %1360 = vmatprep.subr.mxu0 0.0
      %1361 = vmatpush1.msra.mxu0 0.0
      %1362 = vmatprep.subr.mxu0 0.0
      %1363 = vmatpush1.msra.mxu0 0.0
      %1364 = vmatprep.subr.mxu0 0.0
      %1365 = vmatpush1.msra.mxu0 0.0
      %1366 = vmatprep.subr.mxu0 0.0
      %1367 = vmatpush1.msra.mxu0 0.0
      %1368 = vmatprep.subr.mxu0 0.0
      %1369 = vmatpush1.msra.mxu0 0.0
      %1370 = vmatprep.subr.mxu0 0.0
      %1371 = vmatpush1.msra.mxu0 0.0
      %1372 = vmatprep.subr.mxu0 0.0
      %1373 = vmatpush1.msra.mxu0 0.0
      %1374 = vmatprep.subr.mxu0 0.0
      %1375 = vmatpush1.msra.mxu0 0.0
      %1376 = vmatprep.subr.mxu0 0.0
      %1377 = vmatpush1.msra.mxu0 0.0
      %1378 = vmatprep.subr.mxu0 0.0
      %1379 = vmatpush1.msra.mxu0 0.0
      %1380 = vmatprep.subr.mxu0 0.0
      %1381 = vmatpush1.msra.mxu0 0.0
      %1382 = vmatprep.subr.mxu0 0.0
      %1383 = vmatpush1.msra.mxu0 0.0
      %1384 = vmatprep.mubr.f32.mxu0 0.0
      %1385 = vmatmul.mubr.f32.gmra.mrb[0].mxu0 %v1309
      %v1386 = vpop.f32.mrb[0].mxu0
      %v1387 = vadd.f32 0.0, %v1386
      %v1388 = vpop.f32.mrb[0].mxu0
      %1389 = vmatprep.mubr.f32.mxu0 0.0
      %1390 = vmatmul.mubr.f32.gmra.mrb[0].mxu0 %v1312
      %v1391 = vpop.f32.mrb[0].mxu0
      %v1392 = vadd.f32 0.0, %v1391
      %v1393 = vpop.f32.mrb[0].mxu0
      %1394 = vmatprep.mubr.f32.mxu0 0.0
      %1395 = vmatmul.mubr.f32.gmra.mrb[0].mxu0 %v1315
      %v1396 = vpop.f32.mrb[0].mxu0
      %v1397 = vadd.f32 0.0, %v1396
      %v1398 = vpop.f32.mrb[0].mxu0
      %1399 = vmatprep.mubr.f32.mxu0 0.0
      %1400 = vmatmul.mubr.f32.gmra.mrb[0].mxu0 %v1318
      %v1401 = vpop.f32.mrb[0].mxu0
      %v1402 = vadd.f32 0.0, %v1401
      %v1403 = vpop.f32.mrb[0].mxu0
      %1404 = vdwg.mxu0
      %s1405 = scalar_lea.vmem %s4, 384
      %v1406 = vld [vmem:[%s1405] sm:$0xff]
      %v1407 = vld [vmem:[%s1405 + $0x8] sm:$0xff]
      %v1408 = vld [vmem:[%s1405 + $0x10] sm:$0xff]
      %v1409 = vld [vmem:[%s1405 + $0x18] sm:$0xff]
      %v1410 = vld [vmem:[%s1405 + $0x20] sm:$0xff]
      %v1411 = vld [vmem:[%s1405 + $0x28] sm:$0xff]
      %v1412 = vld [vmem:[%s1405 + $0x30] sm:$0xff]
      %v1413 = vld [vmem:[%s1405 + $0x38] sm:$0xff]
      %v1414 = vld [vmem:[%s1405 + $0x40] sm:$0xff]
      %v1415 = vld [vmem:[%s1405 + $0x48] sm:$0xff]
      %v1416 = vld [vmem:[%s1405 + $0x50] sm:$0xff]
      %v1417 = vld [vmem:[%s1405 + $0x58] sm:$0xff]
      %v1418 = vld [vmem:[%s1405 + $0x60] sm:$0xff]
      %v1419 = vld [vmem:[%s1405 + $0x68] sm:$0xff]
      %v1420 = vld [vmem:[%s1405 + $0x70] sm:$0xff]
      %v1421 = vld [vmem:[%s1405 + $0x78] sm:$0xff]
      %v1422 = vld [vmem:[%s1405 + $0x80] sm:$0xff]
      %v1423 = vld [vmem:[%s1405 + $0x88] sm:$0xff]
      %v1424 = vld [vmem:[%s1405 + $0x90] sm:$0xff]
      %v1425 = vld [vmem:[%s1405 + $0x98] sm:$0xff]
      %v1426 = vld [vmem:[%s1405 + $0xa0] sm:$0xff]
      %v1427 = vld [vmem:[%s1405 + $0xa8] sm:$0xff]
      %v1428 = vld [vmem:[%s1405 + $0xb0] sm:$0xff]
      %v1429 = vld [vmem:[%s1405 + $0xb8] sm:$0xff]
      %v1431 = vsel %vm930, %v1387, 0
      %v1434 = vsel %vm930, %v1392, 0
      %v1437 = vsel %vm930, %v1397, 0
      %v1440 = vsel %vm930, %v1402, 0
      %1442 = vmatprep.subr.mxu0 %v1407
      %1443 = vmatpush1.msra.mxu0 %v1406
      %1444 = vmatprep.subr.mxu0 %v1410
      %1445 = vmatpush1.msra.mxu0 %v1409
      %1446 = vmatprep.subr.mxu0 %v1413
      %1447 = vmatpush1.msra.mxu0 %v1412
      %1448 = vmatprep.subr.mxu0 %v1416
      %1449 = vmatpush1.msra.mxu0 %v1415
      %1450 = vmatprep.subr.mxu0 %v1419
      %1451 = vmatpush1.msra.mxu0 %v1418
      %1452 = vmatprep.subr.mxu0 %v1422
      %1453 = vmatpush1.msra.mxu0 %v1421
      %1454 = vmatprep.subr.mxu0 %v1425
      %1455 = vmatpush1.msra.mxu0 %v1424
      %1456 = vmatprep.subr.mxu0 %v1428
      %1457 = vmatpush1.msra.mxu0 %v1427
      %1458 = vmatprep.subr.mxu0 0.0
      %1459 = vmatpush1.msra.mxu0 0.0
      %1460 = vmatprep.subr.mxu0 0.0
      %1461 = vmatpush1.msra.mxu0 0.0
      %1462 = vmatprep.subr.mxu0 0.0
      %1463 = vmatpush1.msra.mxu0 0.0
      %1464 = vmatprep.subr.mxu0 0.0
      %1465 = vmatpush1.msra.mxu0 0.0
      %1466 = vmatprep.subr.mxu0 0.0
      %1467 = vmatpush1.msra.mxu0 0.0
      %1468 = vmatprep.subr.mxu0 0.0
      %1469 = vmatpush1.msra.mxu0 0.0
      %1470 = vmatprep.subr.mxu0 0.0
      %1471 = vmatpush1.msra.mxu0 0.0
      %1472 = vmatprep.subr.mxu0 0.0
      %1473 = vmatpush1.msra.mxu0 0.0
      %1474 = vmatprep.subr.mxu0 0.0
      %1475 = vmatpush1.msra.mxu0 0.0
      %1476 = vmatprep.subr.mxu0 0.0
      %1477 = vmatpush1.msra.mxu0 0.0
      %1478 = vmatprep.subr.mxu0 0.0
      %1479 = vmatpush1.msra.mxu0 0.0
      %1480 = vmatprep.subr.mxu0 0.0
      %1481 = vmatpush1.msra.mxu0 0.0
      %1482 = vmatprep.subr.mxu0 0.0
      %1483 = vmatpush1.msra.mxu0 0.0
      %1484 = vmatprep.subr.mxu0 0.0
      %1485 = vmatpush1.msra.mxu0 0.0
      %1486 = vmatprep.subr.mxu0 0.0
      %1487 = vmatpush1.msra.mxu0 0.0
      %1488 = vmatprep.subr.mxu0 0.0
      %1489 = vmatpush1.msra.mxu0 0.0
      %1490 = vmatprep.subr.mxu0 0.0
      %1491 = vmatpush1.msra.mxu0 0.0
      %1492 = vmatprep.subr.mxu0 0.0
      %1493 = vmatpush1.msra.mxu0 0.0
      %1494 = vmatprep.subr.mxu0 0.0
      %1495 = vmatpush1.msra.mxu0 0.0
      %1496 = vmatprep.subr.mxu0 0.0
      %1497 = vmatpush1.msra.mxu0 0.0
      %1498 = vmatprep.subr.mxu0 0.0
      %1499 = vmatpush1.msra.mxu0 0.0
      %1500 = vmatprep.subr.mxu0 0.0
      %1501 = vmatpush1.msra.mxu0 0.0
      %1502 = vmatprep.subr.mxu0 0.0
      %1503 = vmatpush1.msra.mxu0 0.0
      %1504 = vmatprep.subr.mxu0 0.0
      %1505 = vmatpush1.msra.mxu0 0.0
      %1506 = vmatprep.mubr.f32.mxu0 0.0
      %1507 = vmatmul.mubr.f32.gmra.mrb[0].mxu0 %v1431
      %v1508 = vpop.f32.mrb[0].mxu0
      %v1509 = vadd.f32 0.0, %v1508
      %v1510 = vpop.f32.mrb[0].mxu0
      %v1511 = vadd.f32 0.0, %v1510
      %1512 = vmatprep.mubr.f32.mxu0 0.0
      %1513 = vmatmul.mubr.f32.gmra.mrb[0].mxu0 %v1434
      %v1514 = vpop.f32.mrb[0].mxu0
      %v1515 = vadd.f32 0.0, %v1514
      %v1516 = vpop.f32.mrb[0].mxu0
      %v1517 = vadd.f32 0.0, %v1516
      %1518 = vmatprep.mubr.f32.mxu0 0.0
      %1519 = vmatmul.mubr.f32.gmra.mrb[0].mxu0 %v1437
      %v1520 = vpop.f32.mrb[0].mxu0
      %v1521 = vadd.f32 0.0, %v1520
      %v1522 = vpop.f32.mrb[0].mxu0
      %v1523 = vadd.f32 0.0, %v1522
      %1524 = vmatprep.mubr.f32.mxu0 0.0
      %1525 = vmatmul.mubr.f32.gmra.mrb[0].mxu0 %v1440
      %v1526 = vpop.f32.mrb[0].mxu0
      %v1527 = vadd.f32 0.0, %v1526
      %v1528 = vpop.f32.mrb[0].mxu0
      %v1529 = vadd.f32 0.0, %v1528
      %1530 = vdwg.mxu0
      %1531 = vmatprep.subr.mxu0 0.0
      %1532 = vmatpush1.msra.mxu0 %v1408
      %1533 = vmatprep.subr.mxu0 0.0
      %1534 = vmatpush1.msra.mxu0 %v1411
      %1535 = vmatprep.subr.mxu0 0.0
      %1536 = vmatpush1.msra.mxu0 %v1414
      %1537 = vmatprep.subr.mxu0 0.0
      %1538 = vmatpush1.msra.mxu0 %v1417
      %1539 = vmatprep.subr.mxu0 0.0
      %1540 = vmatpush1.msra.mxu0 %v1420
      %1541 = vmatprep.subr.mxu0 0.0
      %1542 = vmatpush1.msra.mxu0 %v1423
      %1543 = vmatprep.subr.mxu0 0.0
      %1544 = vmatpush1.msra.mxu0 %v1426
      %1545 = vmatprep.subr.mxu0 0.0
      %1546 = vmatpush1.msra.mxu0 %v1429
      %1547 = vmatprep.subr.mxu0 0.0
      %1548 = vmatpush1.msra.mxu0 0.0
      %1549 = vmatprep.subr.mxu0 0.0
      %1550 = vmatpush1.msra.mxu0 0.0
      %1551 = vmatprep.subr.mxu0 0.0
      %1552 = vmatpush1.msra.mxu0 0.0
      %1553 = vmatprep.subr.mxu0 0.0
      %1554 = vmatpush1.msra.mxu0 0.0
      %1555 = vmatprep.subr.mxu0 0.0
      %1556 = vmatpush1.msra.mxu0 0.0
      %1557 = vmatprep.subr.mxu0 0.0
      %1558 = vmatpush1.msra.mxu0 0.0
      %1559 = vmatprep.subr.mxu0 0.0
      %1560 = vmatpush1.msra.mxu0 0.0
      %1561 = vmatprep.subr.mxu0 0.0
      %1562 = vmatpush1.msra.mxu0 0.0
      %1563 = vmatprep.subr.mxu0 0.0
      %1564 = vmatpush1.msra.mxu0 0.0
      %1565 = vmatprep.subr.mxu0 0.0
      %1566 = vmatpush1.msra.mxu0 0.0
      %1567 = vmatprep.subr.mxu0 0.0
      %1568 = vmatpush1.msra.mxu0 0.0
      %1569 = vmatprep.subr.mxu0 0.0
      %1570 = vmatpush1.msra.mxu0 0.0
      %1571 = vmatprep.subr.mxu0 0.0
      %1572 = vmatpush1.msra.mxu0 0.0
      %1573 = vmatprep.subr.mxu0 0.0
      %1574 = vmatpush1.msra.mxu0 0.0
      %1575 = vmatprep.subr.mxu0 0.0
      %1576 = vmatpush1.msra.mxu0 0.0
      %1577 = vmatprep.subr.mxu0 0.0
      %1578 = vmatpush1.msra.mxu0 0.0
      %1579 = vmatprep.subr.mxu0 0.0
      %1580 = vmatpush1.msra.mxu0 0.0
      %1581 = vmatprep.subr.mxu0 0.0
      %1582 = vmatpush1.msra.mxu0 0.0
      %1583 = vmatprep.subr.mxu0 0.0
      %1584 = vmatpush1.msra.mxu0 0.0
      %1585 = vmatprep.subr.mxu0 0.0
      %1586 = vmatpush1.msra.mxu0 0.0
      %1587 = vmatprep.subr.mxu0 0.0
      %1588 = vmatpush1.msra.mxu0 0.0
      %1589 = vmatprep.subr.mxu0 0.0
      %1590 = vmatpush1.msra.mxu0 0.0
      %1591 = vmatprep.subr.mxu0 0.0
      %1592 = vmatpush1.msra.mxu0 0.0
      %1593 = vmatprep.subr.mxu0 0.0
      %1594 = vmatpush1.msra.mxu0 0.0
      %1595 = vmatprep.mubr.f32.mxu0 0.0
      %1596 = vmatmul.mubr.f32.gmra.mrb[0].mxu0 %v1431
      %v1597 = vpop.f32.mrb[0].mxu0
      %v1598 = vadd.f32 0.0, %v1597
      %v1599 = vpop.f32.mrb[0].mxu0
      %1600 = vmatprep.mubr.f32.mxu0 0.0
      %1601 = vmatmul.mubr.f32.gmra.mrb[0].mxu0 %v1434
      %v1602 = vpop.f32.mrb[0].mxu0
      %v1603 = vadd.f32 0.0, %v1602
      %v1604 = vpop.f32.mrb[0].mxu0
      %1605 = vmatprep.mubr.f32.mxu0 0.0
      %1606 = vmatmul.mubr.f32.gmra.mrb[0].mxu0 %v1437
      %v1607 = vpop.f32.mrb[0].mxu0
      %v1608 = vadd.f32 0.0, %v1607
      %v1609 = vpop.f32.mrb[0].mxu0
      %1610 = vmatprep.mubr.f32.mxu0 0.0
      %1611 = vmatmul.mubr.f32.gmra.mrb[0].mxu0 %v1440
      %v1612 = vpop.f32.mrb[0].mxu0
      %v1613 = vadd.f32 0.0, %v1612
      %v1614 = vpop.f32.mrb[0].mxu0
      %1615 = vdwg.mxu0
      %v1616 = vadd.f32 %v1196, %v1509
      %v1617 = vadd.f32 %v1198, %v1511
      %v1618 = vadd.f32 %v1285, %v1598
      %v1619 = vadd.f32 %v1202, %v1515
      %v1620 = vadd.f32 %v1204, %v1517
      %v1621 = vadd.f32 %v1290, %v1603
      %v1622 = vadd.f32 %v1208, %v1521
      %v1623 = vadd.f32 %v1210, %v1523
      %v1624 = vadd.f32 %v1295, %v1608
      %v1625 = vadd.f32 %v1214, %v1527
      %v1626 = vadd.f32 %v1216, %v1529
      %v1627 = vadd.f32 %v1300, %v1613
      %s1628 = scalar_lea.vmem %s3, 96
      %v1629 = vld [vmem:[%s1628] sm:$0xff]
      %v1630 = vld [vmem:[%s1628 + $0x8] sm:$0xff]
      %v1631 = vld [vmem:[%s1628 + $0x10] sm:$0xff]
      %v1632 = vld [vmem:[%s1628 + $0x18] sm:$0xff]
      %v1634 = vsel %vm681, %v1629, 0
      %v1637 = vsel %vm681, %v1630, 0
      %v1640 = vsel %vm681, %v1631, 0
      %v1643 = vsel %vm681, %v1632, 0
      %1645 = vmatprep.subr.mxu0 0.0
      %1646 = vmatpush1.msra.mxu0 %v673
      %1647 = vmatprep.subr.mxu0 0.0
      %1648 = vmatpush1.msra.mxu0 %v674
      %1649 = vmatprep.subr.mxu0 0.0
      %1650 = vmatpush1.msra.mxu0 %v675
      %1651 = vmatprep.subr.mxu0 0.0
      %1652 = vmatpush1.msra.mxu0 %v676
      %1653 = vmatprep.subr.mxu0 0.0
      %1654 = vmatpush1.msra.mxu0 0.0
      %1655 = vmatprep.subr.mxu0 0.0
      %1656 = vmatpush1.msra.mxu0 0.0
      %1657 = vmatprep.subr.mxu0 0.0
      %1658 = vmatpush1.msra.mxu0 0.0
      %1659 = vmatprep.subr.mxu0 0.0
      %1660 = vmatpush1.msra.mxu0 0.0
      %1661 = vmatprep.subr.mxu0 0.0
      %1662 = vmatpush1.msra.mxu0 0.0
      %1663 = vmatprep.subr.mxu0 0.0
      %1664 = vmatpush1.msra.mxu0 0.0
      %1665 = vmatprep.subr.mxu0 0.0
      %1666 = vmatpush1.msra.mxu0 0.0
      %1667 = vmatprep.subr.mxu0 0.0
      %1668 = vmatpush1.msra.mxu0 0.0
      %1669 = vmatprep.subr.mxu0 0.0
      %1670 = vmatpush1.msra.mxu0 0.0
      %1671 = vmatprep.subr.mxu0 0.0
      %1672 = vmatpush1.msra.mxu0 0.0
      %1673 = vmatprep.subr.mxu0 0.0
      %1674 = vmatpush1.msra.mxu0 0.0
      %1675 = vmatprep.subr.mxu0 0.0
      %1676 = vmatpush1.msra.mxu0 0.0
      %1677 = vmatprep.subr.mxu0 0.0
      %1678 = vmatpush1.msra.mxu0 0.0
      %1679 = vmatprep.subr.mxu0 0.0
      %1680 = vmatpush1.msra.mxu0 0.0
      %1681 = vmatprep.subr.mxu0 0.0
      %1682 = vmatpush1.msra.mxu0 0.0
      %1683 = vmatprep.subr.mxu0 0.0
      %1684 = vmatpush1.msra.mxu0 0.0
      %1685 = vmatprep.subr.mxu0 0.0
      %1686 = vmatpush1.msra.mxu0 0.0
      %1687 = vmatprep.subr.mxu0 0.0
      %1688 = vmatpush1.msra.mxu0 0.0
      %1689 = vmatprep.subr.mxu0 0.0
      %1690 = vmatpush1.msra.mxu0 0.0
      %1691 = vmatprep.subr.mxu0 0.0
      %1692 = vmatpush1.msra.mxu0 0.0
      %1693 = vmatprep.subr.mxu0 0.0
      %1694 = vmatpush1.msra.mxu0 0.0
      %1695 = vmatprep.subr.mxu0 0.0
      %1696 = vmatpush1.msra.mxu0 0.0
      %1697 = vmatprep.subr.mxu0 0.0
      %1698 = vmatpush1.msra.mxu0 0.0
      %1699 = vmatprep.subr.mxu0 0.0
      %1700 = vmatpush1.msra.mxu0 0.0
      %1701 = vmatprep.subr.mxu0 0.0
      %1702 = vmatpush1.msra.mxu0 0.0
      %1703 = vmatprep.subr.mxu0 0.0
      %1704 = vmatpush1.msra.mxu0 0.0
      %1705 = vmatprep.subr.mxu0 0.0
      %1706 = vmatpush1.msra.mxu0 0.0
      %1707 = vmatprep.subr.mxu0 0.0
      %1708 = vmatpush1.msra.mxu0 0.0
      %1709 = vmatprep.mubr.f32.mxu0 0.0
      %1710 = vmatmul.mubr.f32.gmra.mrb[0].mxu0 %v1634
      %v1711 = vpop.f32.mrb[0].mxu0
      %v1712 = vadd.f32 0.0, %v1711
      %v1713 = vpop.f32.mrb[0].mxu0
      %1714 = vmatprep.mubr.f32.mxu0 0.0
      %1715 = vmatmul.mubr.f32.gmra.mrb[0].mxu0 %v1637
      %v1716 = vpop.f32.mrb[0].mxu0
      %v1717 = vadd.f32 0.0, %v1716
      %v1718 = vpop.f32.mrb[0].mxu0
      %1719 = vmatprep.mubr.f32.mxu0 0.0
      %1720 = vmatmul.mubr.f32.gmra.mrb[0].mxu0 %v1640
      %v1721 = vpop.f32.mrb[0].mxu0
      %v1722 = vadd.f32 0.0, %v1721
      %v1723 = vpop.f32.mrb[0].mxu0
      %1724 = vmatprep.mubr.f32.mxu0 0.0
      %1725 = vmatmul.mubr.f32.gmra.mrb[0].mxu0 %v1643
      %v1726 = vpop.f32.mrb[0].mxu0
      %v1727 = vadd.f32 0.0, %v1726
      %v1728 = vpop.f32.mrb[0].mxu0
      %1729 = vdwg.mxu0
      %s1730 = scalar_lea.vmem %s4, 576
      %v1731 = vld [vmem:[%s1730] sm:$0xff]
      %v1732 = vld [vmem:[%s1730 + $0x8] sm:$0xff]
      %v1733 = vld [vmem:[%s1730 + $0x10] sm:$0xff]
      %v1734 = vld [vmem:[%s1730 + $0x18] sm:$0xff]
      %v1735 = vld [vmem:[%s1730 + $0x20] sm:$0xff]
      %v1736 = vld [vmem:[%s1730 + $0x28] sm:$0xff]
      %v1737 = vld [vmem:[%s1730 + $0x30] sm:$0xff]
      %v1738 = vld [vmem:[%s1730 + $0x38] sm:$0xff]
      %v1739 = vld [vmem:[%s1730 + $0x40] sm:$0xff]
      %v1740 = vld [vmem:[%s1730 + $0x48] sm:$0xff]
      %v1741 = vld [vmem:[%s1730 + $0x50] sm:$0xff]
      %v1742 = vld [vmem:[%s1730 + $0x58] sm:$0xff]
      %v1743 = vld [vmem:[%s1730 + $0x60] sm:$0xff]
      %v1744 = vld [vmem:[%s1730 + $0x68] sm:$0xff]
      %v1745 = vld [vmem:[%s1730 + $0x70] sm:$0xff]
      %v1746 = vld [vmem:[%s1730 + $0x78] sm:$0xff]
      %v1747 = vld [vmem:[%s1730 + $0x80] sm:$0xff]
      %v1748 = vld [vmem:[%s1730 + $0x88] sm:$0xff]
      %v1749 = vld [vmem:[%s1730 + $0x90] sm:$0xff]
      %v1750 = vld [vmem:[%s1730 + $0x98] sm:$0xff]
      %v1751 = vld [vmem:[%s1730 + $0xa0] sm:$0xff]
      %v1752 = vld [vmem:[%s1730 + $0xa8] sm:$0xff]
      %v1753 = vld [vmem:[%s1730 + $0xb0] sm:$0xff]
      %v1754 = vld [vmem:[%s1730 + $0xb8] sm:$0xff]
      %v1756 = vsel %vm930, %v1712, 0
      %v1759 = vsel %vm930, %v1717, 0
      %v1762 = vsel %vm930, %v1722, 0
      %v1765 = vsel %vm930, %v1727, 0
      %1767 = vmatprep.subr.mxu0 %v1732
      %1768 = vmatpush1.msra.mxu0 %v1731
      %1769 = vmatprep.subr.mxu0 %v1735
      %1770 = vmatpush1.msra.mxu0 %v1734
      %1771 = vmatprep.subr.mxu0 %v1738
      %1772 = vmatpush1.msra.mxu0 %v1737
      %1773 = vmatprep.subr.mxu0 %v1741
      %1774 = vmatpush1.msra.mxu0 %v1740
      %1775 = vmatprep.subr.mxu0 %v1744
      %1776 = vmatpush1.msra.mxu0 %v1743
      %1777 = vmatprep.subr.mxu0 %v1747
      %1778 = vmatpush1.msra.mxu0 %v1746
      %1779 = vmatprep.subr.mxu0 %v1750
      %1780 = vmatpush1.msra.mxu0 %v1749
      %1781 = vmatprep.subr.mxu0 %v1753
      %1782 = vmatpush1.msra.mxu0 %v1752
      %1783 = vmatprep.subr.mxu0 0.0
      %1784 = vmatpush1.msra.mxu0 0.0
      %1785 = vmatprep.subr.mxu0 0.0
      %1786 = vmatpush1.msra.mxu0 0.0
      %1787 = vmatprep.subr.mxu0 0.0
      %1788 = vmatpush1.msra.mxu0 0.0
      %1789 = vmatprep.subr.mxu0 0.0
      %1790 = vmatpush1.msra.mxu0 0.0
      %1791 = vmatprep.subr.mxu0 0.0
      %1792 = vmatpush1.msra.mxu0 0.0
      %1793 = vmatprep.subr.mxu0 0.0
      %1794 = vmatpush1.msra.mxu0 0.0
      %1795 = vmatprep.subr.mxu0 0.0
      %1796 = vmatpush1.msra.mxu0 0.0
      %1797 = vmatprep.subr.mxu0 0.0
      %1798 = vmatpush1.msra.mxu0 0.0
      %1799 = vmatprep.subr.mxu0 0.0
      %1800 = vmatpush1.msra.mxu0 0.0
      %1801 = vmatprep.subr.mxu0 0.0
      %1802 = vmatpush1.msra.mxu0 0.0
      %1803 = vmatprep.subr.mxu0 0.0
      %1804 = vmatpush1.msra.mxu0 0.0
      %1805 = vmatprep.subr.mxu0 0.0
      %1806 = vmatpush1.msra.mxu0 0.0
      %1807 = vmatprep.subr.mxu0 0.0
      %1808 = vmatpush1.msra.mxu0 0.0
      %1809 = vmatprep.subr.mxu0 0.0
      %1810 = vmatpush1.msra.mxu0 0.0
      %1811 = vmatprep.subr.mxu0 0.0
      %1812 = vmatpush1.msra.mxu0 0.0
      %1813 = vmatprep.subr.mxu0 0.0
      %1814 = vmatpush1.msra.mxu0 0.0
      %1815 = vmatprep.subr.mxu0 0.0
      %1816 = vmatpush1.msra.mxu0 0.0
      %1817 = vmatprep.subr.mxu0 0.0
      %1818 = vmatpush1.msra.mxu0 0.0
      %1819 = vmatprep.subr.mxu0 0.0
      %1820 = vmatpush1.msra.mxu0 0.0
      %1821 = vmatprep.subr.mxu0 0.0
      %1822 = vmatpush1.msra.mxu0 0.0
      %1823 = vmatprep.subr.mxu0 0.0
      %1824 = vmatpush1.msra.mxu0 0.0
      %1825 = vmatprep.subr.mxu0 0.0
      %1826 = vmatpush1.msra.mxu0 0.0
      %1827 = vmatprep.subr.mxu0 0.0
      %1828 = vmatpush1.msra.mxu0 0.0
      %1829 = vmatprep.subr.mxu0 0.0
      %1830 = vmatpush1.msra.mxu0 0.0
      %1831 = vmatprep.mubr.f32.mxu0 0.0
      %1832 = vmatmul.mubr.f32.gmra.mrb[0].mxu0 %v1756
      %v1833 = vpop.f32.mrb[0].mxu0
      %v1834 = vadd.f32 0.0, %v1833
      %v1835 = vpop.f32.mrb[0].mxu0
      %v1836 = vadd.f32 0.0, %v1835
      %1837 = vmatprep.mubr.f32.mxu0 0.0
      %1838 = vmatmul.mubr.f32.gmra.mrb[0].mxu0 %v1759
      %v1839 = vpop.f32.mrb[0].mxu0
      %v1840 = vadd.f32 0.0, %v1839
      %v1841 = vpop.f32.mrb[0].mxu0
      %v1842 = vadd.f32 0.0, %v1841
      %1843 = vmatprep.mubr.f32.mxu0 0.0
      %1844 = vmatmul.mubr.f32.gmra.mrb[0].mxu0 %v1762
      %v1845 = vpop.f32.mrb[0].mxu0
      %v1846 = vadd.f32 0.0, %v1845
      %v1847 = vpop.f32.mrb[0].mxu0
      %v1848 = vadd.f32 0.0, %v1847
      %1849 = vmatprep.mubr.f32.mxu0 0.0
      %1850 = vmatmul.mubr.f32.gmra.mrb[0].mxu0 %v1765
      %v1851 = vpop.f32.mrb[0].mxu0
      %v1852 = vadd.f32 0.0, %v1851
      %v1853 = vpop.f32.mrb[0].mxu0
      %v1854 = vadd.f32 0.0, %v1853
      %1855 = vdwg.mxu0
      %1856 = vmatprep.subr.mxu0 0.0
      %1857 = vmatpush1.msra.mxu0 %v1733
      %1858 = vmatprep.subr.mxu0 0.0
      %1859 = vmatpush1.msra.mxu0 %v1736
      %1860 = vmatprep.subr.mxu0 0.0
      %1861 = vmatpush1.msra.mxu0 %v1739
      %1862 = vmatprep.subr.mxu0 0.0
      %1863 = vmatpush1.msra.mxu0 %v1742
      %1864 = vmatprep.subr.mxu0 0.0
      %1865 = vmatpush1.msra.mxu0 %v1745
      %1866 = vmatprep.subr.mxu0 0.0
      %1867 = vmatpush1.msra.mxu0 %v1748
      %1868 = vmatprep.subr.mxu0 0.0
      %1869 = vmatpush1.msra.mxu0 %v1751
      %1870 = vmatprep.subr.mxu0 0.0
      %1871 = vmatpush1.msra.mxu0 %v1754
      %1872 = vmatprep.subr.mxu0 0.0
      %1873 = vmatpush1.msra.mxu0 0.0
      %1874 = vmatprep.subr.mxu0 0.0
      %1875 = vmatpush1.msra.mxu0 0.0
      %1876 = vmatprep.subr.mxu0 0.0
      %1877 = vmatpush1.msra.mxu0 0.0
      %1878 = vmatprep.subr.mxu0 0.0
      %1879 = vmatpush1.msra.mxu0 0.0
      %1880 = vmatprep.subr.mxu0 0.0
      %1881 = vmatpush1.msra.mxu0 0.0
      %1882 = vmatprep.subr.mxu0 0.0
      %1883 = vmatpush1.msra.mxu0 0.0
      %1884 = vmatprep.subr.mxu0 0.0
      %1885 = vmatpush1.msra.mxu0 0.0
      %1886 = vmatprep.subr.mxu0 0.0
      %1887 = vmatpush1.msra.mxu0 0.0
      %1888 = vmatprep.subr.mxu0 0.0
      %1889 = vmatpush1.msra.mxu0 0.0
      %1890 = vmatprep.subr.mxu0 0.0
      %1891 = vmatpush1.msra.mxu0 0.0
      %1892 = vmatprep.subr.mxu0 0.0
      %1893 = vmatpush1.msra.mxu0 0.0
      %1894 = vmatprep.subr.mxu0 0.0
      %1895 = vmatpush1.msra.mxu0 0.0
      %1896 = vmatprep.subr.mxu0 0.0
      %1897 = vmatpush1.msra.mxu0 0.0
      %1898 = vmatprep.subr.mxu0 0.0
      %1899 = vmatpush1.msra.mxu0 0.0
      %1900 = vmatprep.subr.mxu0 0.0
      %1901 = vmatpush1.msra.mxu0 0.0
      %1902 = vmatprep.subr.mxu0 0.0
      %1903 = vmatpush1.msra.mxu0 0.0
      %1904 = vmatprep.subr.mxu0 0.0
      %1905 = vmatpush1.msra.mxu0 0.0
      %1906 = vmatprep.subr.mxu0 0.0
      %1907 = vmatpush1.msra.mxu0 0.0
      %1908 = vmatprep.subr.mxu0 0.0
      %1909 = vmatpush1.msra.mxu0 0.0
      %1910 = vmatprep.subr.mxu0 0.0
      %1911 = vmatpush1.msra.mxu0 0.0
      %1912 = vmatprep.subr.mxu0 0.0
      %1913 = vmatpush1.msra.mxu0 0.0
      %1914 = vmatprep.subr.mxu0 0.0
      %1915 = vmatpush1.msra.mxu0 0.0
      %1916 = vmatprep.subr.mxu0 0.0
      %1917 = vmatpush1.msra.mxu0 0.0
      %1918 = vmatprep.subr.mxu0 0.0
      %1919 = vmatpush1.msra.mxu0 0.0
      %1920 = vmatprep.mubr.f32.mxu0 0.0
      %1921 = vmatmul.mubr.f32.gmra.mrb[0].mxu0 %v1756
      %v1922 = vpop.f32.mrb[0].mxu0
      %v1923 = vadd.f32 0.0, %v1922
      %v1924 = vpop.f32.mrb[0].mxu0
      %1925 = vmatprep.mubr.f32.mxu0 0.0
      %1926 = vmatmul.mubr.f32.gmra.mrb[0].mxu0 %v1759
      %v1927 = vpop.f32.mrb[0].mxu0
      %v1928 = vadd.f32 0.0, %v1927
      %v1929 = vpop.f32.mrb[0].mxu0
      %1930 = vmatprep.mubr.f32.mxu0 0.0
      %1931 = vmatmul.mubr.f32.gmra.mrb[0].mxu0 %v1762
      %v1932 = vpop.f32.mrb[0].mxu0
      %v1933 = vadd.f32 0.0, %v1932
      %v1934 = vpop.f32.mrb[0].mxu0
      %1935 = vmatprep.mubr.f32.mxu0 0.0
      %1936 = vmatmul.mubr.f32.gmra.mrb[0].mxu0 %v1765
      %v1937 = vpop.f32.mrb[0].mxu0
      %v1938 = vadd.f32 0.0, %v1937
      %v1939 = vpop.f32.mrb[0].mxu0
      %1940 = vdwg.mxu0
      %v1941 = vadd.f32 %v1616, %v1834
      %v1942 = vadd.f32 %v1617, %v1836
      %v1943 = vadd.f32 %v1618, %v1923
      %v1944 = vadd.f32 %v1619, %v1840
      %v1945 = vadd.f32 %v1620, %v1842
      %v1946 = vadd.f32 %v1621, %v1928
      %v1947 = vadd.f32 %v1622, %v1846
      %v1948 = vadd.f32 %v1623, %v1848
      %v1949 = vadd.f32 %v1624, %v1933
      %v1950 = vadd.f32 %v1625, %v1852
      %v1951 = vadd.f32 %v1626, %v1854
      %v1952 = vadd.f32 %v1627, %v1938
      %s1953 = scalar_lea.vmem %s3, 128
      %v1954 = vld [vmem:[%s1953] sm:$0xff]
      %v1955 = vld [vmem:[%s1953 + $0x8] sm:$0xff]
      %v1956 = vld [vmem:[%s1953 + $0x10] sm:$0xff]
      %v1957 = vld [vmem:[%s1953 + $0x18] sm:$0xff]
      %v1959 = vsel %vm681, %v1954, 0
      %v1962 = vsel %vm681, %v1955, 0
      %v1965 = vsel %vm681, %v1956, 0
      %v1968 = vsel %vm681, %v1957, 0
      %1970 = vmatprep.subr.mxu0 0.0
      %1971 = vmatpush1.msra.mxu0 %v673
      %1972 = vmatprep.subr.mxu0 0.0
      %1973 = vmatpush1.msra.mxu0 %v674
      %1974 = vmatprep.subr.mxu0 0.0
      %1975 = vmatpush1.msra.mxu0 %v675
      %1976 = vmatprep.subr.mxu0 0.0
      %1977 = vmatpush1.msra.mxu0 %v676
      %1978 = vmatprep.subr.mxu0 0.0
      %1979 = vmatpush1.msra.mxu0 0.0
      %1980 = vmatprep.subr.mxu0 0.0
      %1981 = vmatpush1.msra.mxu0 0.0
      %1982 = vmatprep.subr.mxu0 0.0
      %1983 = vmatpush1.msra.mxu0 0.0
      %1984 = vmatprep.subr.mxu0 0.0
      %1985 = vmatpush1.msra.mxu0 0.0
      %1986 = vmatprep.subr.mxu0 0.0
      %1987 = vmatpush1.msra.mxu0 0.0
      %1988 = vmatprep.subr.mxu0 0.0
      %1989 = vmatpush1.msra.mxu0 0.0
      %1990 = vmatprep.subr.mxu0 0.0
      %1991 = vmatpush1.msra.mxu0 0.0
      %1992 = vmatprep.subr.mxu0 0.0
      %1993 = vmatpush1.msra.mxu0 0.0
      %1994 = vmatprep.subr.mxu0 0.0
      %1995 = vmatpush1.msra.mxu0 0.0
      %1996 = vmatprep.subr.mxu0 0.0
      %1997 = vmatpush1.msra.mxu0 0.0
      %1998 = vmatprep.subr.mxu0 0.0
      %1999 = vmatpush1.msra.mxu0 0.0
      %2000 = vmatprep.subr.mxu0 0.0
      %2001 = vmatpush1.msra.mxu0 0.0
      %2002 = vmatprep.subr.mxu0 0.0
      %2003 = vmatpush1.msra.mxu0 0.0
      %2004 = vmatprep.subr.mxu0 0.0
      %2005 = vmatpush1.msra.mxu0 0.0
      %2006 = vmatprep.subr.mxu0 0.0
      %2007 = vmatpush1.msra.mxu0 0.0
      %2008 = vmatprep.subr.mxu0 0.0
      %2009 = vmatpush1.msra.mxu0 0.0
      %2010 = vmatprep.subr.mxu0 0.0
      %2011 = vmatpush1.msra.mxu0 0.0
      %2012 = vmatprep.subr.mxu0 0.0
      %2013 = vmatpush1.msra.mxu0 0.0
      %2014 = vmatprep.subr.mxu0 0.0
      %2015 = vmatpush1.msra.mxu0 0.0
      %2016 = vmatprep.subr.mxu0 0.0
      %2017 = vmatpush1.msra.mxu0 0.0
      %2018 = vmatprep.subr.mxu0 0.0
      %2019 = vmatpush1.msra.mxu0 0.0
      %2020 = vmatprep.subr.mxu0 0.0
      %2021 = vmatpush1.msra.mxu0 0.0
      %2022 = vmatprep.subr.mxu0 0.0
      %2023 = vmatpush1.msra.mxu0 0.0
      %2024 = vmatprep.subr.mxu0 0.0
      %2025 = vmatpush1.msra.mxu0 0.0
      %2026 = vmatprep.subr.mxu0 0.0
      %2027 = vmatpush1.msra.mxu0 0.0
      %2028 = vmatprep.subr.mxu0 0.0
      %2029 = vmatpush1.msra.mxu0 0.0
      %2030 = vmatprep.subr.mxu0 0.0
      %2031 = vmatpush1.msra.mxu0 0.0
      %2032 = vmatprep.subr.mxu0 0.0
      %2033 = vmatpush1.msra.mxu0 0.0
      %2034 = vmatprep.mubr.f32.mxu0 0.0
      %2035 = vmatmul.mubr.f32.gmra.mrb[0].mxu0 %v1959
      %v2036 = vpop.f32.mrb[0].mxu0
      %v2037 = vadd.f32 0.0, %v2036
      %v2038 = vpop.f32.mrb[0].mxu0
      %2039 = vmatprep.mubr.f32.mxu0 0.0
      %2040 = vmatmul.mubr.f32.gmra.mrb[0].mxu0 %v1962
      %v2041 = vpop.f32.mrb[0].mxu0
      %v2042 = vadd.f32 0.0, %v2041
      %v2043 = vpop.f32.mrb[0].mxu0
      %2044 = vmatprep.mubr.f32.mxu0 0.0
      %2045 = vmatmul.mubr.f32.gmra.mrb[0].mxu0 %v1965
      %v2046 = vpop.f32.mrb[0].mxu0
      %v2047 = vadd.f32 0.0, %v2046
      %v2048 = vpop.f32.mrb[0].mxu0
      %2049 = vmatprep.mubr.f32.mxu0 0.0
      %2050 = vmatmul.mubr.f32.gmra.mrb[0].mxu0 %v1968
      %v2051 = vpop.f32.mrb[0].mxu0
      %v2052 = vadd.f32 0.0, %v2051
      %v2053 = vpop.f32.mrb[0].mxu0
      %2054 = vdwg.mxu0
      %s2055 = scalar_lea.vmem %s4, 768
      %v2056 = vld [vmem:[%s2055] sm:$0xff]
      %v2057 = vld [vmem:[%s2055 + $0x8] sm:$0xff]
      %v2058 = vld [vmem:[%s2055 + $0x10] sm:$0xff]
      %v2059 = vld [vmem:[%s2055 + $0x18] sm:$0xff]
      %v2060 = vld [vmem:[%s2055 + $0x20] sm:$0xff]
      %v2061 = vld [vmem:[%s2055 + $0x28] sm:$0xff]
      %v2062 = vld [vmem:[%s2055 + $0x30] sm:$0xff]
      %v2063 = vld [vmem:[%s2055 + $0x38] sm:$0xff]
      %v2064 = vld [vmem:[%s2055 + $0x40] sm:$0xff]
      %v2065 = vld [vmem:[%s2055 + $0x48] sm:$0xff]
      %v2066 = vld [vmem:[%s2055 + $0x50] sm:$0xff]
      %v2067 = vld [vmem:[%s2055 + $0x58] sm:$0xff]
      %v2068 = vld [vmem:[%s2055 + $0x60] sm:$0xff]
      %v2069 = vld [vmem:[%s2055 + $0x68] sm:$0xff]
      %v2070 = vld [vmem:[%s2055 + $0x70] sm:$0xff]
      %v2071 = vld [vmem:[%s2055 + $0x78] sm:$0xff]
      %v2072 = vld [vmem:[%s2055 + $0x80] sm:$0xff]
      %v2073 = vld [vmem:[%s2055 + $0x88] sm:$0xff]
      %v2074 = vld [vmem:[%s2055 + $0x90] sm:$0xff]
      %v2075 = vld [vmem:[%s2055 + $0x98] sm:$0xff]
      %v2076 = vld [vmem:[%s2055 + $0xa0] sm:$0xff]
      %v2077 = vld [vmem:[%s2055 + $0xa8] sm:$0xff]
      %v2078 = vld [vmem:[%s2055 + $0xb0] sm:$0xff]
      %v2079 = vld [vmem:[%s2055 + $0xb8] sm:$0xff]
      %v2081 = vsel %vm930, %v2037, 0
      %v2084 = vsel %vm930, %v2042, 0
      %v2087 = vsel %vm930, %v2047, 0
      %v2090 = vsel %vm930, %v2052, 0
      %2092 = vmatprep.subr.mxu0 %v2057
      %2093 = vmatpush1.msra.mxu0 %v2056
      %2094 = vmatprep.subr.mxu0 %v2060
      %2095 = vmatpush1.msra.mxu0 %v2059
      %2096 = vmatprep.subr.mxu0 %v2063
      %2097 = vmatpush1.msra.mxu0 %v2062
      %2098 = vmatprep.subr.mxu0 %v2066
      %2099 = vmatpush1.msra.mxu0 %v2065
      %2100 = vmatprep.subr.mxu0 %v2069
      %2101 = vmatpush1.msra.mxu0 %v2068
      %2102 = vmatprep.subr.mxu0 %v2072
      %2103 = vmatpush1.msra.mxu0 %v2071
      %2104 = vmatprep.subr.mxu0 %v2075
      %2105 = vmatpush1.msra.mxu0 %v2074
      %2106 = vmatprep.subr.mxu0 %v2078
      %2107 = vmatpush1.msra.mxu0 %v2077
      %2108 = vmatprep.subr.mxu0 0.0
      %2109 = vmatpush1.msra.mxu0 0.0
      %2110 = vmatprep.subr.mxu0 0.0
      %2111 = vmatpush1.msra.mxu0 0.0
      %2112 = vmatprep.subr.mxu0 0.0
      %2113 = vmatpush1.msra.mxu0 0.0
      %2114 = vmatprep.subr.mxu0 0.0
      %2115 = vmatpush1.msra.mxu0 0.0
      %2116 = vmatprep.subr.mxu0 0.0
      %2117 = vmatpush1.msra.mxu0 0.0
      %2118 = vmatprep.subr.mxu0 0.0
      %2119 = vmatpush1.msra.mxu0 0.0
      %2120 = vmatprep.subr.mxu0 0.0
      %2121 = vmatpush1.msra.mxu0 0.0
      %2122 = vmatprep.subr.mxu0 0.0
      %2123 = vmatpush1.msra.mxu0 0.0
      %2124 = vmatprep.subr.mxu0 0.0
      %2125 = vmatpush1.msra.mxu0 0.0
      %2126 = vmatprep.subr.mxu0 0.0
      %2127 = vmatpush1.msra.mxu0 0.0
      %2128 = vmatprep.subr.mxu0 0.0
      %2129 = vmatpush1.msra.mxu0 0.0
      %2130 = vmatprep.subr.mxu0 0.0
      %2131 = vmatpush1.msra.mxu0 0.0
      %2132 = vmatprep.subr.mxu0 0.0
      %2133 = vmatpush1.msra.mxu0 0.0
      %2134 = vmatprep.subr.mxu0 0.0
      %2135 = vmatpush1.msra.mxu0 0.0
      %2136 = vmatprep.subr.mxu0 0.0
      %2137 = vmatpush1.msra.mxu0 0.0
      %2138 = vmatprep.subr.mxu0 0.0
      %2139 = vmatpush1.msra.mxu0 0.0
      %2140 = vmatprep.subr.mxu0 0.0
      %2141 = vmatpush1.msra.mxu0 0.0
      %2142 = vmatprep.subr.mxu0 0.0
      %2143 = vmatpush1.msra.mxu0 0.0
      %2144 = vmatprep.subr.mxu0 0.0
      %2145 = vmatpush1.msra.mxu0 0.0
      %2146 = vmatprep.subr.mxu0 0.0
      %2147 = vmatpush1.msra.mxu0 0.0
      %2148 = vmatprep.subr.mxu0 0.0
      %2149 = vmatpush1.msra.mxu0 0.0
      %2150 = vmatprep.subr.mxu0 0.0
      %2151 = vmatpush1.msra.mxu0 0.0
      %2152 = vmatprep.subr.mxu0 0.0
      %2153 = vmatpush1.msra.mxu0 0.0
      %2154 = vmatprep.subr.mxu0 0.0
      %2155 = vmatpush1.msra.mxu0 0.0
      %2156 = vmatprep.mubr.f32.mxu0 0.0
      %2157 = vmatmul.mubr.f32.gmra.mrb[0].mxu0 %v2081
      %v2158 = vpop.f32.mrb[0].mxu0
      %v2159 = vadd.f32 0.0, %v2158
      %v2160 = vpop.f32.mrb[0].mxu0
      %v2161 = vadd.f32 0.0, %v2160
      %2162 = vmatprep.mubr.f32.mxu0 0.0
      %2163 = vmatmul.mubr.f32.gmra.mrb[0].mxu0 %v2084
      %v2164 = vpop.f32.mrb[0].mxu0
      %v2165 = vadd.f32 0.0, %v2164
      %v2166 = vpop.f32.mrb[0].mxu0
      %v2167 = vadd.f32 0.0, %v2166
      %2168 = vmatprep.mubr.f32.mxu0 0.0
      %2169 = vmatmul.mubr.f32.gmra.mrb[0].mxu0 %v2087
      %v2170 = vpop.f32.mrb[0].mxu0
      %v2171 = vadd.f32 0.0, %v2170
      %v2172 = vpop.f32.mrb[0].mxu0
      %v2173 = vadd.f32 0.0, %v2172
      %2174 = vmatprep.mubr.f32.mxu0 0.0
      %2175 = vmatmul.mubr.f32.gmra.mrb[0].mxu0 %v2090
      %v2176 = vpop.f32.mrb[0].mxu0
      %v2177 = vadd.f32 0.0, %v2176
      %v2178 = vpop.f32.mrb[0].mxu0
      %v2179 = vadd.f32 0.0, %v2178
      %2180 = vdwg.mxu0
      %2181 = vmatprep.subr.mxu0 0.0
      %2182 = vmatpush1.msra.mxu0 %v2058
      %2183 = vmatprep.subr.mxu0 0.0
      %2184 = vmatpush1.msra.mxu0 %v2061
      %2185 = vmatprep.subr.mxu0 0.0
      %2186 = vmatpush1.msra.mxu0 %v2064
      %2187 = vmatprep.subr.mxu0 0.0
      %2188 = vmatpush1.msra.mxu0 %v2067
      %2189 = vmatprep.subr.mxu0 0.0
      %2190 = vmatpush1.msra.mxu0 %v2070
      %2191 = vmatprep.subr.mxu0 0.0
      %2192 = vmatpush1.msra.mxu0 %v2073
      %2193 = vmatprep.subr.mxu0 0.0
      %2194 = vmatpush1.msra.mxu0 %v2076
      %2195 = vmatprep.subr.mxu0 0.0
      %2196 = vmatpush1.msra.mxu0 %v2079
      %2197 = vmatprep.subr.mxu0 0.0
      %2198 = vmatpush1.msra.mxu0 0.0
      %2199 = vmatprep.subr.mxu0 0.0
      %2200 = vmatpush1.msra.mxu0 0.0
      %2201 = vmatprep.subr.mxu0 0.0
      %2202 = vmatpush1.msra.mxu0 0.0
      %2203 = vmatprep.subr.mxu0 0.0
      %2204 = vmatpush1.msra.mxu0 0.0
      %2205 = vmatprep.subr.mxu0 0.0
      %2206 = vmatpush1.msra.mxu0 0.0
      %2207 = vmatprep.subr.mxu0 0.0
      %2208 = vmatpush1.msra.mxu0 0.0
      %2209 = vmatprep.subr.mxu0 0.0
      %2210 = vmatpush1.msra.mxu0 0.0
      %2211 = vmatprep.subr.mxu0 0.0
      %2212 = vmatpush1.msra.mxu0 0.0
      %2213 = vmatprep.subr.mxu0 0.0
      %2214 = vmatpush1.msra.mxu0 0.0
      %2215 = vmatprep.subr.mxu0 0.0
      %2216 = vmatpush1.msra.mxu0 0.0
      %2217 = vmatprep.subr.mxu0 0.0
      %2218 = vmatpush1.msra.mxu0 0.0
      %2219 = vmatprep.subr.mxu0 0.0
      %2220 = vmatpush1.msra.mxu0 0.0
      %2221 = vmatprep.subr.mxu0 0.0
      %2222 = vmatpush1.msra.mxu0 0.0
      %2223 = vmatprep.subr.mxu0 0.0
      %2224 = vmatpush1.msra.mxu0 0.0
      %2225 = vmatprep.subr.mxu0 0.0
      %2226 = vmatpush1.msra.mxu0 0.0
      %2227 = vmatprep.subr.mxu0 0.0
      %2228 = vmatpush1.msra.mxu0 0.0
      %2229 = vmatprep.subr.mxu0 0.0
      %2230 = vmatpush1.msra.mxu0 0.0
      %2231 = vmatprep.subr.mxu0 0.0
      %2232 = vmatpush1.msra.mxu0 0.0
      %2233 = vmatprep.subr.mxu0 0.0
      %2234 = vmatpush1.msra.mxu0 0.0
      %2235 = vmatprep.subr.mxu0 0.0
      %2236 = vmatpush1.msra.mxu0 0.0
      %2237 = vmatprep.subr.mxu0 0.0
      %2238 = vmatpush1.msra.mxu0 0.0
      %2239 = vmatprep.subr.mxu0 0.0
      %2240 = vmatpush1.msra.mxu0 0.0
      %2241 = vmatprep.subr.mxu0 0.0
      %2242 = vmatpush1.msra.mxu0 0.0
      %2243 = vmatprep.subr.mxu0 0.0
      %2244 = vmatpush1.msra.mxu0 0.0
      %2245 = vmatprep.mubr.f32.mxu0 0.0
      %2246 = vmatmul.mubr.f32.gmra.mrb[0].mxu0 %v2081
      %v2247 = vpop.f32.mrb[0].mxu0
      %v2248 = vadd.f32 0.0, %v2247
      %v2249 = vpop.f32.mrb[0].mxu0
      %2250 = vmatprep.mubr.f32.mxu0 0.0
      %2251 = vmatmul.mubr.f32.gmra.mrb[0].mxu0 %v2084
      %v2252 = vpop.f32.mrb[0].mxu0
      %v2253 = vadd.f32 0.0, %v2252
      %v2254 = vpop.f32.mrb[0].mxu0
      %2255 = vmatprep.mubr.f32.mxu0 0.0
      %2256 = vmatmul.mubr.f32.gmra.mrb[0].mxu0 %v2087
      %v2257 = vpop.f32.mrb[0].mxu0
      %v2258 = vadd.f32 0.0, %v2257
      %v2259 = vpop.f32.mrb[0].mxu0
      %2260 = vmatprep.mubr.f32.mxu0 0.0
      %2261 = vmatmul.mubr.f32.gmra.mrb[0].mxu0 %v2090
      %v2262 = vpop.f32.mrb[0].mxu0
      %v2263 = vadd.f32 0.0, %v2262
      %v2264 = vpop.f32.mrb[0].mxu0
      %2265 = vdwg.mxu0
      %v2266 = vadd.f32 %v1941, %v2159
      %v2267 = vadd.f32 %v1942, %v2161
      %v2268 = vadd.f32 %v1943, %v2248
      %v2269 = vadd.f32 %v1944, %v2165
      %v2270 = vadd.f32 %v1945, %v2167
      %v2271 = vadd.f32 %v1946, %v2253
      %v2272 = vadd.f32 %v1947, %v2171
      %v2273 = vadd.f32 %v1948, %v2173
      %v2274 = vadd.f32 %v1949, %v2258
      %v2275 = vadd.f32 %v1950, %v2177
      %v2276 = vadd.f32 %v1951, %v2179
      %v2277 = vadd.f32 %v1952, %v2263
      %s2278 = scalar_lea.vmem %s3, 160
      %v2279 = vld [vmem:[%s2278] sm:$0xff]
      %v2280 = vld [vmem:[%s2278 + $0x8] sm:$0xff]
      %v2281 = vld [vmem:[%s2278 + $0x10] sm:$0xff]
      %v2282 = vld [vmem:[%s2278 + $0x18] sm:$0xff]
      %v2284 = vsel %vm681, %v2279, 0
      %v2287 = vsel %vm681, %v2280, 0
      %v2290 = vsel %vm681, %v2281, 0
      %v2293 = vsel %vm681, %v2282, 0
      %2295 = vmatprep.subr.mxu0 0.0
      %2296 = vmatpush1.msra.mxu0 %v673
      %2297 = vmatprep.subr.mxu0 0.0
      %2298 = vmatpush1.msra.mxu0 %v674
      %2299 = vmatprep.subr.mxu0 0.0
      %2300 = vmatpush1.msra.mxu0 %v675
      %2301 = vmatprep.subr.mxu0 0.0
      %2302 = vmatpush1.msra.mxu0 %v676
      %2303 = vmatprep.subr.mxu0 0.0
      %2304 = vmatpush1.msra.mxu0 0.0
      %2305 = vmatprep.subr.mxu0 0.0
      %2306 = vmatpush1.msra.mxu0 0.0
      %2307 = vmatprep.subr.mxu0 0.0
      %2308 = vmatpush1.msra.mxu0 0.0
      %2309 = vmatprep.subr.mxu0 0.0
      %2310 = vmatpush1.msra.mxu0 0.0
      %2311 = vmatprep.subr.mxu0 0.0
      %2312 = vmatpush1.msra.mxu0 0.0
      %2313 = vmatprep.subr.mxu0 0.0
      %2314 = vmatpush1.msra.mxu0 0.0
      %2315 = vmatprep.subr.mxu0 0.0
      %2316 = vmatpush1.msra.mxu0 0.0
      %2317 = vmatprep.subr.mxu0 0.0
      %2318 = vmatpush1.msra.mxu0 0.0
      %2319 = vmatprep.subr.mxu0 0.0
      %2320 = vmatpush1.msra.mxu0 0.0
      %2321 = vmatprep.subr.mxu0 0.0
      %2322 = vmatpush1.msra.mxu0 0.0
      %2323 = vmatprep.subr.mxu0 0.0
      %2324 = vmatpush1.msra.mxu0 0.0
      %2325 = vmatprep.subr.mxu0 0.0
      %2326 = vmatpush1.msra.mxu0 0.0
      %2327 = vmatprep.subr.mxu0 0.0
      %2328 = vmatpush1.msra.mxu0 0.0
      %2329 = vmatprep.subr.mxu0 0.0
      %2330 = vmatpush1.msra.mxu0 0.0
      %2331 = vmatprep.subr.mxu0 0.0
      %2332 = vmatpush1.msra.mxu0 0.0
      %2333 = vmatprep.subr.mxu0 0.0
      %2334 = vmatpush1.msra.mxu0 0.0
      %2335 = vmatprep.subr.mxu0 0.0
      %2336 = vmatpush1.msra.mxu0 0.0
      %2337 = vmatprep.subr.mxu0 0.0
      %2338 = vmatpush1.msra.mxu0 0.0
      %2339 = vmatprep.subr.mxu0 0.0
      %2340 = vmatpush1.msra.mxu0 0.0
      %2341 = vmatprep.subr.mxu0 0.0
      %2342 = vmatpush1.msra.mxu0 0.0
      %2343 = vmatprep.subr.mxu0 0.0
      %2344 = vmatpush1.msra.mxu0 0.0
      %2345 = vmatprep.subr.mxu0 0.0
      %2346 = vmatpush1.msra.mxu0 0.0
      %2347 = vmatprep.subr.mxu0 0.0
      %2348 = vmatpush1.msra.mxu0 0.0
      %2349 = vmatprep.subr.mxu0 0.0
      %2350 = vmatpush1.msra.mxu0 0.0
      %2351 = vmatprep.subr.mxu0 0.0
      %2352 = vmatpush1.msra.mxu0 0.0
      %2353 = vmatprep.subr.mxu0 0.0
      %2354 = vmatpush1.msra.mxu0 0.0
      %2355 = vmatprep.subr.mxu0 0.0
      %2356 = vmatpush1.msra.mxu0 0.0
      %2357 = vmatprep.subr.mxu0 0.0
      %2358 = vmatpush1.msra.mxu0 0.0
      %2359 = vmatprep.mubr.f32.mxu0 0.0
      %2360 = vmatmul.mubr.f32.gmra.mrb[0].mxu0 %v2284
      %v2361 = vpop.f32.mrb[0].mxu0
      %v2362 = vadd.f32 0.0, %v2361
      %v2363 = vpop.f32.mrb[0].mxu0
      %2364 = vmatprep.mubr.f32.mxu0 0.0
      %2365 = vmatmul.mubr.f32.gmra.mrb[0].mxu0 %v2287
      %v2366 = vpop.f32.mrb[0].mxu0
      %v2367 = vadd.f32 0.0, %v2366
      %v2368 = vpop.f32.mrb[0].mxu0
      %2369 = vmatprep.mubr.f32.mxu0 0.0
      %2370 = vmatmul.mubr.f32.gmra.mrb[0].mxu0 %v2290
      %v2371 = vpop.f32.mrb[0].mxu0
      %v2372 = vadd.f32 0.0, %v2371
      %v2373 = vpop.f32.mrb[0].mxu0
      %2374 = vmatprep.mubr.f32.mxu0 0.0
      %2375 = vmatmul.mubr.f32.gmra.mrb[0].mxu0 %v2293
      %v2376 = vpop.f32.mrb[0].mxu0
      %v2377 = vadd.f32 0.0, %v2376
      %v2378 = vpop.f32.mrb[0].mxu0
      %2379 = vdwg.mxu0
      %s2380 = scalar_lea.vmem %s4, 960
      %v2381 = vld [vmem:[%s2380] sm:$0xff]
      %v2382 = vld [vmem:[%s2380 + $0x8] sm:$0xff]
      %v2383 = vld [vmem:[%s2380 + $0x10] sm:$0xff]
      %v2384 = vld [vmem:[%s2380 + $0x18] sm:$0xff]
      %v2385 = vld [vmem:[%s2380 + $0x20] sm:$0xff]
      %v2386 = vld [vmem:[%s2380 + $0x28] sm:$0xff]
      %v2387 = vld [vmem:[%s2380 + $0x30] sm:$0xff]
      %v2388 = vld [vmem:[%s2380 + $0x38] sm:$0xff]
      %v2389 = vld [vmem:[%s2380 + $0x40] sm:$0xff]
      %v2390 = vld [vmem:[%s2380 + $0x48] sm:$0xff]
      %v2391 = vld [vmem:[%s2380 + $0x50] sm:$0xff]
      %v2392 = vld [vmem:[%s2380 + $0x58] sm:$0xff]
      %v2393 = vld [vmem:[%s2380 + $0x60] sm:$0xff]
      %v2394 = vld [vmem:[%s2380 + $0x68] sm:$0xff]
      %v2395 = vld [vmem:[%s2380 + $0x70] sm:$0xff]
      %v2396 = vld [vmem:[%s2380 + $0x78] sm:$0xff]
      %v2397 = vld [vmem:[%s2380 + $0x80] sm:$0xff]
      %v2398 = vld [vmem:[%s2380 + $0x88] sm:$0xff]
      %v2399 = vld [vmem:[%s2380 + $0x90] sm:$0xff]
      %v2400 = vld [vmem:[%s2380 + $0x98] sm:$0xff]
      %v2401 = vld [vmem:[%s2380 + $0xa0] sm:$0xff]
      %v2402 = vld [vmem:[%s2380 + $0xa8] sm:$0xff]
      %v2403 = vld [vmem:[%s2380 + $0xb0] sm:$0xff]
      %v2404 = vld [vmem:[%s2380 + $0xb8] sm:$0xff]
      %v2406 = vsel %vm930, %v2362, 0
      %v2409 = vsel %vm930, %v2367, 0
      %v2412 = vsel %vm930, %v2372, 0
      %v2415 = vsel %vm930, %v2377, 0
      %2417 = vmatprep.subr.mxu0 %v2382
      %2418 = vmatpush1.msra.mxu0 %v2381
      %2419 = vmatprep.subr.mxu0 %v2385
      %2420 = vmatpush1.msra.mxu0 %v2384
      %2421 = vmatprep.subr.mxu0 %v2388
      %2422 = vmatpush1.msra.mxu0 %v2387
      %2423 = vmatprep.subr.mxu0 %v2391
      %2424 = vmatpush1.msra.mxu0 %v2390
      %2425 = vmatprep.subr.mxu0 %v2394
      %2426 = vmatpush1.msra.mxu0 %v2393
      %2427 = vmatprep.subr.mxu0 %v2397
      %2428 = vmatpush1.msra.mxu0 %v2396
      %2429 = vmatprep.subr.mxu0 %v2400
      %2430 = vmatpush1.msra.mxu0 %v2399
      %2431 = vmatprep.subr.mxu0 %v2403
      %2432 = vmatpush1.msra.mxu0 %v2402
      %2433 = vmatprep.subr.mxu0 0.0
      %2434 = vmatpush1.msra.mxu0 0.0
      %2435 = vmatprep.subr.mxu0 0.0
      %2436 = vmatpush1.msra.mxu0 0.0
      %2437 = vmatprep.subr.mxu0 0.0
      %2438 = vmatpush1.msra.mxu0 0.0
      %2439 = vmatprep.subr.mxu0 0.0
      %2440 = vmatpush1.msra.mxu0 0.0
      %2441 = vmatprep.subr.mxu0 0.0
      %2442 = vmatpush1.msra.mxu0 0.0
      %2443 = vmatprep.subr.mxu0 0.0
      %2444 = vmatpush1.msra.mxu0 0.0
      %2445 = vmatprep.subr.mxu0 0.0
      %2446 = vmatpush1.msra.mxu0 0.0
      %2447 = vmatprep.subr.mxu0 0.0
      %2448 = vmatpush1.msra.mxu0 0.0
      %2449 = vmatprep.subr.mxu0 0.0
      %2450 = vmatpush1.msra.mxu0 0.0
      %2451 = vmatprep.subr.mxu0 0.0
      %2452 = vmatpush1.msra.mxu0 0.0
      %2453 = vmatprep.subr.mxu0 0.0
      %2454 = vmatpush1.msra.mxu0 0.0
      %2455 = vmatprep.subr.mxu0 0.0
      %2456 = vmatpush1.msra.mxu0 0.0
      %2457 = vmatprep.subr.mxu0 0.0
      %2458 = vmatpush1.msra.mxu0 0.0
      %2459 = vmatprep.subr.mxu0 0.0
      %2460 = vmatpush1.msra.mxu0 0.0
      %2461 = vmatprep.subr.mxu0 0.0
      %2462 = vmatpush1.msra.mxu0 0.0
      %2463 = vmatprep.subr.mxu0 0.0
      %2464 = vmatpush1.msra.mxu0 0.0
      %2465 = vmatprep.subr.mxu0 0.0
      %2466 = vmatpush1.msra.mxu0 0.0
      %2467 = vmatprep.subr.mxu0 0.0
      %2468 = vmatpush1.msra.mxu0 0.0
      %2469 = vmatprep.subr.mxu0 0.0
      %2470 = vmatpush1.msra.mxu0 0.0
      %2471 = vmatprep.subr.mxu0 0.0
      %2472 = vmatpush1.msra.mxu0 0.0
      %2473 = vmatprep.subr.mxu0 0.0
      %2474 = vmatpush1.msra.mxu0 0.0
      %2475 = vmatprep.subr.mxu0 0.0
      %2476 = vmatpush1.msra.mxu0 0.0
      %2477 = vmatprep.subr.mxu0 0.0
      %2478 = vmatpush1.msra.mxu0 0.0
      %2479 = vmatprep.subr.mxu0 0.0
      %2480 = vmatpush1.msra.mxu0 0.0
      %2481 = vmatprep.mubr.f32.mxu0 0.0
      %2482 = vmatmul.mubr.f32.gmra.mrb[0].mxu0 %v2406
      %v2483 = vpop.f32.mrb[0].mxu0
      %v2484 = vadd.f32 0.0, %v2483
      %v2485 = vpop.f32.mrb[0].mxu0
      %v2486 = vadd.f32 0.0, %v2485
      %2487 = vmatprep.mubr.f32.mxu0 0.0
      %2488 = vmatmul.mubr.f32.gmra.mrb[0].mxu0 %v2409
      %v2489 = vpop.f32.mrb[0].mxu0
      %v2490 = vadd.f32 0.0, %v2489
      %v2491 = vpop.f32.mrb[0].mxu0
      %v2492 = vadd.f32 0.0, %v2491
      %2493 = vmatprep.mubr.f32.mxu0 0.0
      %2494 = vmatmul.mubr.f32.gmra.mrb[0].mxu0 %v2412
      %v2495 = vpop.f32.mrb[0].mxu0
      %v2496 = vadd.f32 0.0, %v2495
      %v2497 = vpop.f32.mrb[0].mxu0
      %v2498 = vadd.f32 0.0, %v2497
      %2499 = vmatprep.mubr.f32.mxu0 0.0
      %2500 = vmatmul.mubr.f32.gmra.mrb[0].mxu0 %v2415
      %v2501 = vpop.f32.mrb[0].mxu0
      %v2502 = vadd.f32 0.0, %v2501
      %v2503 = vpop.f32.mrb[0].mxu0
      %v2504 = vadd.f32 0.0, %v2503
      %2505 = vdwg.mxu0
      %2506 = vmatprep.subr.mxu0 0.0
      %2507 = vmatpush1.msra.mxu0 %v2383
      %2508 = vmatprep.subr.mxu0 0.0
      %2509 = vmatpush1.msra.mxu0 %v2386
      %2510 = vmatprep.subr.mxu0 0.0
      %2511 = vmatpush1.msra.mxu0 %v2389
      %2512 = vmatprep.subr.mxu0 0.0
      %2513 = vmatpush1.msra.mxu0 %v2392
      %2514 = vmatprep.subr.mxu0 0.0
      %2515 = vmatpush1.msra.mxu0 %v2395
      %2516 = vmatprep.subr.mxu0 0.0
      %2517 = vmatpush1.msra.mxu0 %v2398
      %2518 = vmatprep.subr.mxu0 0.0
      %2519 = vmatpush1.msra.mxu0 %v2401
      %2520 = vmatprep.subr.mxu0 0.0
      %2521 = vmatpush1.msra.mxu0 %v2404
      %2522 = vmatprep.subr.mxu0 0.0
      %2523 = vmatpush1.msra.mxu0 0.0
      %2524 = vmatprep.subr.mxu0 0.0
      %2525 = vmatpush1.msra.mxu0 0.0
      %2526 = vmatprep.subr.mxu0 0.0
      %2527 = vmatpush1.msra.mxu0 0.0
      %2528 = vmatprep.subr.mxu0 0.0
      %2529 = vmatpush1.msra.mxu0 0.0
      %2530 = vmatprep.subr.mxu0 0.0
      %2531 = vmatpush1.msra.mxu0 0.0
      %2532 = vmatprep.subr.mxu0 0.0
      %2533 = vmatpush1.msra.mxu0 0.0
      %2534 = vmatprep.subr.mxu0 0.0
      %2535 = vmatpush1.msra.mxu0 0.0
      %2536 = vmatprep.subr.mxu0 0.0
      %2537 = vmatpush1.msra.mxu0 0.0
      %2538 = vmatprep.subr.mxu0 0.0
      %2539 = vmatpush1.msra.mxu0 0.0
      %2540 = vmatprep.subr.mxu0 0.0
      %2541 = vmatpush1.msra.mxu0 0.0
      %2542 = vmatprep.subr.mxu0 0.0
      %2543 = vmatpush1.msra.mxu0 0.0
      %2544 = vmatprep.subr.mxu0 0.0
      %2545 = vmatpush1.msra.mxu0 0.0
      %2546 = vmatprep.subr.mxu0 0.0
      %2547 = vmatpush1.msra.mxu0 0.0
      %2548 = vmatprep.subr.mxu0 0.0
      %2549 = vmatpush1.msra.mxu0 0.0
      %2550 = vmatprep.subr.mxu0 0.0
      %2551 = vmatpush1.msra.mxu0 0.0
      %2552 = vmatprep.subr.mxu0 0.0
      %2553 = vmatpush1.msra.mxu0 0.0
      %2554 = vmatprep.subr.mxu0 0.0
      %2555 = vmatpush1.msra.mxu0 0.0
      %2556 = vmatprep.subr.mxu0 0.0
      %2557 = vmatpush1.msra.mxu0 0.0
      %2558 = vmatprep.subr.mxu0 0.0
      %2559 = vmatpush1.msra.mxu0 0.0
      %2560 = vmatprep.subr.mxu0 0.0
      %2561 = vmatpush1.msra.mxu0 0.0
      %2562 = vmatprep.subr.mxu0 0.0
      %2563 = vmatpush1.msra.mxu0 0.0
      %2564 = vmatprep.subr.mxu0 0.0
      %2565 = vmatpush1.msra.mxu0 0.0
      %2566 = vmatprep.subr.mxu0 0.0
      %2567 = vmatpush1.msra.mxu0 0.0
      %2568 = vmatprep.subr.mxu0 0.0
      %2569 = vmatpush1.msra.mxu0 0.0
      %2570 = vmatprep.mubr.f32.mxu0 0.0
      %2571 = vmatmul.mubr.f32.gmra.mrb[0].mxu0 %v2406
      %v2572 = vpop.f32.mrb[0].mxu0
      %v2573 = vadd.f32 0.0, %v2572
      %v2574 = vpop.f32.mrb[0].mxu0
      %2575 = vmatprep.mubr.f32.mxu0 0.0
      %2576 = vmatmul.mubr.f32.gmra.mrb[0].mxu0 %v2409
      %v2577 = vpop.f32.mrb[0].mxu0
      %v2578 = vadd.f32 0.0, %v2577
      %v2579 = vpop.f32.mrb[0].mxu0
      %2580 = vmatprep.mubr.f32.mxu0 0.0
      %2581 = vmatmul.mubr.f32.gmra.mrb[0].mxu0 %v2412
      %v2582 = vpop.f32.mrb[0].mxu0
      %v2583 = vadd.f32 0.0, %v2582
      %v2584 = vpop.f32.mrb[0].mxu0
      %2585 = vmatprep.mubr.f32.mxu0 0.0
      %2586 = vmatmul.mubr.f32.gmra.mrb[0].mxu0 %v2415
      %v2587 = vpop.f32.mrb[0].mxu0
      %v2588 = vadd.f32 0.0, %v2587
      %v2589 = vpop.f32.mrb[0].mxu0
      %2590 = vdwg.mxu0
      %v2591 = vadd.f32 %v2266, %v2484
      %v2592 = vadd.f32 %v2267, %v2486
      %v2593 = vadd.f32 %v2268, %v2573
      %v2594 = vadd.f32 %v2269, %v2490
      %v2595 = vadd.f32 %v2270, %v2492
      %v2596 = vadd.f32 %v2271, %v2578
      %v2597 = vadd.f32 %v2272, %v2496
      %v2598 = vadd.f32 %v2273, %v2498
      %v2599 = vadd.f32 %v2274, %v2583
      %v2600 = vadd.f32 %v2275, %v2502
      %v2601 = vadd.f32 %v2276, %v2504
      %v2602 = vadd.f32 %v2277, %v2588
      %s2603 = scalar_lea.vmem %s3, 192
      %v2604 = vld [vmem:[%s2603] sm:$0xff]
      %v2605 = vld [vmem:[%s2603 + $0x8] sm:$0xff]
      %v2606 = vld [vmem:[%s2603 + $0x10] sm:$0xff]
      %v2607 = vld [vmem:[%s2603 + $0x18] sm:$0xff]
      %v2609 = vsel %vm681, %v2604, 0
      %v2612 = vsel %vm681, %v2605, 0
      %v2615 = vsel %vm681, %v2606, 0
      %v2618 = vsel %vm681, %v2607, 0
      %2620 = vmatprep.subr.mxu0 0.0
      %2621 = vmatpush1.msra.mxu0 %v673
      %2622 = vmatprep.subr.mxu0 0.0
      %2623 = vmatpush1.msra.mxu0 %v674
      %2624 = vmatprep.subr.mxu0 0.0
      %2625 = vmatpush1.msra.mxu0 %v675
      %2626 = vmatprep.subr.mxu0 0.0
      %2627 = vmatpush1.msra.mxu0 %v676
      %2628 = vmatprep.subr.mxu0 0.0
      %2629 = vmatpush1.msra.mxu0 0.0
      %2630 = vmatprep.subr.mxu0 0.0
      %2631 = vmatpush1.msra.mxu0 0.0
      %2632 = vmatprep.subr.mxu0 0.0
      %2633 = vmatpush1.msra.mxu0 0.0
      %2634 = vmatprep.subr.mxu0 0.0
      %2635 = vmatpush1.msra.mxu0 0.0
      %2636 = vmatprep.subr.mxu0 0.0
      %2637 = vmatpush1.msra.mxu0 0.0
      %2638 = vmatprep.subr.mxu0 0.0
      %2639 = vmatpush1.msra.mxu0 0.0
      %2640 = vmatprep.subr.mxu0 0.0
      %2641 = vmatpush1.msra.mxu0 0.0
      %2642 = vmatprep.subr.mxu0 0.0
      %2643 = vmatpush1.msra.mxu0 0.0
      %2644 = vmatprep.subr.mxu0 0.0
      %2645 = vmatpush1.msra.mxu0 0.0
      %2646 = vmatprep.subr.mxu0 0.0
      %2647 = vmatpush1.msra.mxu0 0.0
      %2648 = vmatprep.subr.mxu0 0.0
      %2649 = vmatpush1.msra.mxu0 0.0
      %2650 = vmatprep.subr.mxu0 0.0
      %2651 = vmatpush1.msra.mxu0 0.0
      %2652 = vmatprep.subr.mxu0 0.0
      %2653 = vmatpush1.msra.mxu0 0.0
      %2654 = vmatprep.subr.mxu0 0.0
      %2655 = vmatpush1.msra.mxu0 0.0
      %2656 = vmatprep.subr.mxu0 0.0
      %2657 = vmatpush1.msra.mxu0 0.0
      %2658 = vmatprep.subr.mxu0 0.0
      %2659 = vmatpush1.msra.mxu0 0.0
      %2660 = vmatprep.subr.mxu0 0.0
      %2661 = vmatpush1.msra.mxu0 0.0
      %2662 = vmatprep.subr.mxu0 0.0
      %2663 = vmatpush1.msra.mxu0 0.0
      %2664 = vmatprep.subr.mxu0 0.0
      %2665 = vmatpush1.msra.mxu0 0.0
      %2666 = vmatprep.subr.mxu0 0.0
      %2667 = vmatpush1.msra.mxu0 0.0
      %2668 = vmatprep.subr.mxu0 0.0
      %2669 = vmatpush1.msra.mxu0 0.0
      %2670 = vmatprep.subr.mxu0 0.0
      %2671 = vmatpush1.msra.mxu0 0.0
      %2672 = vmatprep.subr.mxu0 0.0
      %2673 = vmatpush1.msra.mxu0 0.0
      %2674 = vmatprep.subr.mxu0 0.0
      %2675 = vmatpush1.msra.mxu0 0.0
      %2676 = vmatprep.subr.mxu0 0.0
      %2677 = vmatpush1.msra.mxu0 0.0
      %2678 = vmatprep.subr.mxu0 0.0
      %2679 = vmatpush1.msra.mxu0 0.0
      %2680 = vmatprep.subr.mxu0 0.0
      %2681 = vmatpush1.msra.mxu0 0.0
      %2682 = vmatprep.subr.mxu0 0.0
      %2683 = vmatpush1.msra.mxu0 0.0
      %2684 = vmatprep.mubr.f32.mxu0 0.0
      %2685 = vmatmul.mubr.f32.gmra.mrb[0].mxu0 %v2609
      %v2686 = vpop.f32.mrb[0].mxu0
      %v2687 = vadd.f32 0.0, %v2686
      %v2688 = vpop.f32.mrb[0].mxu0
      %2689 = vmatprep.mubr.f32.mxu0 0.0
      %2690 = vmatmul.mubr.f32.gmra.mrb[0].mxu0 %v2612
      %v2691 = vpop.f32.mrb[0].mxu0
      %v2692 = vadd.f32 0.0, %v2691
      %v2693 = vpop.f32.mrb[0].mxu0
      %2694 = vmatprep.mubr.f32.mxu0 0.0
      %2695 = vmatmul.mubr.f32.gmra.mrb[0].mxu0 %v2615
      %v2696 = vpop.f32.mrb[0].mxu0
      %v2697 = vadd.f32 0.0, %v2696
      %v2698 = vpop.f32.mrb[0].mxu0
      %2699 = vmatprep.mubr.f32.mxu0 0.0
      %2700 = vmatmul.mubr.f32.gmra.mrb[0].mxu0 %v2618
      %v2701 = vpop.f32.mrb[0].mxu0
      %v2702 = vadd.f32 0.0, %v2701
      %v2703 = vpop.f32.mrb[0].mxu0
      %2704 = vdwg.mxu0
      %s2705 = scalar_lea.vmem %s4, 1152
      %v2706 = vld [vmem:[%s2705] sm:$0xff]
      %v2707 = vld [vmem:[%s2705 + $0x8] sm:$0xff]
      %v2708 = vld [vmem:[%s2705 + $0x10] sm:$0xff]
      %v2709 = vld [vmem:[%s2705 + $0x18] sm:$0xff]
      %v2710 = vld [vmem:[%s2705 + $0x20] sm:$0xff]
      %v2711 = vld [vmem:[%s2705 + $0x28] sm:$0xff]
      %v2712 = vld [vmem:[%s2705 + $0x30] sm:$0xff]
      %v2713 = vld [vmem:[%s2705 + $0x38] sm:$0xff]
      %v2714 = vld [vmem:[%s2705 + $0x40] sm:$0xff]
      %v2715 = vld [vmem:[%s2705 + $0x48] sm:$0xff]
      %v2716 = vld [vmem:[%s2705 + $0x50] sm:$0xff]
      %v2717 = vld [vmem:[%s2705 + $0x58] sm:$0xff]
      %v2718 = vld [vmem:[%s2705 + $0x60] sm:$0xff]
      %v2719 = vld [vmem:[%s2705 + $0x68] sm:$0xff]
      %v2720 = vld [vmem:[%s2705 + $0x70] sm:$0xff]
      %v2721 = vld [vmem:[%s2705 + $0x78] sm:$0xff]
      %v2722 = vld [vmem:[%s2705 + $0x80] sm:$0xff]
      %v2723 = vld [vmem:[%s2705 + $0x88] sm:$0xff]
      %v2724 = vld [vmem:[%s2705 + $0x90] sm:$0xff]
      %v2725 = vld [vmem:[%s2705 + $0x98] sm:$0xff]
      %v2726 = vld [vmem:[%s2705 + $0xa0] sm:$0xff]
      %v2727 = vld [vmem:[%s2705 + $0xa8] sm:$0xff]
      %v2728 = vld [vmem:[%s2705 + $0xb0] sm:$0xff]
      %v2729 = vld [vmem:[%s2705 + $0xb8] sm:$0xff]
      %v2731 = vsel %vm930, %v2687, 0
      %v2734 = vsel %vm930, %v2692, 0
      %v2737 = vsel %vm930, %v2697, 0
      %v2740 = vsel %vm930, %v2702, 0
      %2742 = vmatprep.subr.mxu0 %v2707
      %2743 = vmatpush1.msra.mxu0 %v2706
      %2744 = vmatprep.subr.mxu0 %v2710
      %2745 = vmatpush1.msra.mxu0 %v2709
      %2746 = vmatprep.subr.mxu0 %v2713
      %2747 = vmatpush1.msra.mxu0 %v2712
      %2748 = vmatprep.subr.mxu0 %v2716
      %2749 = vmatpush1.msra.mxu0 %v2715
      %2750 = vmatprep.subr.mxu0 %v2719
      %2751 = vmatpush1.msra.mxu0 %v2718
      %2752 = vmatprep.subr.mxu0 %v2722
      %2753 = vmatpush1.msra.mxu0 %v2721
      %2754 = vmatprep.subr.mxu0 %v2725
      %2755 = vmatpush1.msra.mxu0 %v2724
      %2756 = vmatprep.subr.mxu0 %v2728
      %2757 = vmatpush1.msra.mxu0 %v2727
      %2758 = vmatprep.subr.mxu0 0.0
      %2759 = vmatpush1.msra.mxu0 0.0
      %2760 = vmatprep.subr.mxu0 0.0
      %2761 = vmatpush1.msra.mxu0 0.0
      %2762 = vmatprep.subr.mxu0 0.0
      %2763 = vmatpush1.msra.mxu0 0.0
      %2764 = vmatprep.subr.mxu0 0.0
      %2765 = vmatpush1.msra.mxu0 0.0
      %2766 = vmatprep.subr.mxu0 0.0
      %2767 = vmatpush1.msra.mxu0 0.0
      %2768 = vmatprep.subr.mxu0 0.0
      %2769 = vmatpush1.msra.mxu0 0.0
      %2770 = vmatprep.subr.mxu0 0.0
      %2771 = vmatpush1.msra.mxu0 0.0
      %2772 = vmatprep.subr.mxu0 0.0
      %2773 = vmatpush1.msra.mxu0 0.0
      %2774 = vmatprep.subr.mxu0 0.0
      %2775 = vmatpush1.msra.mxu0 0.0
      %2776 = vmatprep.subr.mxu0 0.0
      %2777 = vmatpush1.msra.mxu0 0.0
      %2778 = vmatprep.subr.mxu0 0.0
      %2779 = vmatpush1.msra.mxu0 0.0
      %2780 = vmatprep.subr.mxu0 0.0
      %2781 = vmatpush1.msra.mxu0 0.0
      %2782 = vmatprep.subr.mxu0 0.0
      %2783 = vmatpush1.msra.mxu0 0.0
      %2784 = vmatprep.subr.mxu0 0.0
      %2785 = vmatpush1.msra.mxu0 0.0
      %2786 = vmatprep.subr.mxu0 0.0
      %2787 = vmatpush1.msra.mxu0 0.0
      %2788 = vmatprep.subr.mxu0 0.0
      %2789 = vmatpush1.msra.mxu0 0.0
      %2790 = vmatprep.subr.mxu0 0.0
      %2791 = vmatpush1.msra.mxu0 0.0
      %2792 = vmatprep.subr.mxu0 0.0
      %2793 = vmatpush1.msra.mxu0 0.0
      %2794 = vmatprep.subr.mxu0 0.0
      %2795 = vmatpush1.msra.mxu0 0.0
      %2796 = vmatprep.subr.mxu0 0.0
      %2797 = vmatpush1.msra.mxu0 0.0
      %2798 = vmatprep.subr.mxu0 0.0
      %2799 = vmatpush1.msra.mxu0 0.0
      %2800 = vmatprep.subr.mxu0 0.0
      %2801 = vmatpush1.msra.mxu0 0.0
      %2802 = vmatprep.subr.mxu0 0.0
      %2803 = vmatpush1.msra.mxu0 0.0
      %2804 = vmatprep.subr.mxu0 0.0
      %2805 = vmatpush1.msra.mxu0 0.0
      %2806 = vmatprep.mubr.f32.mxu0 0.0
      %2807 = vmatmul.mubr.f32.gmra.mrb[0].mxu0 %v2731
      %v2808 = vpop.f32.mrb[0].mxu0
      %v2809 = vadd.f32 0.0, %v2808
      %v2810 = vpop.f32.mrb[0].mxu0
      %v2811 = vadd.f32 0.0, %v2810
      %2812 = vmatprep.mubr.f32.mxu0 0.0
      %2813 = vmatmul.mubr.f32.gmra.mrb[0].mxu0 %v2734
      %v2814 = vpop.f32.mrb[0].mxu0
      %v2815 = vadd.f32 0.0, %v2814
      %v2816 = vpop.f32.mrb[0].mxu0
      %v2817 = vadd.f32 0.0, %v2816
      %2818 = vmatprep.mubr.f32.mxu0 0.0
      %2819 = vmatmul.mubr.f32.gmra.mrb[0].mxu0 %v2737
      %v2820 = vpop.f32.mrb[0].mxu0
      %v2821 = vadd.f32 0.0, %v2820
      %v2822 = vpop.f32.mrb[0].mxu0
      %v2823 = vadd.f32 0.0, %v2822
      %2824 = vmatprep.mubr.f32.mxu0 0.0
      %2825 = vmatmul.mubr.f32.gmra.mrb[0].mxu0 %v2740
      %v2826 = vpop.f32.mrb[0].mxu0
      %v2827 = vadd.f32 0.0, %v2826
      %v2828 = vpop.f32.mrb[0].mxu0
      %v2829 = vadd.f32 0.0, %v2828
      %2830 = vdwg.mxu0
      %2831 = vmatprep.subr.mxu0 0.0
      %2832 = vmatpush1.msra.mxu0 %v2708
      %2833 = vmatprep.subr.mxu0 0.0
      %2834 = vmatpush1.msra.mxu0 %v2711
      %2835 = vmatprep.subr.mxu0 0.0
      %2836 = vmatpush1.msra.mxu0 %v2714
      %2837 = vmatprep.subr.mxu0 0.0
      %2838 = vmatpush1.msra.mxu0 %v2717
      %2839 = vmatprep.subr.mxu0 0.0
      %2840 = vmatpush1.msra.mxu0 %v2720
      %2841 = vmatprep.subr.mxu0 0.0
      %2842 = vmatpush1.msra.mxu0 %v2723
      %2843 = vmatprep.subr.mxu0 0.0
      %2844 = vmatpush1.msra.mxu0 %v2726
      %2845 = vmatprep.subr.mxu0 0.0
      %2846 = vmatpush1.msra.mxu0 %v2729
      %2847 = vmatprep.subr.mxu0 0.0
      %2848 = vmatpush1.msra.mxu0 0.0
      %2849 = vmatprep.subr.mxu0 0.0
      %2850 = vmatpush1.msra.mxu0 0.0
      %2851 = vmatprep.subr.mxu0 0.0
      %2852 = vmatpush1.msra.mxu0 0.0
      %2853 = vmatprep.subr.mxu0 0.0
      %2854 = vmatpush1.msra.mxu0 0.0
      %2855 = vmatprep.subr.mxu0 0.0
      %2856 = vmatpush1.msra.mxu0 0.0
      %2857 = vmatprep.subr.mxu0 0.0
      %2858 = vmatpush1.msra.mxu0 0.0
      %2859 = vmatprep.subr.mxu0 0.0
      %2860 = vmatpush1.msra.mxu0 0.0
      %2861 = vmatprep.subr.mxu0 0.0
      %2862 = vmatpush1.msra.mxu0 0.0
      %2863 = vmatprep.subr.mxu0 0.0
      %2864 = vmatpush1.msra.mxu0 0.0
      %2865 = vmatprep.subr.mxu0 0.0
      %2866 = vmatpush1.msra.mxu0 0.0
      %2867 = vmatprep.subr.mxu0 0.0
      %2868 = vmatpush1.msra.mxu0 0.0
      %2869 = vmatprep.subr.mxu0 0.0
      %2870 = vmatpush1.msra.mxu0 0.0
      %2871 = vmatprep.subr.mxu0 0.0
      %2872 = vmatpush1.msra.mxu0 0.0
      %2873 = vmatprep.subr.mxu0 0.0
      %2874 = vmatpush1.msra.mxu0 0.0
      %2875 = vmatprep.subr.mxu0 0.0
      %2876 = vmatpush1.msra.mxu0 0.0
      %2877 = vmatprep.subr.mxu0 0.0
      %2878 = vmatpush1.msra.mxu0 0.0
      %2879 = vmatprep.subr.mxu0 0.0
      %2880 = vmatpush1.msra.mxu0 0.0
      %2881 = vmatprep.subr.mxu0 0.0
      %2882 = vmatpush1.msra.mxu0 0.0
      %2883 = vmatprep.subr.mxu0 0.0
      %2884 = vmatpush1.msra.mxu0 0.0
      %2885 = vmatprep.subr.mxu0 0.0
      %2886 = vmatpush1.msra.mxu0 0.0
      %2887 = vmatprep.subr.mxu0 0.0
      %2888 = vmatpush1.msra.mxu0 0.0
      %2889 = vmatprep.subr.mxu0 0.0
      %2890 = vmatpush1.msra.mxu0 0.0
      %2891 = vmatprep.subr.mxu0 0.0
      %2892 = vmatpush1.msra.mxu0 0.0
      %2893 = vmatprep.subr.mxu0 0.0
      %2894 = vmatpush1.msra.mxu0 0.0
      %2895 = vmatprep.mubr.f32.mxu0 0.0
      %2896 = vmatmul.mubr.f32.gmra.mrb[0].mxu0 %v2731
      %v2897 = vpop.f32.mrb[0].mxu0
      %v2898 = vadd.f32 0.0, %v2897
      %v2899 = vpop.f32.mrb[0].mxu0
      %2900 = vmatprep.mubr.f32.mxu0 0.0
      %2901 = vmatmul.mubr.f32.gmra.mrb[0].mxu0 %v2734
      %v2902 = vpop.f32.mrb[0].mxu0
      %v2903 = vadd.f32 0.0, %v2902
      %v2904 = vpop.f32.mrb[0].mxu0
      %2905 = vmatprep.mubr.f32.mxu0 0.0
      %2906 = vmatmul.mubr.f32.gmra.mrb[0].mxu0 %v2737
      %v2907 = vpop.f32.mrb[0].mxu0
      %v2908 = vadd.f32 0.0, %v2907
      %v2909 = vpop.f32.mrb[0].mxu0
      %2910 = vmatprep.mubr.f32.mxu0 0.0
      %2911 = vmatmul.mubr.f32.gmra.mrb[0].mxu0 %v2740
      %v2912 = vpop.f32.mrb[0].mxu0
      %v2913 = vadd.f32 0.0, %v2912
      %v2914 = vpop.f32.mrb[0].mxu0
      %2915 = vdwg.mxu0
      %v2916 = vadd.f32 %v2591, %v2809
      %v2917 = vadd.f32 %v2592, %v2811
      %v2918 = vadd.f32 %v2593, %v2898
      %v2919 = vadd.f32 %v2594, %v2815
      %v2920 = vadd.f32 %v2595, %v2817
      %v2921 = vadd.f32 %v2596, %v2903
      %v2922 = vadd.f32 %v2597, %v2821
      %v2923 = vadd.f32 %v2598, %v2823
      %v2924 = vadd.f32 %v2599, %v2908
      %v2925 = vadd.f32 %v2600, %v2827
      %v2926 = vadd.f32 %v2601, %v2829
      %v2927 = vadd.f32 %v2602, %v2913
      %s2928 = scalar_lea.vmem %s3, 224
      %v2929 = vld [vmem:[%s2928] sm:$0xff]
      %v2930 = vld [vmem:[%s2928 + $0x8] sm:$0xff]
      %v2931 = vld [vmem:[%s2928 + $0x10] sm:$0xff]
      %v2932 = vld [vmem:[%s2928 + $0x18] sm:$0xff]
      %v2934 = vsel %vm681, %v2929, 0
      %v2937 = vsel %vm681, %v2930, 0
      %v2940 = vsel %vm681, %v2931, 0
      %v2943 = vsel %vm681, %v2932, 0
      %2945 = vmatprep.subr.mxu0 0.0
      %2946 = vmatpush1.msra.mxu0 %v673
      %2947 = vmatprep.subr.mxu0 0.0
      %2948 = vmatpush1.msra.mxu0 %v674
      %2949 = vmatprep.subr.mxu0 0.0
      %2950 = vmatpush1.msra.mxu0 %v675
      %2951 = vmatprep.subr.mxu0 0.0
      %2952 = vmatpush1.msra.mxu0 %v676
      %2953 = vmatprep.subr.mxu0 0.0
      %2954 = vmatpush1.msra.mxu0 0.0
      %2955 = vmatprep.subr.mxu0 0.0
      %2956 = vmatpush1.msra.mxu0 0.0
      %2957 = vmatprep.subr.mxu0 0.0
      %2958 = vmatpush1.msra.mxu0 0.0
      %2959 = vmatprep.subr.mxu0 0.0
      %2960 = vmatpush1.msra.mxu0 0.0
      %2961 = vmatprep.subr.mxu0 0.0
      %2962 = vmatpush1.msra.mxu0 0.0
      %2963 = vmatprep.subr.mxu0 0.0
      %2964 = vmatpush1.msra.mxu0 0.0
      %2965 = vmatprep.subr.mxu0 0.0
      %2966 = vmatpush1.msra.mxu0 0.0
      %2967 = vmatprep.subr.mxu0 0.0
      %2968 = vmatpush1.msra.mxu0 0.0
      %2969 = vmatprep.subr.mxu0 0.0
      %2970 = vmatpush1.msra.mxu0 0.0
      %2971 = vmatprep.subr.mxu0 0.0
      %2972 = vmatpush1.msra.mxu0 0.0
      %2973 = vmatprep.subr.mxu0 0.0
      %2974 = vmatpush1.msra.mxu0 0.0
      %2975 = vmatprep.subr.mxu0 0.0
      %2976 = vmatpush1.msra.mxu0 0.0
      %2977 = vmatprep.subr.mxu0 0.0
      %2978 = vmatpush1.msra.mxu0 0.0
      %2979 = vmatprep.subr.mxu0 0.0
      %2980 = vmatpush1.msra.mxu0 0.0
      %2981 = vmatprep.subr.mxu0 0.0
      %2982 = vmatpush1.msra.mxu0 0.0
      %2983 = vmatprep.subr.mxu0 0.0
      %2984 = vmatpush1.msra.mxu0 0.0
      %2985 = vmatprep.subr.mxu0 0.0
      %2986 = vmatpush1.msra.mxu0 0.0
      %2987 = vmatprep.subr.mxu0 0.0
      %2988 = vmatpush1.msra.mxu0 0.0
      %2989 = vmatprep.subr.mxu0 0.0
      %2990 = vmatpush1.msra.mxu0 0.0
      %2991 = vmatprep.subr.mxu0 0.0
      %2992 = vmatpush1.msra.mxu0 0.0
      %2993 = vmatprep.subr.mxu0 0.0
      %2994 = vmatpush1.msra.mxu0 0.0
      %2995 = vmatprep.subr.mxu0 0.0
      %2996 = vmatpush1.msra.mxu0 0.0
      %2997 = vmatprep.subr.mxu0 0.0
      %2998 = vmatpush1.msra.mxu0 0.0
      %2999 = vmatprep.subr.mxu0 0.0
      %3000 = vmatpush1.msra.mxu0 0.0
      %3001 = vmatprep.subr.mxu0 0.0
      %3002 = vmatpush1.msra.mxu0 0.0
      %3003 = vmatprep.subr.mxu0 0.0
      %3004 = vmatpush1.msra.mxu0 0.0
      %3005 = vmatprep.subr.mxu0 0.0
      %3006 = vmatpush1.msra.mxu0 0.0
      %3007 = vmatprep.subr.mxu0 0.0
      %3008 = vmatpush1.msra.mxu0 0.0
      %3009 = vmatprep.mubr.f32.mxu0 0.0
      %3010 = vmatmul.mubr.f32.gmra.mrb[0].mxu0 %v2934
      %v3011 = vpop.f32.mrb[0].mxu0
      %v3012 = vadd.f32 0.0, %v3011
      %v3013 = vpop.f32.mrb[0].mxu0
      %3014 = vmatprep.mubr.f32.mxu0 0.0
      %3015 = vmatmul.mubr.f32.gmra.mrb[0].mxu0 %v2937
      %v3016 = vpop.f32.mrb[0].mxu0
      %v3017 = vadd.f32 0.0, %v3016
      %v3018 = vpop.f32.mrb[0].mxu0
      %3019 = vmatprep.mubr.f32.mxu0 0.0
      %3020 = vmatmul.mubr.f32.gmra.mrb[0].mxu0 %v2940
      %v3021 = vpop.f32.mrb[0].mxu0
      %v3022 = vadd.f32 0.0, %v3021
      %v3023 = vpop.f32.mrb[0].mxu0
      %3024 = vmatprep.mubr.f32.mxu0 0.0
      %3025 = vmatmul.mubr.f32.gmra.mrb[0].mxu0 %v2943
      %v3026 = vpop.f32.mrb[0].mxu0
      %v3027 = vadd.f32 0.0, %v3026
      %v3028 = vpop.f32.mrb[0].mxu0
      %3029 = vdwg.mxu0
      %s3030 = scalar_lea.vmem %s4, 1344
      %v3031 = vld [vmem:[%s3030] sm:$0xff]
      %v3032 = vld [vmem:[%s3030 + $0x8] sm:$0xff]
      %v3033 = vld [vmem:[%s3030 + $0x10] sm:$0xff]
      %v3034 = vld [vmem:[%s3030 + $0x18] sm:$0xff]
      %v3035 = vld [vmem:[%s3030 + $0x20] sm:$0xff]
      %v3036 = vld [vmem:[%s3030 + $0x28] sm:$0xff]
      %v3037 = vld [vmem:[%s3030 + $0x30] sm:$0xff]
      %v3038 = vld [vmem:[%s3030 + $0x38] sm:$0xff]
      %v3039 = vld [vmem:[%s3030 + $0x40] sm:$0xff]
      %v3040 = vld [vmem:[%s3030 + $0x48] sm:$0xff]
      %v3041 = vld [vmem:[%s3030 + $0x50] sm:$0xff]
      %v3042 = vld [vmem:[%s3030 + $0x58] sm:$0xff]
      %v3043 = vld [vmem:[%s3030 + $0x60] sm:$0xff]
      %v3044 = vld [vmem:[%s3030 + $0x68] sm:$0xff]
      %v3045 = vld [vmem:[%s3030 + $0x70] sm:$0xff]
      %v3046 = vld [vmem:[%s3030 + $0x78] sm:$0xff]
      %v3047 = vld [vmem:[%s3030 + $0x80] sm:$0xff]
      %v3048 = vld [vmem:[%s3030 + $0x88] sm:$0xff]
      %v3049 = vld [vmem:[%s3030 + $0x90] sm:$0xff]
      %v3050 = vld [vmem:[%s3030 + $0x98] sm:$0xff]
      %v3051 = vld [vmem:[%s3030 + $0xa0] sm:$0xff]
      %v3052 = vld [vmem:[%s3030 + $0xa8] sm:$0xff]
      %v3053 = vld [vmem:[%s3030 + $0xb0] sm:$0xff]
      %v3054 = vld [vmem:[%s3030 + $0xb8] sm:$0xff]
      %v3056 = vsel %vm930, %v3012, 0
      %v3059 = vsel %vm930, %v3017, 0
      %v3062 = vsel %vm930, %v3022, 0
      %v3065 = vsel %vm930, %v3027, 0
      %3067 = vmatprep.subr.mxu0 %v3032
      %3068 = vmatpush1.msra.mxu0 %v3031
      %3069 = vmatprep.subr.mxu0 %v3035
      %3070 = vmatpush1.msra.mxu0 %v3034
      %3071 = vmatprep.subr.mxu0 %v3038
      %3072 = vmatpush1.msra.mxu0 %v3037
      %3073 = vmatprep.subr.mxu0 %v3041
      %3074 = vmatpush1.msra.mxu0 %v3040
      %3075 = vmatprep.subr.mxu0 %v3044
      %3076 = vmatpush1.msra.mxu0 %v3043
      %3077 = vmatprep.subr.mxu0 %v3047
      %3078 = vmatpush1.msra.mxu0 %v3046
      %3079 = vmatprep.subr.mxu0 %v3050
      %3080 = vmatpush1.msra.mxu0 %v3049
      %3081 = vmatprep.subr.mxu0 %v3053
      %3082 = vmatpush1.msra.mxu0 %v3052
      %3083 = vmatprep.subr.mxu0 0.0
      %3084 = vmatpush1.msra.mxu0 0.0
      %3085 = vmatprep.subr.mxu0 0.0
      %3086 = vmatpush1.msra.mxu0 0.0
      %3087 = vmatprep.subr.mxu0 0.0
      %3088 = vmatpush1.msra.mxu0 0.0
      %3089 = vmatprep.subr.mxu0 0.0
      %3090 = vmatpush1.msra.mxu0 0.0
      %3091 = vmatprep.subr.mxu0 0.0
      %3092 = vmatpush1.msra.mxu0 0.0
      %3093 = vmatprep.subr.mxu0 0.0
      %3094 = vmatpush1.msra.mxu0 0.0
      %3095 = vmatprep.subr.mxu0 0.0
      %3096 = vmatpush1.msra.mxu0 0.0
      %3097 = vmatprep.subr.mxu0 0.0
      %3098 = vmatpush1.msra.mxu0 0.0
      %3099 = vmatprep.subr.mxu0 0.0
      %3100 = vmatpush1.msra.mxu0 0.0
      %3101 = vmatprep.subr.mxu0 0.0
      %3102 = vmatpush1.msra.mxu0 0.0
      %3103 = vmatprep.subr.mxu0 0.0
      %3104 = vmatpush1.msra.mxu0 0.0
      %3105 = vmatprep.subr.mxu0 0.0
      %3106 = vmatpush1.msra.mxu0 0.0
      %3107 = vmatprep.subr.mxu0 0.0
      %3108 = vmatpush1.msra.mxu0 0.0
      %3109 = vmatprep.subr.mxu0 0.0
      %3110 = vmatpush1.msra.mxu0 0.0
      %3111 = vmatprep.subr.mxu0 0.0
      %3112 = vmatpush1.msra.mxu0 0.0
      %3113 = vmatprep.subr.mxu0 0.0
      %3114 = vmatpush1.msra.mxu0 0.0
      %3115 = vmatprep.subr.mxu0 0.0
      %3116 = vmatpush1.msra.mxu0 0.0
      %3117 = vmatprep.subr.mxu0 0.0
      %3118 = vmatpush1.msra.mxu0 0.0
      %3119 = vmatprep.subr.mxu0 0.0
      %3120 = vmatpush1.msra.mxu0 0.0
      %3121 = vmatprep.subr.mxu0 0.0
      %3122 = vmatpush1.msra.mxu0 0.0
      %3123 = vmatprep.subr.mxu0 0.0
      %3124 = vmatpush1.msra.mxu0 0.0
      %3125 = vmatprep.subr.mxu0 0.0
      %3126 = vmatpush1.msra.mxu0 0.0
      %3127 = vmatprep.subr.mxu0 0.0
      %3128 = vmatpush1.msra.mxu0 0.0
      %3129 = vmatprep.subr.mxu0 0.0
      %3130 = vmatpush1.msra.mxu0 0.0
      %3131 = vmatprep.mubr.f32.mxu0 0.0
      %3132 = vmatmul.mubr.f32.gmra.mrb[0].mxu0 %v3056
      %v3133 = vpop.f32.mrb[0].mxu0
      %v3134 = vadd.f32 0.0, %v3133
      %v3135 = vpop.f32.mrb[0].mxu0
      %v3136 = vadd.f32 0.0, %v3135
      %3137 = vmatprep.mubr.f32.mxu0 0.0
      %3138 = vmatmul.mubr.f32.gmra.mrb[0].mxu0 %v3059
      %v3139 = vpop.f32.mrb[0].mxu0
      %v3140 = vadd.f32 0.0, %v3139
      %v3141 = vpop.f32.mrb[0].mxu0
      %v3142 = vadd.f32 0.0, %v3141
      %3143 = vmatprep.mubr.f32.mxu0 0.0
      %3144 = vmatmul.mubr.f32.gmra.mrb[0].mxu0 %v3062
      %v3145 = vpop.f32.mrb[0].mxu0
      %v3146 = vadd.f32 0.0, %v3145
      %v3147 = vpop.f32.mrb[0].mxu0
      %v3148 = vadd.f32 0.0, %v3147
      %3149 = vmatprep.mubr.f32.mxu0 0.0
      %3150 = vmatmul.mubr.f32.gmra.mrb[0].mxu0 %v3065
      %v3151 = vpop.f32.mrb[0].mxu0
      %v3152 = vadd.f32 0.0, %v3151
      %v3153 = vpop.f32.mrb[0].mxu0
      %v3154 = vadd.f32 0.0, %v3153
      %3155 = vdwg.mxu0
      %3156 = vmatprep.subr.mxu0 0.0
      %3157 = vmatpush1.msra.mxu0 %v3033
      %3158 = vmatprep.subr.mxu0 0.0
      %3159 = vmatpush1.msra.mxu0 %v3036
      %3160 = vmatprep.subr.mxu0 0.0
      %3161 = vmatpush1.msra.mxu0 %v3039
      %3162 = vmatprep.subr.mxu0 0.0
      %3163 = vmatpush1.msra.mxu0 %v3042
      %3164 = vmatprep.subr.mxu0 0.0
      %3165 = vmatpush1.msra.mxu0 %v3045
      %3166 = vmatprep.subr.mxu0 0.0
      %3167 = vmatpush1.msra.mxu0 %v3048
      %3168 = vmatprep.subr.mxu0 0.0
      %3169 = vmatpush1.msra.mxu0 %v3051
      %3170 = vmatprep.subr.mxu0 0.0
      %3171 = vmatpush1.msra.mxu0 %v3054
      %3172 = vmatprep.subr.mxu0 0.0
      %3173 = vmatpush1.msra.mxu0 0.0
      %3174 = vmatprep.subr.mxu0 0.0
      %3175 = vmatpush1.msra.mxu0 0.0
      %3176 = vmatprep.subr.mxu0 0.0
      %3177 = vmatpush1.msra.mxu0 0.0
      %3178 = vmatprep.subr.mxu0 0.0
      %3179 = vmatpush1.msra.mxu0 0.0
      %3180 = vmatprep.subr.mxu0 0.0
      %3181 = vmatpush1.msra.mxu0 0.0
      %3182 = vmatprep.subr.mxu0 0.0
      %3183 = vmatpush1.msra.mxu0 0.0
      %3184 = vmatprep.subr.mxu0 0.0
      %3185 = vmatpush1.msra.mxu0 0.0
      %3186 = vmatprep.subr.mxu0 0.0
      %3187 = vmatpush1.msra.mxu0 0.0
      %3188 = vmatprep.subr.mxu0 0.0
      %3189 = vmatpush1.msra.mxu0 0.0
      %3190 = vmatprep.subr.mxu0 0.0
      %3191 = vmatpush1.msra.mxu0 0.0
      %3192 = vmatprep.subr.mxu0 0.0
      %3193 = vmatpush1.msra.mxu0 0.0
      %3194 = vmatprep.subr.mxu0 0.0
      %3195 = vmatpush1.msra.mxu0 0.0
      %3196 = vmatprep.subr.mxu0 0.0
      %3197 = vmatpush1.msra.mxu0 0.0
      %3198 = vmatprep.subr.mxu0 0.0
      %3199 = vmatpush1.msra.mxu0 0.0
      %3200 = vmatprep.subr.mxu0 0.0
      %3201 = vmatpush1.msra.mxu0 0.0
      %3202 = vmatprep.subr.mxu0 0.0
      %3203 = vmatpush1.msra.mxu0 0.0
      %3204 = vmatprep.subr.mxu0 0.0
      %3205 = vmatpush1.msra.mxu0 0.0
      %3206 = vmatprep.subr.mxu0 0.0
      %3207 = vmatpush1.msra.mxu0 0.0
      %3208 = vmatprep.subr.mxu0 0.0
      %3209 = vmatpush1.msra.mxu0 0.0
      %3210 = vmatprep.subr.mxu0 0.0
      %3211 = vmatpush1.msra.mxu0 0.0
      %3212 = vmatprep.subr.mxu0 0.0
      %3213 = vmatpush1.msra.mxu0 0.0
      %3214 = vmatprep.subr.mxu0 0.0
      %3215 = vmatpush1.msra.mxu0 0.0
      %3216 = vmatprep.subr.mxu0 0.0
      %3217 = vmatpush1.msra.mxu0 0.0
      %3218 = vmatprep.subr.mxu0 0.0
      %3219 = vmatpush1.msra.mxu0 0.0
      %3220 = vmatprep.mubr.f32.mxu0 0.0
      %3221 = vmatmul.mubr.f32.gmra.mrb[0].mxu0 %v3056
      %v3222 = vpop.f32.mrb[0].mxu0
      %v3223 = vadd.f32 0.0, %v3222
      %v3224 = vpop.f32.mrb[0].mxu0
      %3225 = vmatprep.mubr.f32.mxu0 0.0
      %3226 = vmatmul.mubr.f32.gmra.mrb[0].mxu0 %v3059
      %v3227 = vpop.f32.mrb[0].mxu0
      %v3228 = vadd.f32 0.0, %v3227
      %v3229 = vpop.f32.mrb[0].mxu0
      %3230 = vmatprep.mubr.f32.mxu0 0.0
      %3231 = vmatmul.mubr.f32.gmra.mrb[0].mxu0 %v3062
      %v3232 = vpop.f32.mrb[0].mxu0
      %v3233 = vadd.f32 0.0, %v3232
      %v3234 = vpop.f32.mrb[0].mxu0
      %3235 = vmatprep.mubr.f32.mxu0 0.0
      %3236 = vmatmul.mubr.f32.gmra.mrb[0].mxu0 %v3065
      %v3237 = vpop.f32.mrb[0].mxu0
      %v3238 = vadd.f32 0.0, %v3237
      %v3239 = vpop.f32.mrb[0].mxu0
      %3240 = vdwg.mxu0
      %v3241 = vadd.f32 %v2916, %v3134
      %v3242 = vadd.f32 %v2917, %v3136
      %v3243 = vadd.f32 %v2918, %v3223
      %v3244 = vadd.f32 %v2919, %v3140
      %v3245 = vadd.f32 %v2920, %v3142
      %v3246 = vadd.f32 %v2921, %v3228
      %v3247 = vadd.f32 %v2922, %v3146
      %v3248 = vadd.f32 %v2923, %v3148
      %v3249 = vadd.f32 %v2924, %v3233
      %v3250 = vadd.f32 %v2925, %v3152
      %v3251 = vadd.f32 %v2926, %v3154
      %v3252 = vadd.f32 %v2927, %v3238
      %s3253 = scalar_lea.vmem %s3, 256
      %v3254 = vld [vmem:[%s3253] sm:$0xff]
      %v3255 = vld [vmem:[%s3253 + $0x8] sm:$0xff]
      %v3256 = vld [vmem:[%s3253 + $0x10] sm:$0xff]
      %v3257 = vld [vmem:[%s3253 + $0x18] sm:$0xff]
      %v3259 = vsel %vm681, %v3254, 0
      %v3262 = vsel %vm681, %v3255, 0
      %v3265 = vsel %vm681, %v3256, 0
      %v3268 = vsel %vm681, %v3257, 0
      %3270 = vmatprep.subr.mxu0 0.0
      %3271 = vmatpush1.msra.mxu0 %v673
      %3272 = vmatprep.subr.mxu0 0.0
      %3273 = vmatpush1.msra.mxu0 %v674
      %3274 = vmatprep.subr.mxu0 0.0
      %3275 = vmatpush1.msra.mxu0 %v675
      %3276 = vmatprep.subr.mxu0 0.0
      %3277 = vmatpush1.msra.mxu0 %v676
      %3278 = vmatprep.subr.mxu0 0.0
      %3279 = vmatpush1.msra.mxu0 0.0
      %3280 = vmatprep.subr.mxu0 0.0
      %3281 = vmatpush1.msra.mxu0 0.0
      %3282 = vmatprep.subr.mxu0 0.0
      %3283 = vmatpush1.msra.mxu0 0.0
      %3284 = vmatprep.subr.mxu0 0.0
      %3285 = vmatpush1.msra.mxu0 0.0
      %3286 = vmatprep.subr.mxu0 0.0
      %3287 = vmatpush1.msra.mxu0 0.0
      %3288 = vmatprep.subr.mxu0 0.0
      %3289 = vmatpush1.msra.mxu0 0.0
      %3290 = vmatprep.subr.mxu0 0.0
      %3291 = vmatpush1.msra.mxu0 0.0
      %3292 = vmatprep.subr.mxu0 0.0
      %3293 = vmatpush1.msra.mxu0 0.0
      %3294 = vmatprep.subr.mxu0 0.0
      %3295 = vmatpush1.msra.mxu0 0.0
      %3296 = vmatprep.subr.mxu0 0.0
      %3297 = vmatpush1.msra.mxu0 0.0
      %3298 = vmatprep.subr.mxu0 0.0
      %3299 = vmatpush1.msra.mxu0 0.0
      %3300 = vmatprep.subr.mxu0 0.0
      %3301 = vmatpush1.msra.mxu0 0.0
      %3302 = vmatprep.subr.mxu0 0.0
      %3303 = vmatpush1.msra.mxu0 0.0
      %3304 = vmatprep.subr.mxu0 0.0
      %3305 = vmatpush1.msra.mxu0 0.0
      %3306 = vmatprep.subr.mxu0 0.0
      %3307 = vmatpush1.msra.mxu0 0.0
      %3308 = vmatprep.subr.mxu0 0.0
      %3309 = vmatpush1.msra.mxu0 0.0
      %3310 = vmatprep.subr.mxu0 0.0
      %3311 = vmatpush1.msra.mxu0 0.0
      %3312 = vmatprep.subr.mxu0 0.0
      %3313 = vmatpush1.msra.mxu0 0.0
      %3314 = vmatprep.subr.mxu0 0.0
      %3315 = vmatpush1.msra.mxu0 0.0
      %3316 = vmatprep.subr.mxu0 0.0
      %3317 = vmatpush1.msra.mxu0 0.0
      %3318 = vmatprep.subr.mxu0 0.0
      %3319 = vmatpush1.msra.mxu0 0.0
      %3320 = vmatprep.subr.mxu0 0.0
      %3321 = vmatpush1.msra.mxu0 0.0
      %3322 = vmatprep.subr.mxu0 0.0
      %3323 = vmatpush1.msra.mxu0 0.0
      %3324 = vmatprep.subr.mxu0 0.0
      %3325 = vmatpush1.msra.mxu0 0.0
      %3326 = vmatprep.subr.mxu0 0.0
      %3327 = vmatpush1.msra.mxu0 0.0
      %3328 = vmatprep.subr.mxu0 0.0
      %3329 = vmatpush1.msra.mxu0 0.0
      %3330 = vmatprep.subr.mxu0 0.0
      %3331 = vmatpush1.msra.mxu0 0.0
      %3332 = vmatprep.subr.mxu0 0.0
      %3333 = vmatpush1.msra.mxu0 0.0
      %3334 = vmatprep.mubr.f32.mxu0 0.0
      %3335 = vmatmul.mubr.f32.gmra.mrb[0].mxu0 %v3259
      %v3336 = vpop.f32.mrb[0].mxu0
      %v3337 = vadd.f32 0.0, %v3336
      %v3338 = vpop.f32.mrb[0].mxu0
      %3339 = vmatprep.mubr.f32.mxu0 0.0
      %3340 = vmatmul.mubr.f32.gmra.mrb[0].mxu0 %v3262
      %v3341 = vpop.f32.mrb[0].mxu0
      %v3342 = vadd.f32 0.0, %v3341
      %v3343 = vpop.f32.mrb[0].mxu0
      %3344 = vmatprep.mubr.f32.mxu0 0.0
      %3345 = vmatmul.mubr.f32.gmra.mrb[0].mxu0 %v3265
      %v3346 = vpop.f32.mrb[0].mxu0
      %v3347 = vadd.f32 0.0, %v3346
      %v3348 = vpop.f32.mrb[0].mxu0
      %3349 = vmatprep.mubr.f32.mxu0 0.0
      %3350 = vmatmul.mubr.f32.gmra.mrb[0].mxu0 %v3268
      %v3351 = vpop.f32.mrb[0].mxu0
      %v3352 = vadd.f32 0.0, %v3351
      %v3353 = vpop.f32.mrb[0].mxu0
      %3354 = vdwg.mxu0
      %s3355 = scalar_lea.vmem %s4, 1536
      %v3356 = vld [vmem:[%s3355] sm:$0xff]
      %v3357 = vld [vmem:[%s3355 + $0x8] sm:$0xff]
      %v3358 = vld [vmem:[%s3355 + $0x10] sm:$0xff]
      %v3359 = vld [vmem:[%s3355 + $0x18] sm:$0xff]
      %v3360 = vld [vmem:[%s3355 + $0x20] sm:$0xff]
      %v3361 = vld [vmem:[%s3355 + $0x28] sm:$0xff]
      %v3362 = vld [vmem:[%s3355 + $0x30] sm:$0xff]
      %v3363 = vld [vmem:[%s3355 + $0x38] sm:$0xff]
      %v3364 = vld [vmem:[%s3355 + $0x40] sm:$0xff]
      %v3365 = vld [vmem:[%s3355 + $0x48] sm:$0xff]
      %v3366 = vld [vmem:[%s3355 + $0x50] sm:$0xff]
      %v3367 = vld [vmem:[%s3355 + $0x58] sm:$0xff]
      %v3368 = vld [vmem:[%s3355 + $0x60] sm:$0xff]
      %v3369 = vld [vmem:[%s3355 + $0x68] sm:$0xff]
      %v3370 = vld [vmem:[%s3355 + $0x70] sm:$0xff]
      %v3371 = vld [vmem:[%s3355 + $0x78] sm:$0xff]
      %v3372 = vld [vmem:[%s3355 + $0x80] sm:$0xff]
      %v3373 = vld [vmem:[%s3355 + $0x88] sm:$0xff]
      %v3374 = vld [vmem:[%s3355 + $0x90] sm:$0xff]
      %v3375 = vld [vmem:[%s3355 + $0x98] sm:$0xff]
      %v3376 = vld [vmem:[%s3355 + $0xa0] sm:$0xff]
      %v3377 = vld [vmem:[%s3355 + $0xa8] sm:$0xff]
      %v3378 = vld [vmem:[%s3355 + $0xb0] sm:$0xff]
      %v3379 = vld [vmem:[%s3355 + $0xb8] sm:$0xff]
      %v3381 = vsel %vm930, %v3337, 0
      %v3384 = vsel %vm930, %v3342, 0
      %v3387 = vsel %vm930, %v3347, 0
      %v3390 = vsel %vm930, %v3352, 0
      %3392 = vmatprep.subr.mxu0 %v3357
      %3393 = vmatpush1.msra.mxu0 %v3356
      %3394 = vmatprep.subr.mxu0 %v3360
      %3395 = vmatpush1.msra.mxu0 %v3359
      %3396 = vmatprep.subr.mxu0 %v3363
      %3397 = vmatpush1.msra.mxu0 %v3362
      %3398 = vmatprep.subr.mxu0 %v3366
      %3399 = vmatpush1.msra.mxu0 %v3365
      %3400 = vmatprep.subr.mxu0 %v3369
      %3401 = vmatpush1.msra.mxu0 %v3368
      %3402 = vmatprep.subr.mxu0 %v3372
      %3403 = vmatpush1.msra.mxu0 %v3371
      %3404 = vmatprep.subr.mxu0 %v3375
      %3405 = vmatpush1.msra.mxu0 %v3374
      %3406 = vmatprep.subr.mxu0 %v3378
      %3407 = vmatpush1.msra.mxu0 %v3377
      %3408 = vmatprep.subr.mxu0 0.0
      %3409 = vmatpush1.msra.mxu0 0.0
      %3410 = vmatprep.subr.mxu0 0.0
      %3411 = vmatpush1.msra.mxu0 0.0
      %3412 = vmatprep.subr.mxu0 0.0
      %3413 = vmatpush1.msra.mxu0 0.0
      %3414 = vmatprep.subr.mxu0 0.0
      %3415 = vmatpush1.msra.mxu0 0.0
      %3416 = vmatprep.subr.mxu0 0.0
      %3417 = vmatpush1.msra.mxu0 0.0
      %3418 = vmatprep.subr.mxu0 0.0
      %3419 = vmatpush1.msra.mxu0 0.0
      %3420 = vmatprep.subr.mxu0 0.0
      %3421 = vmatpush1.msra.mxu0 0.0
      %3422 = vmatprep.subr.mxu0 0.0
      %3423 = vmatpush1.msra.mxu0 0.0
      %3424 = vmatprep.subr.mxu0 0.0
      %3425 = vmatpush1.msra.mxu0 0.0
      %3426 = vmatprep.subr.mxu0 0.0
      %3427 = vmatpush1.msra.mxu0 0.0
      %3428 = vmatprep.subr.mxu0 0.0
      %3429 = vmatpush1.msra.mxu0 0.0
      %3430 = vmatprep.subr.mxu0 0.0
      %3431 = vmatpush1.msra.mxu0 0.0
      %3432 = vmatprep.subr.mxu0 0.0
      %3433 = vmatpush1.msra.mxu0 0.0
      %3434 = vmatprep.subr.mxu0 0.0
      %3435 = vmatpush1.msra.mxu0 0.0
      %3436 = vmatprep.subr.mxu0 0.0
      %3437 = vmatpush1.msra.mxu0 0.0
      %3438 = vmatprep.subr.mxu0 0.0
      %3439 = vmatpush1.msra.mxu0 0.0
      %3440 = vmatprep.subr.mxu0 0.0
      %3441 = vmatpush1.msra.mxu0 0.0
      %3442 = vmatprep.subr.mxu0 0.0
      %3443 = vmatpush1.msra.mxu0 0.0
      %3444 = vmatprep.subr.mxu0 0.0
      %3445 = vmatpush1.msra.mxu0 0.0
      %3446 = vmatprep.subr.mxu0 0.0
      %3447 = vmatpush1.msra.mxu0 0.0
      %3448 = vmatprep.subr.mxu0 0.0
      %3449 = vmatpush1.msra.mxu0 0.0
      %3450 = vmatprep.subr.mxu0 0.0
      %3451 = vmatpush1.msra.mxu0 0.0
      %3452 = vmatprep.subr.mxu0 0.0
      %3453 = vmatpush1.msra.mxu0 0.0
      %3454 = vmatprep.subr.mxu0 0.0
      %3455 = vmatpush1.msra.mxu0 0.0
      %3456 = vmatprep.mubr.f32.mxu0 0.0
      %3457 = vmatmul.mubr.f32.gmra.mrb[0].mxu0 %v3381
      %v3458 = vpop.f32.mrb[0].mxu0
      %v3459 = vadd.f32 0.0, %v3458
      %v3460 = vpop.f32.mrb[0].mxu0
      %v3461 = vadd.f32 0.0, %v3460
      %3462 = vmatprep.mubr.f32.mxu0 0.0
      %3463 = vmatmul.mubr.f32.gmra.mrb[0].mxu0 %v3384
      %v3464 = vpop.f32.mrb[0].mxu0
      %v3465 = vadd.f32 0.0, %v3464
      %v3466 = vpop.f32.mrb[0].mxu0
      %v3467 = vadd.f32 0.0, %v3466
      %3468 = vmatprep.mubr.f32.mxu0 0.0
      %3469 = vmatmul.mubr.f32.gmra.mrb[0].mxu0 %v3387
      %v3470 = vpop.f32.mrb[0].mxu0
      %v3471 = vadd.f32 0.0, %v3470
      %v3472 = vpop.f32.mrb[0].mxu0
      %v3473 = vadd.f32 0.0, %v3472
      %3474 = vmatprep.mubr.f32.mxu0 0.0
      %3475 = vmatmul.mubr.f32.gmra.mrb[0].mxu0 %v3390
      %v3476 = vpop.f32.mrb[0].mxu0
      %v3477 = vadd.f32 0.0, %v3476
      %v3478 = vpop.f32.mrb[0].mxu0
      %v3479 = vadd.f32 0.0, %v3478
      %3480 = vdwg.mxu0
      %3481 = vmatprep.subr.mxu0 0.0
      %3482 = vmatpush1.msra.mxu0 %v3358
      %3483 = vmatprep.subr.mxu0 0.0
      %3484 = vmatpush1.msra.mxu0 %v3361
      %3485 = vmatprep.subr.mxu0 0.0
      %3486 = vmatpush1.msra.mxu0 %v3364
      %3487 = vmatprep.subr.mxu0 0.0
      %3488 = vmatpush1.msra.mxu0 %v3367
      %3489 = vmatprep.subr.mxu0 0.0
      %3490 = vmatpush1.msra.mxu0 %v3370
      %3491 = vmatprep.subr.mxu0 0.0
      %3492 = vmatpush1.msra.mxu0 %v3373
      %3493 = vmatprep.subr.mxu0 0.0
      %3494 = vmatpush1.msra.mxu0 %v3376
      %3495 = vmatprep.subr.mxu0 0.0
      %3496 = vmatpush1.msra.mxu0 %v3379
      %3497 = vmatprep.subr.mxu0 0.0
      %3498 = vmatpush1.msra.mxu0 0.0
      %3499 = vmatprep.subr.mxu0 0.0
      %3500 = vmatpush1.msra.mxu0 0.0
      %3501 = vmatprep.subr.mxu0 0.0
      %3502 = vmatpush1.msra.mxu0 0.0
      %3503 = vmatprep.subr.mxu0 0.0
      %3504 = vmatpush1.msra.mxu0 0.0
      %3505 = vmatprep.subr.mxu0 0.0
      %3506 = vmatpush1.msra.mxu0 0.0
      %3507 = vmatprep.subr.mxu0 0.0
      %3508 = vmatpush1.msra.mxu0 0.0
      %3509 = vmatprep.subr.mxu0 0.0
      %3510 = vmatpush1.msra.mxu0 0.0
      %3511 = vmatprep.subr.mxu0 0.0
      %3512 = vmatpush1.msra.mxu0 0.0
      %3513 = vmatprep.subr.mxu0 0.0
      %3514 = vmatpush1.msra.mxu0 0.0
      %3515 = vmatprep.subr.mxu0 0.0
      %3516 = vmatpush1.msra.mxu0 0.0
      %3517 = vmatprep.subr.mxu0 0.0
      %3518 = vmatpush1.msra.mxu0 0.0
      %3519 = vmatprep.subr.mxu0 0.0
      %3520 = vmatpush1.msra.mxu0 0.0
      %3521 = vmatprep.subr.mxu0 0.0
      %3522 = vmatpush1.msra.mxu0 0.0
      %3523 = vmatprep.subr.mxu0 0.0
      %3524 = vmatpush1.msra.mxu0 0.0
      %3525 = vmatprep.subr.mxu0 0.0
      %3526 = vmatpush1.msra.mxu0 0.0
      %3527 = vmatprep.subr.mxu0 0.0
      %3528 = vmatpush1.msra.mxu0 0.0
      %3529 = vmatprep.subr.mxu0 0.0
      %3530 = vmatpush1.msra.mxu0 0.0
      %3531 = vmatprep.subr.mxu0 0.0
      %3532 = vmatpush1.msra.mxu0 0.0
      %3533 = vmatprep.subr.mxu0 0.0
      %3534 = vmatpush1.msra.mxu0 0.0
      %3535 = vmatprep.subr.mxu0 0.0
      %3536 = vmatpush1.msra.mxu0 0.0
      %3537 = vmatprep.subr.mxu0 0.0
      %3538 = vmatpush1.msra.mxu0 0.0
      %3539 = vmatprep.subr.mxu0 0.0
      %3540 = vmatpush1.msra.mxu0 0.0
      %3541 = vmatprep.subr.mxu0 0.0
      %3542 = vmatpush1.msra.mxu0 0.0
      %3543 = vmatprep.subr.mxu0 0.0
      %3544 = vmatpush1.msra.mxu0 0.0
      %3545 = vmatprep.mubr.f32.mxu0 0.0
      %3546 = vmatmul.mubr.f32.gmra.mrb[0].mxu0 %v3381
      %v3547 = vpop.f32.mrb[0].mxu0
      %v3548 = vadd.f32 0.0, %v3547
      %v3549 = vpop.f32.mrb[0].mxu0
      %3550 = vmatprep.mubr.f32.mxu0 0.0
      %3551 = vmatmul.mubr.f32.gmra.mrb[0].mxu0 %v3384
      %v3552 = vpop.f32.mrb[0].mxu0
      %v3553 = vadd.f32 0.0, %v3552
      %v3554 = vpop.f32.mrb[0].mxu0
      %3555 = vmatprep.mubr.f32.mxu0 0.0
      %3556 = vmatmul.mubr.f32.gmra.mrb[0].mxu0 %v3387
      %v3557 = vpop.f32.mrb[0].mxu0
      %v3558 = vadd.f32 0.0, %v3557
      %v3559 = vpop.f32.mrb[0].mxu0
      %3560 = vmatprep.mubr.f32.mxu0 0.0
      %3561 = vmatmul.mubr.f32.gmra.mrb[0].mxu0 %v3390
      %v3562 = vpop.f32.mrb[0].mxu0
      %v3563 = vadd.f32 0.0, %v3562
      %v3564 = vpop.f32.mrb[0].mxu0
      %3565 = vdwg.mxu0
      %v3566 = vadd.f32 %v3241, %v3459
      %v3567 = vadd.f32 %v3242, %v3461
      %v3568 = vadd.f32 %v3243, %v3548
      %v3569 = vadd.f32 %v3244, %v3465
      %v3570 = vadd.f32 %v3245, %v3467
      %v3571 = vadd.f32 %v3246, %v3553
      %v3572 = vadd.f32 %v3247, %v3471
      %v3573 = vadd.f32 %v3248, %v3473
      %v3574 = vadd.f32 %v3249, %v3558
      %v3575 = vadd.f32 %v3250, %v3477
      %v3576 = vadd.f32 %v3251, %v3479
      %v3577 = vadd.f32 %v3252, %v3563
      %v3578 = vld [vmem:[%s5] sm:$0xff]
      %v3579 = vld [vmem:[%s5 + $0x8] sm:$0xff]
      %v3580 = vld [vmem:[%s5 + $0x10] sm:$0xff]
      %v3581 = vld [vmem:[%s5 + $0x18] sm:$0xff]
      %3583 = vset.pattern.permute.xlu0 0
      %3584 = vperm.xlu0 %3583, %v3578
      %v3585 = vpop.permute.xlu0 %3584
      %3588 = vset.pattern.permute.xlu0 0
      %3589 = vperm.xlu0 %3588, %v3579
      %v3590 = vpop.permute.xlu0 %3589
      %3593 = vset.pattern.permute.xlu0 0
      %3594 = vperm.xlu0 %3593, %v3580
      %v3595 = vpop.permute.xlu0 %3594
      %3598 = vset.pattern.permute.xlu0 0
      %3599 = vperm.xlu0 %3598, %v3581
      %v3600 = vpop.permute.xlu0 %3599
      %v3602 = vadd.f32 %v3566, %v3585
      %v3603 = vadd.f32 %v3567, %v3585
      %v3604 = vadd.f32 %v3568, %v3585
      %v3605 = vadd.f32 %v3569, %v3590
      %v3606 = vadd.f32 %v3570, %v3590
      %v3607 = vadd.f32 %v3571, %v3590
      %v3608 = vadd.f32 %v3572, %v3595
      %v3609 = vadd.f32 %v3573, %v3595
      %v3610 = vadd.f32 %v3574, %v3595
      %v3611 = vadd.f32 %v3575, %v3600
      %v3612 = vadd.f32 %v3576, %v3600
      %v3613 = vadd.f32 %v3577, %v3600
      %v3614 = vmax.f32 %v3602, 0.0
      %v3615 = vmax.f32 %v3603, 0.0
      %v3616 = vmax.f32 %v3604, 0.0
      %v3617 = vmax.f32 %v3605, 0.0
      %v3618 = vmax.f32 %v3606, 0.0
      %v3619 = vmax.f32 %v3607, 0.0
      %v3620 = vmax.f32 %v3608, 0.0
      %v3621 = vmax.f32 %v3609, 0.0
      %v3622 = vmax.f32 %v3610, 0.0
      %v3623 = vmax.f32 %v3611, 0.0
      %v3624 = vmax.f32 %v3612, 0.0
      %v3625 = vmax.f32 %v3613, 0.0
      %3626 = vst [vmem:[%s251] sm:$0xff] %v3614
      %3627 = vst [vmem:[%s251 + $0x8] sm:$0xff] %v3615
      %3628 = vst [vmem:[%s251 + $0x10] sm:$0xff] %v3616
      %3629 = vst [vmem:[%s251 + $0x18] sm:$0xff] %v3617
      %3630 = vst [vmem:[%s251 + $0x20] sm:$0xff] %v3618
      %3631 = vst [vmem:[%s251 + $0x28] sm:$0xff] %v3619
      %3632 = vst [vmem:[%s251 + $0x30] sm:$0xff] %v3620
      %3633 = vst [vmem:[%s251 + $0x38] sm:$0xff] %v3621
      %3634 = vst [vmem:[%s251 + $0x40] sm:$0xff] %v3622
      %3635 = vst [vmem:[%s251 + $0x48] sm:$0xff] %v3623
      %3636 = vst [vmem:[%s251 + $0x50] sm:$0xff] %v3624
      %3637 = vst [vmem:[%s251 + $0x58] sm:$0xff] %v3625
      %p3638 = scmp.lt.s32.totalorder %s17, 1
      %s3639 = scalar_select %p3638, %s17, 1
      %s3640 = smul.addr %s3639, 12
      %s3641 = smul.addr %s3640, 8
      %s3642 = scalar_lea.vmem %s6, %s3641
      // Predicated region
      $region45: #{autoencoder_forward.1} parent=43 // pred_check
        %p3643 = pneg %p166
      $region46: #{autoencoder_forward.1} parent=43 // pred_check_branch
        %3645 = sbr.rel (%p3643) target = $region48
      $region47: #{autoencoder_forward.1} parent=43 // pred_region
        _
      $region48: #{autoencoder_forward.1} parent=43 // pred_fallthru
        _
    $region44: #{autoencoder_forward.1} parent=5 // pred_fallthru
      _
    %p3646 = scmp.le.s32.totalorder 2, %s12
    // Predicated region
    $region49: #{autoencoder_forward.1} parent=5 // pred_check
      %p3647 = pneg %p3646
    $region50: #{autoencoder_forward.1} parent=5 // pred_check_branch
      %3649 = sbr.rel (%p3647) target = $region52
    $region51: #{autoencoder_forward.1} parent=5 // pred_region
      %s3650 = ssub.s32 %s12, 2
      // Predicated region
      $region53: #{autoencoder_forward.1} parent=51 // pred_check
        %p3651 = pneg %p172
      $region54: #{autoencoder_forward.1} parent=51 // pred_check_branch
        %3653 = sbr.rel (%p3651) target = $region56
      $region55: #{autoencoder_forward.1} parent=51 // pred_region
        %p3654 = scmp.lt.s32.totalorder %s18, 1
        %s3655 = scalar_select %p3654, %s18, 1
        %s3656 = smul.addr %s3655, 12
        %s3657 = smul.addr %s3656, 8
        %s3658 = scalar_lea.vmem %s6, %s3657
      $region56: #{autoencoder_forward.1} parent=51 // pred_fallthru
        _
    $region52: #{autoencoder_forward.1} parent=5 // pred_fallthru
      _
  $region6: #{autoencoder_forward.1} parent=0 // loop_footer
    %s16 = sadd.s32 1, %s12
  $region7: #{autoencoder_forward.1} parent=0 // loop_footer_branch
    %11 = sbr.rel target = $region3
  $region8: #{autoencoder_forward.1} parent=0 // loop_exit
    _

</llo_original>
